<compile_context>
chip_gen: v7x
topology: tpu7x:2x2x1
jax: 0.10.0
libtpu: 0.0.40
codegen_flags: <defaults>
</compile_context>

<pallas_src>
import functools

import jax
import jax.numpy as jnp
import numpy as np
from jax import lax
from jax.experimental import pallas as pl
from jax.experimental.pallas import tpu as pltpu

N = 2  # batch size the packed constants are specialised for

# Static geometry of the six "conv-like" stages.
#   b0/brows : row band of the layer's weight-folded B_cat inside b_slab
#   l0       : row band of the layer's row-selector L_cat inside l_slab
#   K        : kernel size (number of row taps)
#   nh / nho : input / output activation rows (= batch * height)
_LAYERS = {
    "e1":   dict(b0=0,   brows=64, l0=0,  K=3, nh=32, nho=16),   # Conv2d 4->8,  16x16 -> 8x8
    "e2":   dict(b0=64,  brows=64, l0=16, K=3, nh=16, nho=8),    # Conv2d 8->16,  8x8  -> 4x4
    "fc12": dict(b0=128, brows=64, l0=24, K=4, nh=8,  nho=2),    # fc1|fc2 as 4x4 -> 1x1 conv
    "fc3":  dict(b0=192, brows=32, l0=32, K=4, nh=2,  nho=8),    # fc3 as 1x1 -> 4x4 convT
    "d1":   dict(b0=256, brows=64, l0=40, K=4, nh=8,  nho=16),   # ConvT 16->8,   4x4  -> 8x8
    "d2":   dict(b0=320, brows=64, l0=56, K=4, nh=16, nho=32),   # ConvT 8->4,    8x8  -> 16x16
}


# ----------------------------------------------------------------------------
# The fused Pallas kernel.  Activations live as (rows = batch*height,
# cols = channel*width) f32 tiles entirely in VMEM / vregs.
# ----------------------------------------------------------------------------
def _vae_kernel(x_ref, eps_ref, b_ref, l_ref, misc_ref, ml_ref, recon_ref):
    dot = functools.partial(jnp.dot, preferred_element_type=jnp.float32)

    def layer(x, name):
        """One conv-like stage:  Y = sum_i  L_i @ X @ B_i   -> (nho, 64)."""
        c = _LAYERS[name]
        k, nh = c["K"], c["nh"]
        zt = dot(x, b_ref[c["b0"]:c["b0"] + c["brows"], :])        # (nh, 256)
        lband = l_ref[c["l0"]:c["l0"] + c["nho"], :]               # (nho, 128)
        y = None
        for i in range(k):                                         # K independent small dots
            t = dot(lband[:, i * nh:(i + 1) * nh], zt[:, i * 64:(i + 1) * 64])
            y = t if y is None else y + t
        return y

    q = misc_ref[24:88, :]                                         # (64,64) per-channel pool+broadcast

    def bn(y, g_row, b_row):
        """PyTorch train-mode BatchNorm2d (batch stats, eps=1e-5), two-pass."""
        mean = dot(jnp.sum(y, axis=0, keepdims=True), q)           # (1, 64)
        yc = y - mean
        var = dot(jnp.sum(yc * yc, axis=0, keepdims=True), q)      # centered -> never negative
        return yc * lax.rsqrt(var + 1e-5) * g_row + b_row

    x = x_ref[...]                                                 # (32, 64): rows (n,h), cols (c,w)

    # ----------------------------- encoder -----------------------------
    h1 = layer(x, "e1") + misc_ref[0:1, :]
    h1 = jnp.maximum(bn(h1, misc_ref[1:2, :], misc_ref[2:3, :]), 0.0)    # (16, 64)
    h2 = jnp.maximum(layer(h1, "e2") + misc_ref[3:4, :], 0.0)            # (8, 64)

    # ---------------- fc1 | fc2 (fused) + reparameterisation ----------------
    ml = layer(h2, "fc12") + misc_ref[4:5, :]                            # (2, 64) = [mean | logvar]
    mean = ml[:, 0:32]
    logvar = ml[:, 32:64]
    z = mean + jnp.exp(0.5 * logvar) * eps_ref[...]                      # (2, 32)
    ml_ref[...] = ml

    # ----------------------------- decoder -----------------------------
    g = layer(z, "fc3") + misc_ref[8:16, :]                              # (8, 64)
    d1 = layer(g, "d1") + misc_ref[5:6, :]
    d1 = jnp.maximum(bn(d1, misc_ref[6:7, :], misc_ref[7:8, :]), 0.0)    # (16, 64)
    d2 = layer(d1, "d2") + misc_ref[16:17, :]                            # (32, 64)
    recon_ref[...] = jax.nn.sigmoid(d2)


_VMEM = pl.BlockSpec(memory_space=pltpu.MemorySpace.VMEM)


# ----------------------------------------------------------------------------
# jitted wrapper: tiny input/output layout transposes + one pallas_call.
# ----------------------------------------------------------------------------
@jax.jit
def vae_forward(x, eps, consts):
    n = x.shape[0]
    # NCHW -> (N*H, C*W)
    x_l = jnp.transpose(x, (0, 2, 1, 3)).reshape(n * 16, 4 * 16)          # (32, 64)

    ml, recon_l = pl.pallas_call(
        _vae_kernel,
        out_shape=(
            jax.ShapeDtypeStruct((n, 64), jnp.float32),                   # [mean | logvar]
            jax.ShapeDtypeStruct((n * 16, 4 * 16), jnp.float32),          # recon, (N*H, C*W)
        ),
        in_specs=[_VMEM] * 5,
        out_specs=(_VMEM, _VMEM),
    )(x_l, eps, consts["b_slab"], consts["l_slab"], consts["misc_slab"])

    mean = ml[:, 0:32]
    log_var = ml[:, 32:64]
    recon = jnp.transpose(recon_l.reshape(n, 16, 4, 16), (0, 2, 1, 3))    # NCHW
    return mean, log_var, recon


# ----------------------------------------------------------------------------
# One-time host-side constant preparation (weights folded into B matrices).
# ----------------------------------------------------------------------------
def _layer_consts(w, k, s, p, h, wd, ho, wo, cin, cout, transposed):
    """Per-row-tap weight-folded B_i (Cin*W, Cout*Wo) and row selector L_i (Ho, H)."""
    w = np.asarray(w, np.float32)
    bmat = np.zeros((k, cin * wd, cout * wo), np.float32)
    lmat = np.zeros((k, ho, h), np.float32)
    for i in range(k):
        for oy in range(ho):
            if not transposed:
                src = s * oy + i - p
                if 0 <= src < h:
                    lmat[i, oy, src] = 1.0
            else:
                src, rem = divmod(oy + p - i, s)
                if rem == 0 and 0 <= src < h:
                    lmat[i, oy, src] = 1.0
        for ci in range(cin):
            for wc in range(wd):
                for co in range(cout):
                    for ox in range(wo):
                        if not transposed:
                            j = wc - s * ox + p
                            if 0 <= j < k:
                                bmat[i, ci * wd + wc, co * wo + ox] = w[co, ci, i, j]
                        else:
                            j = ox - s * wc + p
                            if 0 <= j < k:
                                bmat[i, ci * wd + wc, co * wo + ox] = w[ci, co, i, j]
    return bmat, lmat


def prepare_constants(params, batch=2):
    assert batch == N, "packed constants are specialised for batch=N"
    p = {k: np.asarray(jax.device_get(v), np.float32) for k, v in params.items()}

    # fc1|fc2 as a 4x4 -> 1x1 conv (Cout = 64), fc3 as a 1x1 -> 4x4 convT.
    fc_cat = np.concatenate([p["fc1_w"], p["fc2_w"]], axis=1)             # (256, 64)
    w_fc12 = fc_cat.reshape(16, 4, 4, 64).transpose(3, 0, 1, 2)           # (64, 16, 4, 4)
    w_fc3 = p["fc3_w"].reshape(32, 16, 4, 4)                              # (Cin, Cout, K, K)

    specs = [
        # name,  weight,     K, s, p,  H,  W, Ho, Wo, Cin, Cout, transposed
        ("e1",   p["e1_w"],  3, 2, 1, 16, 16,  8,  8,  4,   8,  False),
        ("e2",   p["e2_w"],  3, 2, 1,  8,  8,  4,  4,  8,  16,  False),
        ("fc12", w_fc12,     4, 1, 0,  4,  4,  1,  1, 16,  64,  False),
        ("fc3",  w_fc3,      4, 1, 0,  1,  1,  4,  4, 32,  16,  True),
        ("d1",   p["d1_w"],  4, 2, 1,  4,  4,  8,  8, 16,   8,  True),
        ("d2",   p["d2_w"],  4, 2, 1,  8,  8, 16, 16,  8,   4,  True),
    ]

    b_slab = np.zeros((6 * 64, 256), np.float32)
    l_slab = np.zeros((88, 128), np.float32)
    eye_n = np.eye(batch, dtype=np.float32)
    for name, w, k, s, pad, h, wd, ho, wo, cin, cout, tr in specs:
        c = _LAYERS[name]
        bmat, lmat = _layer_consts(w, k, s, pad, h, wd, ho, wo, cin, cout, tr)
        for i in range(k):
            b_slab[c["b0"]:c["b0"] + cin * wd, 64 * i:64 * i + cout * wo] = bmat[i]
            l_full = np.kron(eye_n, lmat[i])                              # (N*Ho, N*H)
            l_slab[c["l0"]:c["l0"] + batch * ho,
                   i * batch * h:(i + 1) * batch * h] = l_full

    # bias / gamma / beta rows (all width Cout*Wo == 64) + BN pool matrix Q.
    misc = np.zeros((88, 64), np.float32)
    misc[0] = np.repeat(p["e1_b"], 8)
    misc[1] = np.repeat(p["e1_g"], 8)
    misc[2] = np.repeat(p["e1_be"], 8)
    misc[3] = np.repeat(p["e2_b"], 4)
    misc[4] = np.concatenate([p["fc1_b"], p["fc2_b"]])
    misc[5] = np.repeat(p["d1_b"], 8)
    misc[6] = np.repeat(p["d1_g"], 8)
    misc[7] = np.repeat(p["d1_be"], 8)
    b3 = p["fc3_b"].reshape(16, 4, 4).transpose(1, 0, 2).reshape(4, 64)   # rows oy, cols (c,ox)
    misc[8:16] = np.tile(b3, (batch, 1))
    misc[16] = np.repeat(p["d2_b"], 16)
    misc[24:88] = np.kron(np.eye(8, dtype=np.float32),
                          np.ones((8, 8), np.float32)) / float(batch * 8 * 8)

    return {
        "b_slab": jnp.asarray(b_slab),
        "l_slab": jnp.asarray(l_slab),
        "misc_slab": jnp.asarray(misc),
    }


# ----------------------------------------------------------------------------
# Model config (same as the PyTorch spec instantiation):
#   input (4,16,16), e_channels=[4,8,16], k3/s2/p1, z_dim=32,
#   d_channels=[16,8,4], k4/s2/p1, ReLU / ReLU / Sigmoid, batch_norm=True.
# Linear weights are stored (in, out): out = x @ W + b  (== PyTorch weight.T).
# ----------------------------------------------------------------------------
def init_params(key):
    ks = jax.random.split(key, 20)
    nrm = lambda k, s: (0.1 * jax.random.normal(k, s)).astype(jnp.float32)
    return {
        "e1_w": nrm(ks[0], (8, 4, 3, 3)), "e1_b": nrm(ks[1], (8,)),
        "e1_g": 1.0 + nrm(ks[2], (8,)), "e1_be": nrm(ks[3], (8,)),
        "e2_w": nrm(ks[4], (16, 8, 3, 3)), "e2_b": nrm(ks[5], (16,)),
        "fc1_w": nrm(ks[6], (256, 32)), "fc1_b": nrm(ks[7], (32,)),
        "fc2_w": nrm(ks[8], (256, 32)), "fc2_b": nrm(ks[9], (32,)),
        "fc3_w": nrm(ks[10], (32, 256)), "fc3_b": nrm(ks[11], (256,)),
        "d1_w": nrm(ks[12], (16, 8, 4, 4)), "d1_b": nrm(ks[13], (8,)),
        "d1_g": 1.0 + nrm(ks[14], (8,)), "d1_be": nrm(ks[15], (8,)),
        "d2_w": nrm(ks[16], (8, 4, 4, 4)), "d2_b": nrm(ks[17], (4,)),
    }


# ----------------------------------------------------------------------------
# Pure-JAX (XLA) reference of the PyTorch module, for numerical parity.
# ----------------------------------------------------------------------------
def reference_forward(x, eps, p):
    def conv(h, w, b, s, pad):
        y = lax.conv_general_dilated(h, w, (s, s), ((pad, pad), (pad, pad)),
                                     dimension_numbers=("NCHW", "OIHW", "NCHW"))
        return y + b.reshape(1, -1, 1, 1)

    def convt(h, w, b, s, pad):
        k = w.shape[2]
        wt = jnp.transpose(w[:, :, ::-1, ::-1], (1, 0, 2, 3))
        y = lax.conv_general_dilated(h, wt, (1, 1),
                                     ((k - 1 - pad,) * 2, (k - 1 - pad,) * 2),
                                     lhs_dilation=(s, s),
                                     dimension_numbers=("NCHW", "OIHW", "NCHW"))
        return y + b.reshape(1, -1, 1, 1)

    def bn(y, g, be):
        m = jnp.mean(y, axis=(0, 2, 3), keepdims=True)
        v = jnp.mean((y - m) ** 2, axis=(0, 2, 3), keepdims=True)
        return (y - m) * lax.rsqrt(v + 1e-5) * g.reshape(1, -1, 1, 1) + be.reshape(1, -1, 1, 1)

    h = jax.nn.relu(bn(conv(x, p["e1_w"], p["e1_b"], 2, 1), p["e1_g"], p["e1_be"]))
    h = jax.nn.relu(conv(h, p["e2_w"], p["e2_b"], 2, 1))
    hf = h.reshape(h.shape[0], -1)
    mean = hf @ p["fc1_w"] + p["fc1_b"]
    logvar = hf @ p["fc2_w"] + p["fc2_b"]
    z = mean + jnp.exp(0.5 * logvar) * eps
    g = (z @ p["fc3_w"] + p["fc3_b"]).reshape(-1, 16, 4, 4)
    g = jax.nn.relu(bn(convt(g, p["d1_w"], p["d1_b"], 2, 1), p["d1_g"], p["d1_be"]))
    recon = jax.nn.sigmoid(convt(g, p["d2_w"], p["d2_b"], 2, 1))
    return mean, logvar, recon


if __name__ == "__main__":
    key = jax.random.PRNGKey(0)
    k_param, k_x, k_eps = jax.random.split(key, 3)

    params = init_params(k_param)
    consts = prepare_constants(params, batch=2)      # one-time host prep (weights folded in)
    x = jax.random.normal(k_x, (2, 4, 16, 16), dtype=jnp.float32)   # NCHW
    eps = jax.random.normal(k_eps, (2, 32), dtype=jnp.float32)      # reparameterisation noise

    mean, log_var, recon = vae_forward(x, eps, consts)
    jax.block_until_ready((mean, log_var, recon))

    # shape / sanity checks
    assert mean.shape == (2, 32) and log_var.shape == (2, 32)
    assert recon.shape == (2, 4, 16, 16)
    assert bool(jnp.all(jnp.isfinite(recon)))
    assert bool(jnp.all((recon >= 0.0) & (recon <= 1.0)))           # sigmoid output range

    # numerical parity vs. the plain-JAX/XLA reference of the PyTorch module
    # (tolerance accommodates TPU default-precision matmul/conv differences).
    mean_r, logvar_r, recon_r = reference_forward(x, eps, params)
    for got, want in ((mean, mean_r), (log_var, logvar_r), (recon, recon_r)):
        err = float(jnp.max(jnp.abs(got - want)))
        assert err < 5e-2, f"parity error too large: {err}"

    print("KERNEL_OK")
</pallas_src>

<mosaic_0001>
module attributes {stable_mosaic.version = 11 : i64} {
  func.func @_vae_kernel(%arg0: memref<32x64xf32, #tpu.memory_space<vmem>>, %arg1: memref<2x32xf32, #tpu.memory_space<vmem>>, %arg2: memref<384x256xf32, #tpu.memory_space<vmem>>, %arg3: memref<88x128xf32, #tpu.memory_space<vmem>>, %arg4: memref<88x64xf32, #tpu.memory_space<vmem>>, %arg5: memref<2x64xf32, #tpu.memory_space<vmem>>, %arg6: memref<32x64xf32, #tpu.memory_space<vmem>>) attributes {dimension_semantics = [], scalar_prefetch = 0 : i64, scratch_operands = 0 : i64, tpu.core_type = #tpu.core_type<tc>} {
    %c24 = arith.constant 24 : index
    %c0 = arith.constant 0 : index
    %0 = vector.load %arg4[%c24, %c0] : memref<88x64xf32, #tpu.memory_space<vmem>>, vector<64x64xf32>
    %c0_0 = arith.constant 0 : index
    %c0_1 = arith.constant 0 : index
    %1 = vector.load %arg0[%c0_0, %c0_1] : memref<32x64xf32, #tpu.memory_space<vmem>>, vector<32x64xf32>
    %c0_2 = arith.constant 0 : index
    %c0_3 = arith.constant 0 : index
    %2 = vector.load %arg2[%c0_2, %c0_3] : memref<384x256xf32, #tpu.memory_space<vmem>>, vector<64x256xf32>
    %cst = arith.constant dense<0.000000e+00> : vector<32x256xf32>
    %3 = tpu.matmul %1, %2, %cst {dimension_numbers = #tpu.dot_dimension_numbers<[1], [0], [0], [1], [0, 0, 1, 1], [], []>} : vector<32x64xf32>, vector<64x256xf32>, vector<32x256xf32> -> vector<32x256xf32>
    %c0_4 = arith.constant 0 : index
    %c0_5 = arith.constant 0 : index
    %4 = vector.load %arg3[%c0_4, %c0_5] : memref<88x128xf32, #tpu.memory_space<vmem>>, vector<16x128xf32>
    %5 = vector.extract_strided_slice %4 {offsets = [0, 0], sizes = [16, 32], strides = [1, 1]} : vector<16x128xf32> to vector<16x32xf32>
    %6 = vector.extract_strided_slice %3 {offsets = [0, 0], sizes = [32, 64], strides = [1, 1]} : vector<32x256xf32> to vector<32x64xf32>
    %cst_6 = arith.constant dense<0.000000e+00> : vector<16x64xf32>
    %7 = tpu.matmul %5, %6, %cst_6 {dimension_numbers = #tpu.dot_dimension_numbers<[1], [0], [0], [1], [0, 0, 1, 1], [], []>} : vector<16x32xf32>, vector<32x64xf32>, vector<16x64xf32> -> vector<16x64xf32>
    %8 = vector.extract_strided_slice %4 {offsets = [0, 32], sizes = [16, 32], strides = [1, 1]} : vector<16x128xf32> to vector<16x32xf32>
    %9 = vector.extract_strided_slice %3 {offsets = [0, 64], sizes = [32, 64], strides = [1, 1]} : vector<32x256xf32> to vector<32x64xf32>
    %cst_7 = arith.constant dense<0.000000e+00> : vector<16x64xf32>
    %10 = tpu.matmul %8, %9, %cst_7 {dimension_numbers = #tpu.dot_dimension_numbers<[1], [0], [0], [1], [0, 0, 1, 1], [], []>} : vector<16x32xf32>, vector<32x64xf32>, vector<16x64xf32> -> vector<16x64xf32>
    %11 = arith.addf %7, %10 : vector<16x64xf32>
    %12 = vector.extract_strided_slice %4 {offsets = [0, 64], sizes = [16, 32], strides = [1, 1]} : vector<16x128xf32> to vector<16x32xf32>
    %13 = vector.extract_strided_slice %3 {offsets = [0, 128], sizes = [32, 64], strides = [1, 1]} : vector<32x256xf32> to vector<32x64xf32>
    %cst_8 = arith.constant dense<0.000000e+00> : vector<16x64xf32>
    %14 = tpu.matmul %12, %13, %cst_8 {dimension_numbers = #tpu.dot_dimension_numbers<[1], [0], [0], [1], [0, 0, 1, 1], [], []>} : vector<16x32xf32>, vector<32x64xf32>, vector<16x64xf32> -> vector<16x64xf32>
    %15 = arith.addf %11, %14 : vector<16x64xf32>
    %c0_9 = arith.constant 0 : index
    %c0_10 = arith.constant 0 : index
    %16 = vector.load %arg4[%c0_9, %c0_10] : memref<88x64xf32, #tpu.memory_space<vmem>>, vector<1x64xf32>
    %17 = vector.broadcast %16 : vector<1x64xf32> to vector<16x64xf32>
    %18 = arith.addf %15, %17 : vector<16x64xf32>
    %c1 = arith.constant 1 : index
    %c0_11 = arith.constant 0 : index
    %19 = vector.load %arg4[%c1, %c0_11] : memref<88x64xf32, #tpu.memory_space<vmem>>, vector<1x64xf32>
    %c2 = arith.constant 2 : index
    %c0_12 = arith.constant 0 : index
    %20 = vector.load %arg4[%c2, %c0_12] : memref<88x64xf32, #tpu.memory_space<vmem>>, vector<1x64xf32>
    %cst_13 = arith.constant dense<0.000000e+00> : vector<64xf32>
    %21 = vector.multi_reduction <add>, %18, %cst_13 [0] : vector<16x64xf32> to vector<64xf32>
    %22 = vector.shape_cast %21 : vector<64xf32> to vector<1x64xf32>
    %cst_14 = arith.constant dense<0.000000e+00> : vector<1x64xf32>
    %23 = tpu.matmul %22, %0, %cst_14 {dimension_numbers = #tpu.dot_dimension_numbers<[1], [0], [0], [1], [0, 0, 1, 1], [], []>} : vector<1x64xf32>, vector<64x64xf32>, vector<1x64xf32> -> vector<1x64xf32>
    %24 = vector.broadcast %23 : vector<1x64xf32> to vector<16x64xf32>
    %25 = arith.subf %18, %24 : vector<16x64xf32>
    %26 = arith.mulf %25, %25 : vector<16x64xf32>
    %cst_15 = arith.constant dense<0.000000e+00> : vector<64xf32>
    %27 = vector.multi_reduction <add>, %26, %cst_15 [0] : vector<16x64xf32> to vector<64xf32>
    %28 = vector.shape_cast %27 : vector<64xf32> to vector<1x64xf32>
    %cst_16 = arith.constant dense<0.000000e+00> : vector<1x64xf32>
    %29 = tpu.matmul %28, %0, %cst_16 {dimension_numbers = #tpu.dot_dimension_numbers<[1], [0], [0], [1], [0, 0, 1, 1], [], []>} : vector<1x64xf32>, vector<64x64xf32>, vector<1x64xf32> -> vector<1x64xf32>
    %cst_17 = arith.constant 9.99999974E-6 : f32
    %30 = vector.broadcast %cst_17 : f32 to vector<1x64xf32>
    %31 = arith.addf %29, %30 : vector<1x64xf32>
    %32 = math.rsqrt %31 : vector<1x64xf32>
    %33 = vector.broadcast %32 : vector<1x64xf32> to vector<16x64xf32>
    %34 = arith.mulf %25, %33 : vector<16x64xf32>
    %35 = vector.broadcast %19 : vector<1x64xf32> to vector<16x64xf32>
    %36 = arith.mulf %34, %35 : vector<16x64xf32>
    %37 = vector.broadcast %20 : vector<1x64xf32> to vector<16x64xf32>
    %38 = arith.addf %36, %37 : vector<16x64xf32>
    %cst_18 = arith.constant 0.000000e+00 : f32
    %39 = vector.broadcast %cst_18 : f32 to vector<16x64xf32>
    %40 = arith.maximumf %38, %39 : vector<16x64xf32>
    %c64 = arith.constant 64 : index
    %c0_19 = arith.constant 0 : index
    %41 = vector.load %arg2[%c64, %c0_19] : memref<384x256xf32, #tpu.memory_space<vmem>>, vector<64x256xf32>
    %cst_20 = arith.constant dense<0.000000e+00> : vector<16x256xf32>
    %42 = tpu.matmul %40, %41, %cst_20 {dimension_numbers = #tpu.dot_dimension_numbers<[1], [0], [0], [1], [0, 0, 1, 1], [], []>} : vector<16x64xf32>, vector<64x256xf32>, vector<16x256xf32> -> vector<16x256xf32>
    %c16 = arith.constant 16 : index
    %c0_21 = arith.constant 0 : index
    %43 = vector.load %arg3[%c16, %c0_21] : memref<88x128xf32, #tpu.memory_space<vmem>>, vector<8x128xf32>
    %44 = vector.extract_strided_slice %43 {offsets = [0, 0], sizes = [8, 16], strides = [1, 1]} : vector<8x128xf32> to vector<8x16xf32>
    %45 = vector.extract_strided_slice %42 {offsets = [0, 0], sizes = [16, 64], strides = [1, 1]} : vector<16x256xf32> to vector<16x64xf32>
    %cst_22 = arith.constant dense<0.000000e+00> : vector<8x64xf32>
    %46 = tpu.matmul %44, %45, %cst_22 {dimension_numbers = #tpu.dot_dimension_numbers<[1], [0], [0], [1], [0, 0, 1, 1], [], []>} : vector<8x16xf32>, vector<16x64xf32>, vector<8x64xf32> -> vector<8x64xf32>
    %47 = vector.extract_strided_slice %43 {offsets = [0, 16], sizes = [8, 16], strides = [1, 1]} : vector<8x128xf32> to vector<8x16xf32>
    %48 = vector.extract_strided_slice %42 {offsets = [0, 64], sizes = [16, 64], strides = [1, 1]} : vector<16x256xf32> to vector<16x64xf32>
    %cst_23 = arith.constant dense<0.000000e+00> : vector<8x64xf32>
    %49 = tpu.matmul %47, %48, %cst_23 {dimension_numbers = #tpu.dot_dimension_numbers<[1], [0], [0], [1], [0, 0, 1, 1], [], []>} : vector<8x16xf32>, vector<16x64xf32>, vector<8x64xf32> -> vector<8x64xf32>
    %50 = arith.addf %46, %49 : vector<8x64xf32>
    %51 = vector.extract_strided_slice %43 {offsets = [0, 32], sizes = [8, 16], strides = [1, 1]} : vector<8x128xf32> to vector<8x16xf32>
    %52 = vector.extract_strided_slice %42 {offsets = [0, 128], sizes = [16, 64], strides = [1, 1]} : vector<16x256xf32> to vector<16x64xf32>
    %cst_24 = arith.constant dense<0.000000e+00> : vector<8x64xf32>
    %53 = tpu.matmul %51, %52, %cst_24 {dimension_numbers = #tpu.dot_dimension_numbers<[1], [0], [0], [1], [0, 0, 1, 1], [], []>} : vector<8x16xf32>, vector<16x64xf32>, vector<8x64xf32> -> vector<8x64xf32>
    %54 = arith.addf %50, %53 : vector<8x64xf32>
    %c3 = arith.constant 3 : index
    %c0_25 = arith.constant 0 : index
    %55 = vector.load %arg4[%c3, %c0_25] : memref<88x64xf32, #tpu.memory_space<vmem>>, vector<1x64xf32>
    %56 = vector.broadcast %55 : vector<1x64xf32> to vector<8x64xf32>
    %57 = arith.addf %54, %56 : vector<8x64xf32>
    %cst_26 = arith.constant 0.000000e+00 : f32
    %58 = vector.broadcast %cst_26 : f32 to vector<8x64xf32>
    %59 = arith.maximumf %57, %58 : vector<8x64xf32>
    %c128 = arith.constant 128 : index
    %c0_27 = arith.constant 0 : index
    %60 = vector.load %arg2[%c128, %c0_27] : memref<384x256xf32, #tpu.memory_space<vmem>>, vector<64x256xf32>
    %cst_28 = arith.constant dense<0.000000e+00> : vector<8x256xf32>
    %61 = tpu.matmul %59, %60, %cst_28 {dimension_numbers = #tpu.dot_dimension_numbers<[1], [0], [0], [1], [0, 0, 1, 1], [], []>} : vector<8x64xf32>, vector<64x256xf32>, vector<8x256xf32> -> vector<8x256xf32>
    %c24_29 = arith.constant 24 : index
    %c0_30 = arith.constant 0 : index
    %62 = vector.load %arg3[%c24_29, %c0_30] : memref<88x128xf32, #tpu.memory_space<vmem>>, vector<2x128xf32>
    %63 = vector.extract_strided_slice %62 {offsets = [0, 0], sizes = [2, 8], strides = [1, 1]} : vector<2x128xf32> to vector<2x8xf32>
    %64 = vector.extract_strided_slice %61 {offsets = [0, 0], sizes = [8, 64], strides = [1, 1]} : vector<8x256xf32> to vector<8x64xf32>
    %cst_31 = arith.constant dense<0.000000e+00> : vector<2x64xf32>
    %65 = tpu.matmul %63, %64, %cst_31 {dimension_numbers = #tpu.dot_dimension_numbers<[1], [0], [0], [1], [0, 0, 1, 1], [], []>} : vector<2x8xf32>, vector<8x64xf32>, vector<2x64xf32> -> vector<2x64xf32>
    %66 = vector.extract_strided_slice %62 {offsets = [0, 8], sizes = [2, 8], strides = [1, 1]} : vector<2x128xf32> to vector<2x8xf32>
    %67 = vector.extract_strided_slice %61 {offsets = [0, 64], sizes = [8, 64], strides = [1, 1]} : vector<8x256xf32> to vector<8x64xf32>
    %cst_32 = arith.constant dense<0.000000e+00> : vector<2x64xf32>
    %68 = tpu.matmul %66, %67, %cst_32 {dimension_numbers = #tpu.dot_dimension_numbers<[1], [0], [0], [1], [0, 0, 1, 1], [], []>} : vector<2x8xf32>, vector<8x64xf32>, vector<2x64xf32> -> vector<2x64xf32>
    %69 = arith.addf %65, %68 : vector<2x64xf32>
    %70 = vector.extract_strided_slice %62 {offsets = [0, 16], sizes = [2, 8], strides = [1, 1]} : vector<2x128xf32> to vector<2x8xf32>
    %71 = vector.extract_strided_slice %61 {offsets = [0, 128], sizes = [8, 64], strides = [1, 1]} : vector<8x256xf32> to vector<8x64xf32>
    %cst_33 = arith.constant dense<0.000000e+00> : vector<2x64xf32>
    %72 = tpu.matmul %70, %71, %cst_33 {dimension_numbers = #tpu.dot_dimension_numbers<[1], [0], [0], [1], [0, 0, 1, 1], [], []>} : vector<2x8xf32>, vector<8x64xf32>, vector<2x64xf32> -> vector<2x64xf32>
    %73 = arith.addf %69, %72 : vector<2x64xf32>
    %74 = vector.extract_strided_slice %62 {offsets = [0, 24], sizes = [2, 8], strides = [1, 1]} : vector<2x128xf32> to vector<2x8xf32>
    %75 = vector.extract_strided_slice %61 {offsets = [0, 192], sizes = [8, 64], strides = [1, 1]} : vector<8x256xf32> to vector<8x64xf32>
    %cst_34 = arith.constant dense<0.000000e+00> : vector<2x64xf32>
    %76 = tpu.matmul %74, %75, %cst_34 {dimension_numbers = #tpu.dot_dimension_numbers<[1], [0], [0], [1], [0, 0, 1, 1], [], []>} : vector<2x8xf32>, vector<8x64xf32>, vector<2x64xf32> -> vector<2x64xf32>
    %77 = arith.addf %73, %76 : vector<2x64xf32>
    %c4 = arith.constant 4 : index
    %c0_35 = arith.constant 0 : index
    %78 = vector.load %arg4[%c4, %c0_35] : memref<88x64xf32, #tpu.memory_space<vmem>>, vector<1x64xf32>
    %79 = vector.broadcast %78 : vector<1x64xf32> to vector<2x64xf32>
    %80 = arith.addf %77, %79 : vector<2x64xf32>
    %81 = vector.extract_strided_slice %80 {offsets = [0, 0], sizes = [2, 32], strides = [1, 1]} : vector<2x64xf32> to vector<2x32xf32>
    %82 = vector.extract_strided_slice %80 {offsets = [0, 32], sizes = [2, 32], strides = [1, 1]} : vector<2x64xf32> to vector<2x32xf32>
    %cst_36 = arith.constant 5.000000e-01 : f32
    %83 = vector.broadcast %cst_36 : f32 to vector<2x32xf32>
    %84 = arith.mulf %83, %82 : vector<2x32xf32>
    %85 = math.exp %84 : vector<2x32xf32>
    %c0_37 = arith.constant 0 : index
    %c0_38 = arith.constant 0 : index
    %86 = vector.load %arg1[%c0_37, %c0_38] : memref<2x32xf32, #tpu.memory_space<vmem>>, vector<2x32xf32>
    %87 = arith.mulf %85, %86 : vector<2x32xf32>
    %88 = arith.addf %81, %87 : vector<2x32xf32>
    %c0_39 = arith.constant 0 : index
    %c0_40 = arith.constant 0 : index
    %89 = vector.load %arg5[%c0_39, %c0_40] : memref<2x64xf32, #tpu.memory_space<vmem>>, vector<2x64xf32>
    tpu.vector_store %arg5[%c0_39, %c0_40], %80 {strides = array<i32>} : memref<2x64xf32, #tpu.memory_space<vmem>>, vector<2x64xf32>,
    %c192 = arith.constant 192 : index
    %c0_41 = arith.constant 0 : index
    %90 = vector.load %arg2[%c192, %c0_41] : memref<384x256xf32, #tpu.memory_space<vmem>>, vector<32x256xf32>
    %cst_42 = arith.constant dense<0.000000e+00> : vector<2x256xf32>
    %91 = tpu.matmul %88, %90, %cst_42 {dimension_numbers = #tpu.dot_dimension_numbers<[1], [0], [0], [1], [0, 0, 1, 1], [], []>} : vector<2x32xf32>, vector<32x256xf32>, vector<2x256xf32> -> vector<2x256xf32>
    %c32 = arith.constant 32 : index
    %c0_43 = arith.constant 0 : index
    %92 = vector.load %arg3[%c32, %c0_43] : memref<88x128xf32, #tpu.memory_space<vmem>>, vector<8x128xf32>
    %93 = vector.extract_strided_slice %92 {offsets = [0, 0], sizes = [8, 2], strides = [1, 1]} : vector<8x128xf32> to vector<8x2xf32>
    %94 = vector.extract_strided_slice %91 {offsets = [0, 0], sizes = [2, 64], strides = [1, 1]} : vector<2x256xf32> to vector<2x64xf32>
    %cst_44 = arith.constant dense<0.000000e+00> : vector<8x64xf32>
    %95 = tpu.matmul %93, %94, %cst_44 {dimension_numbers = #tpu.dot_dimension_numbers<[1], [0], [0], [1], [0, 0, 1, 1], [], []>} : vector<8x2xf32>, vector<2x64xf32>, vector<8x64xf32> -> vector<8x64xf32>
    %96 = vector.extract_strided_slice %92 {offsets = [0, 2], sizes = [8, 2], strides = [1, 1]} : vector<8x128xf32> to vector<8x2xf32>
    %97 = vector.extract_strided_slice %91 {offsets = [0, 64], sizes = [2, 64], strides = [1, 1]} : vector<2x256xf32> to vector<2x64xf32>
    %cst_45 = arith.constant dense<0.000000e+00> : vector<8x64xf32>
    %98 = tpu.matmul %96, %97, %cst_45 {dimension_numbers = #tpu.dot_dimension_numbers<[1], [0], [0], [1], [0, 0, 1, 1], [], []>} : vector<8x2xf32>, vector<2x64xf32>, vector<8x64xf32> -> vector<8x64xf32>
    %99 = arith.addf %95, %98 : vector<8x64xf32>
    %100 = vector.extract_strided_slice %92 {offsets = [0, 4], sizes = [8, 2], strides = [1, 1]} : vector<8x128xf32> to vector<8x2xf32>
    %101 = vector.extract_strided_slice %91 {offsets = [0, 128], sizes = [2, 64], strides = [1, 1]} : vector<2x256xf32> to vector<2x64xf32>
    %cst_46 = arith.constant dense<0.000000e+00> : vector<8x64xf32>
    %102 = tpu.matmul %100, %101, %cst_46 {dimension_numbers = #tpu.dot_dimension_numbers<[1], [0], [0], [1], [0, 0, 1, 1], [], []>} : vector<8x2xf32>, vector<2x64xf32>, vector<8x64xf32> -> vector<8x64xf32>
    %103 = arith.addf %99, %102 : vector<8x64xf32>
    %104 = vector.extract_strided_slice %92 {offsets = [0, 6], sizes = [8, 2], strides = [1, 1]} : vector<8x128xf32> to vector<8x2xf32>
    %105 = vector.extract_strided_slice %91 {offsets = [0, 192], sizes = [2, 64], strides = [1, 1]} : vector<2x256xf32> to vector<2x64xf32>
    %cst_47 = arith.constant dense<0.000000e+00> : vector<8x64xf32>
    %106 = tpu.matmul %104, %105, %cst_47 {dimension_numbers = #tpu.dot_dimension_numbers<[1], [0], [0], [1], [0, 0, 1, 1], [], []>} : vector<8x2xf32>, vector<2x64xf32>, vector<8x64xf32> -> vector<8x64xf32>
    %107 = arith.addf %103, %106 : vector<8x64xf32>
    %c8 = arith.constant 8 : index
    %c0_48 = arith.constant 0 : index
    %108 = vector.load %arg4[%c8, %c0_48] : memref<88x64xf32, #tpu.memory_space<vmem>>, vector<8x64xf32>
    %109 = arith.addf %107, %108 : vector<8x64xf32>
    %c256 = arith.constant 256 : index
    %c0_49 = arith.constant 0 : index
    %110 = vector.load %arg2[%c256, %c0_49] : memref<384x256xf32, #tpu.memory_space<vmem>>, vector<64x256xf32>
    %cst_50 = arith.constant dense<0.000000e+00> : vector<8x256xf32>
    %111 = tpu.matmul %109, %110, %cst_50 {dimension_numbers = #tpu.dot_dimension_numbers<[1], [0], [0], [1], [0, 0, 1, 1], [], []>} : vector<8x64xf32>, vector<64x256xf32>, vector<8x256xf32> -> vector<8x256xf32>
    %c40 = arith.constant 40 : index
    %c0_51 = arith.constant 0 : index
    %112 = vector.load %arg3[%c40, %c0_51] : memref<88x128xf32, #tpu.memory_space<vmem>>, vector<16x128xf32>
    %113 = vector.extract_strided_slice %112 {offsets = [0, 0], sizes = [16, 8], strides = [1, 1]} : vector<16x128xf32> to vector<16x8xf32>
    %114 = vector.extract_strided_slice %111 {offsets = [0, 0], sizes = [8, 64], strides = [1, 1]} : vector<8x256xf32> to vector<8x64xf32>
    %cst_52 = arith.constant dense<0.000000e+00> : vector<16x64xf32>
    %115 = tpu.matmul %113, %114, %cst_52 {dimension_numbers = #tpu.dot_dimension_numbers<[1], [0], [0], [1], [0, 0, 1, 1], [], []>} : vector<16x8xf32>, vector<8x64xf32>, vector<16x64xf32> -> vector<16x64xf32>
    %116 = vector.extract_strided_slice %112 {offsets = [0, 8], sizes = [16, 8], strides = [1, 1]} : vector<16x128xf32> to vector<16x8xf32>
    %117 = vector.extract_strided_slice %111 {offsets = [0, 64], sizes = [8, 64], strides = [1, 1]} : vector<8x256xf32> to vector<8x64xf32>
    %cst_53 = arith.constant dense<0.000000e+00> : vector<16x64xf32>
    %118 = tpu.matmul %116, %117, %cst_53 {dimension_numbers = #tpu.dot_dimension_numbers<[1], [0], [0], [1], [0, 0, 1, 1], [], []>} : vector<16x8xf32>, vector<8x64xf32>, vector<16x64xf32> -> vector<16x64xf32>
    %119 = arith.addf %115, %118 : vector<16x64xf32>
    %120 = vector.extract_strided_slice %112 {offsets = [0, 16], sizes = [16, 8], strides = [1, 1]} : vector<16x128xf32> to vector<16x8xf32>
    %121 = vector.extract_strided_slice %111 {offsets = [0, 128], sizes = [8, 64], strides = [1, 1]} : vector<8x256xf32> to vector<8x64xf32>
    %cst_54 = arith.constant dense<0.000000e+00> : vector<16x64xf32>
    %122 = tpu.matmul %120, %121, %cst_54 {dimension_numbers = #tpu.dot_dimension_numbers<[1], [0], [0], [1], [0, 0, 1, 1], [], []>} : vector<16x8xf32>, vector<8x64xf32>, vector<16x64xf32> -> vector<16x64xf32>
    %123 = arith.addf %119, %122 : vector<16x64xf32>
    %124 = vector.extract_strided_slice %112 {offsets = [0, 24], sizes = [16, 8], strides = [1, 1]} : vector<16x128xf32> to vector<16x8xf32>
    %125 = vector.extract_strided_slice %111 {offsets = [0, 192], sizes = [8, 64], strides = [1, 1]} : vector<8x256xf32> to vector<8x64xf32>
    %cst_55 = arith.constant dense<0.000000e+00> : vector<16x64xf32>
    %126 = tpu.matmul %124, %125, %cst_55 {dimension_numbers = #tpu.dot_dimension_numbers<[1], [0], [0], [1], [0, 0, 1, 1], [], []>} : vector<16x8xf32>, vector<8x64xf32>, vector<16x64xf32> -> vector<16x64xf32>
    %127 = arith.addf %123, %126 : vector<16x64xf32>
    %c5 = arith.constant 5 : index
    %c0_56 = arith.constant 0 : index
    %128 = vector.load %arg4[%c5, %c0_56] : memref<88x64xf32, #tpu.memory_space<vmem>>, vector<1x64xf32>
    %129 = vector.broadcast %128 : vector<1x64xf32> to vector<16x64xf32>
    %130 = arith.addf %127, %129 : vector<16x64xf32>
    %c6 = arith.constant 6 : index
    %c0_57 = arith.constant 0 : index
    %131 = vector.load %arg4[%c6, %c0_57] : memref<88x64xf32, #tpu.memory_space<vmem>>, vector<1x64xf32>
    %c7 = arith.constant 7 : index
    %c0_58 = arith.constant 0 : index
    %132 = vector.load %arg4[%c7, %c0_58] : memref<88x64xf32, #tpu.memory_space<vmem>>, vector<1x64xf32>
    %cst_59 = arith.constant dense<0.000000e+00> : vector<64xf32>
    %133 = vector.multi_reduction <add>, %130, %cst_59 [0] : vector<16x64xf32> to vector<64xf32>
    %134 = vector.shape_cast %133 : vector<64xf32> to vector<1x64xf32>
    %cst_60 = arith.constant dense<0.000000e+00> : vector<1x64xf32>
    %135 = tpu.matmul %134, %0, %cst_60 {dimension_numbers = #tpu.dot_dimension_numbers<[1], [0], [0], [1], [0, 0, 1, 1], [], []>} : vector<1x64xf32>, vector<64x64xf32>, vector<1x64xf32> -> vector<1x64xf32>
    %136 = vector.broadcast %135 : vector<1x64xf32> to vector<16x64xf32>
    %137 = arith.subf %130, %136 : vector<16x64xf32>
    %138 = arith.mulf %137, %137 : vector<16x64xf32>
    %cst_61 = arith.constant dense<0.000000e+00> : vector<64xf32>
    %139 = vector.multi_reduction <add>, %138, %cst_61 [0] : vector<16x64xf32> to vector<64xf32>
    %140 = vector.shape_cast %139 : vector<64xf32> to vector<1x64xf32>
    %cst_62 = arith.constant dense<0.000000e+00> : vector<1x64xf32>
    %141 = tpu.matmul %140, %0, %cst_62 {dimension_numbers = #tpu.dot_dimension_numbers<[1], [0], [0], [1], [0, 0, 1, 1], [], []>} : vector<1x64xf32>, vector<64x64xf32>, vector<1x64xf32> -> vector<1x64xf32>
    %cst_63 = arith.constant 9.99999974E-6 : f32
    %142 = vector.broadcast %cst_63 : f32 to vector<1x64xf32>
    %143 = arith.addf %141, %142 : vector<1x64xf32>
    %144 = math.rsqrt %143 : vector<1x64xf32>
    %145 = vector.broadcast %144 : vector<1x64xf32> to vector<16x64xf32>
    %146 = arith.mulf %137, %145 : vector<16x64xf32>
    %147 = vector.broadcast %131 : vector<1x64xf32> to vector<16x64xf32>
    %148 = arith.mulf %146, %147 : vector<16x64xf32>
    %149 = vector.broadcast %132 : vector<1x64xf32> to vector<16x64xf32>
    %150 = arith.addf %148, %149 : vector<16x64xf32>
    %cst_64 = arith.constant 0.000000e+00 : f32
    %151 = vector.broadcast %cst_64 : f32 to vector<16x64xf32>
    %152 = arith.maximumf %150, %151 : vector<16x64xf32>
    %c320 = arith.constant 320 : index
    %c0_65 = arith.constant 0 : index
    %153 = vector.load %arg2[%c320, %c0_65] : memref<384x256xf32, #tpu.memory_space<vmem>>, vector<64x256xf32>
    %cst_66 = arith.constant dense<0.000000e+00> : vector<16x256xf32>
    %154 = tpu.matmul %152, %153, %cst_66 {dimension_numbers = #tpu.dot_dimension_numbers<[1], [0], [0], [1], [0, 0, 1, 1], [], []>} : vector<16x64xf32>, vector<64x256xf32>, vector<16x256xf32> -> vector<16x256xf32>
    %c56 = arith.constant 56 : index
    %c0_67 = arith.constant 0 : index
    %155 = vector.load %arg3[%c56, %c0_67] : memref<88x128xf32, #tpu.memory_space<vmem>>, vector<32x128xf32>
    %156 = vector.extract_strided_slice %155 {offsets = [0, 0], sizes = [32, 16], strides = [1, 1]} : vector<32x128xf32> to vector<32x16xf32>
    %157 = vector.extract_strided_slice %154 {offsets = [0, 0], sizes = [16, 64], strides = [1, 1]} : vector<16x256xf32> to vector<16x64xf32>
    %cst_68 = arith.constant dense<0.000000e+00> : vector<32x64xf32>
    %158 = tpu.matmul %156, %157, %cst_68 {dimension_numbers = #tpu.dot_dimension_numbers<[1], [0], [0], [1], [0, 0, 1, 1], [], []>} : vector<32x16xf32>, vector<16x64xf32>, vector<32x64xf32> -> vector<32x64xf32>
    %159 = vector.extract_strided_slice %155 {offsets = [0, 16], sizes = [32, 16], strides = [1, 1]} : vector<32x128xf32> to vector<32x16xf32>
    %160 = vector.extract_strided_slice %154 {offsets = [0, 64], sizes = [16, 64], strides = [1, 1]} : vector<16x256xf32> to vector<16x64xf32>
    %cst_69 = arith.constant dense<0.000000e+00> : vector<32x64xf32>
    %161 = tpu.matmul %159, %160, %cst_69 {dimension_numbers = #tpu.dot_dimension_numbers<[1], [0], [0], [1], [0, 0, 1, 1], [], []>} : vector<32x16xf32>, vector<16x64xf32>, vector<32x64xf32> -> vector<32x64xf32>
    %162 = arith.addf %158, %161 : vector<32x64xf32>
    %163 = vector.extract_strided_slice %155 {offsets = [0, 32], sizes = [32, 16], strides = [1, 1]} : vector<32x128xf32> to vector<32x16xf32>
    %164 = vector.extract_strided_slice %154 {offsets = [0, 128], sizes = [16, 64], strides = [1, 1]} : vector<16x256xf32> to vector<16x64xf32>
    %cst_70 = arith.constant dense<0.000000e+00> : vector<32x64xf32>
    %165 = tpu.matmul %163, %164, %cst_70 {dimension_numbers = #tpu.dot_dimension_numbers<[1], [0], [0], [1], [0, 0, 1, 1], [], []>} : vector<32x16xf32>, vector<16x64xf32>, vector<32x64xf32> -> vector<32x64xf32>
    %166 = arith.addf %162, %165 : vector<32x64xf32>
    %167 = vector.extract_strided_slice %155 {offsets = [0, 48], sizes = [32, 16], strides = [1, 1]} : vector<32x128xf32> to vector<32x16xf32>
    %168 = vector.extract_strided_slice %154 {offsets = [0, 192], sizes = [16, 64], strides = [1, 1]} : vector<16x256xf32> to vector<16x64xf32>
    %cst_71 = arith.constant dense<0.000000e+00> : vector<32x64xf32>
    %169 = tpu.matmul %167, %168, %cst_71 {dimension_numbers = #tpu.dot_dimension_numbers<[1], [0], [0], [1], [0, 0, 1, 1], [], []>} : vector<32x16xf32>, vector<16x64xf32>, vector<32x64xf32> -> vector<32x64xf32>
    %170 = arith.addf %166, %169 : vector<32x64xf32>
    %c16_72 = arith.constant 16 : index
    %c0_73 = arith.constant 0 : index
    %171 = vector.load %arg4[%c16_72, %c0_73] : memref<88x64xf32, #tpu.memory_space<vmem>>, vector<1x64xf32>
    %172 = vector.broadcast %171 : vector<1x64xf32> to vector<32x64xf32>
    %173 = arith.addf %170, %172 : vector<32x64xf32>
    %174 = arith.negf %173 : vector<32x64xf32>
    %175 = math.exp %174 : vector<32x64xf32>
    %cst_74 = arith.constant 1.000000e+00 : f32
    %176 = vector.broadcast %cst_74 : f32 to vector<32x64xf32>
    %177 = arith.addf %176, %175 : vector<32x64xf32>
    %178 = arith.divf %176, %177 : vector<32x64xf32>
    %c0_75 = arith.constant 0 : index
    %c0_76 = arith.constant 0 : index
    %179 = vector.load %arg6[%c0_75, %c0_76] : memref<32x64xf32, #tpu.memory_space<vmem>>, vector<32x64xf32>
    tpu.vector_store %arg6[%c0_75, %c0_76], %178 {strides = array<i32>} : memref<32x64xf32, #tpu.memory_space<vmem>>, vector<32x64xf32>,
    return
  }
}

</mosaic_0001>

<llo_original>
// kernel: vae_forward.1
$region0: #{vae_forward.1}
  #allocation0 [shape = 'u32[]', space=smem, size = 0x4, offset = 0x4, fixed_abs, tag = 'smem constant byte address 0x4 - core index']
  #allocation1 [shape = 'u32[144,128]{1,0:T(1,128)}', space=vmem, size = 0x12000, scoped, tag = 'internal scratch']
  %s0 = inlined_call_operand.vmem [shape: f32[32,64], index: 0, kind: input, shape index: {}]
  %s1 = inlined_call_operand.vmem [shape: f32[2,32], index: 1, kind: input, shape index: {}]
  %s2 = inlined_call_operand.hbm [shape: f32[384,256], index: 2, kind: input, shape index: {}]
  %s3 = inlined_call_operand.vmem [shape: f32[88,128], index: 3, kind: input, shape index: {}]
  %s4 = inlined_call_operand.vmem [shape: f32[88,64], index: 4, kind: input, shape index: {}]
  %s5 = inlined_call_operand.vmem [shape: f32[2,64], index: 5, kind: output, shape index: {0}]
  %s6 = inlined_call_operand.vmem [shape: f32[32,64], index: 6, kind: output, shape index: {1}]
  %7 = xla_tuple %s5, %s6
  %s8 = sld [smem:[#allocation0]]
  $region42: #{vae_forward.1} parent=0
    _
  %s10 = ssub.s32 1, %s8
  %s11 = scalar_select 0, %s10, %s8
  $region1: #{vae_forward.1} parent=0
    #allocation2 [shape = 'u8[393216]{0}', space=vmem, size = 0x60000, scoped, tag = 'input window, operand 2, single buffered']
    #allocation3 [shape = 's32[1]{0}', space=sflag, size = 0x4, scoped, tag = 'scoped memory for vae_forward.1']
    %12 = vsyncpa [#allocation3], 0
    // Predicated region
    $region2: #{vae_forward.1} parent=1 // pred_check
      _
    $region3: #{vae_forward.1} parent=1 // pred_check_branch
      %14 = sbr.rel (0) target = $region5
    $region4: #{vae_forward.1} parent=1 // pred_region
      _
    $region5: #{vae_forward.1} parent=1 // pred_fallthru
      _
    // Predicated region
    $region6: #{vae_forward.1} parent=1 // pred_check
      _
    $region7: #{vae_forward.1} parent=1 // pred_check_branch
      %16 = sbr.rel (0) target = $region9
    $region8: #{vae_forward.1} parent=1 // pred_region
      _
    $region9: #{vae_forward.1} parent=1 // pred_fallthru
      _
    // Predicated region
    $region10: #{vae_forward.1} parent=1 // pred_check
      _
    $region11: #{vae_forward.1} parent=1 // pred_check_branch
      %18 = sbr.rel (0) target = $region13
    $region12: #{vae_forward.1} parent=1 // pred_region
      %s20 = ssub.s32 12288, 12288
      %21 = vsyncadd [#allocation3], %s20
      %s22 = sshll.u32 [#allocation2], 4
      %s23 = int_to_ptr.vmem [resolvable:$true] %s22
      %28 = dma.hbm_to_vmem [thread:$0]  %s2, 12288, %s23, [#allocation3], 256, 256, 16
    $region13: #{vae_forward.1} parent=1 // pred_fallthru
      _
    // Predicated region
    $region14: #{vae_forward.1} parent=1 // pred_check
      _
    $region15: #{vae_forward.1} parent=1 // pred_check_branch
      %30 = sbr.rel (0) target = $region17
    $region16: #{vae_forward.1} parent=1 // pred_region
      _
    $region17: #{vae_forward.1} parent=1 // pred_fallthru
      _
    // Predicated region
    $region18: #{vae_forward.1} parent=1 // pred_check
      _
    $region19: #{vae_forward.1} parent=1 // pred_check_branch
      %32 = sbr.rel (0) target = $region21
    $region20: #{vae_forward.1} parent=1 // pred_region
      _
    $region21: #{vae_forward.1} parent=1 // pred_fallthru
      _
    // Predicated region
    $region22: #{vae_forward.1} parent=1 // pred_check
      _
    $region23: #{vae_forward.1} parent=1 // pred_check_branch
      %34 = sbr.rel (0) target = $region25
    $region24: #{vae_forward.1} parent=1 // pred_region
      %35 = dma.done [#allocation3], 12288
    $region25: #{vae_forward.1} parent=1 // pred_fallthru
      _
    %v36 = vld [vmem:[%s4 + $0x18] sm:$0xff]
    %v37 = vld [vmem:[%s4 + $0x20] sm:$0xff]
    %v38 = vld [vmem:[%s4 + $0x28] sm:$0xff]
    %v39 = vld [vmem:[%s4 + $0x30] sm:$0xff]
    %v40 = vld [vmem:[%s4 + $0x38] sm:$0xff]
    %v41 = vld [vmem:[%s4 + $0x40] sm:$0xff]
    %v42 = vld [vmem:[%s4 + $0x48] sm:$0xff]
    %v43 = vld [vmem:[%s4 + $0x50] sm:$0xff]
    %v44 = vld [vmem:[%s0] sm:$0xff]
    %v45 = vld [vmem:[%s0 + $0x8] sm:$0xff]
    %v46 = vld [vmem:[%s0 + $0x10] sm:$0xff]
    %v47 = vld [vmem:[%s0 + $0x18] sm:$0xff]
    %v48 = vld [vmem:[#allocation2] sm:$0xff]
    %v49 = vld [vmem:[#allocation2 + $0x8] sm:$0xff]
    %v50 = vld [vmem:[#allocation2 + $0x10] sm:$0xff]
    %v51 = vld [vmem:[#allocation2 + $0x18] sm:$0xff]
    %v52 = vld [vmem:[#allocation2 + $0x20] sm:$0xff]
    %v53 = vld [vmem:[#allocation2 + $0x28] sm:$0xff]
    %v54 = vld [vmem:[#allocation2 + $0x30] sm:$0xff]
    %v55 = vld [vmem:[#allocation2 + $0x38] sm:$0xff]
    %v56 = vld [vmem:[#allocation2 + $0x40] sm:$0xff]
    %v57 = vld [vmem:[#allocation2 + $0x48] sm:$0xff]
    %v58 = vld [vmem:[#allocation2 + $0x50] sm:$0xff]
    %v59 = vld [vmem:[#allocation2 + $0x58] sm:$0xff]
    %v60 = vld [vmem:[#allocation2 + $0x60] sm:$0xff]
    %v61 = vld [vmem:[#allocation2 + $0x68] sm:$0xff]
    %v62 = vld [vmem:[#allocation2 + $0x70] sm:$0xff]
    %v63 = vld [vmem:[#allocation2 + $0x78] sm:$0xff]
    %vm64 = vcmask 523264
    %v66 = vsel %vm64, %v44, 0
    %v69 = vsel %vm64, %v45, 0
    %v72 = vsel %vm64, %v46, 0
    %v75 = vsel %vm64, %v47, 0
    %77 = vmatprep.subr.mxu0 %v49
    %78 = vmatpush1.msra.mxu0 %v48
    %79 = vmatprep.subr.mxu0 %v51
    %80 = vmatpush1.msra.mxu0 %v50
    %81 = vmatprep.subr.mxu0 %v53
    %82 = vmatpush1.msra.mxu0 %v52
    %83 = vmatprep.subr.mxu0 %v55
    %84 = vmatpush1.msra.mxu0 %v54
    %85 = vmatprep.subr.mxu0 %v57
    %86 = vmatpush1.msra.mxu0 %v56
    %87 = vmatprep.subr.mxu0 %v59
    %88 = vmatpush1.msra.mxu0 %v58
    %89 = vmatprep.subr.mxu0 %v61
    %90 = vmatpush1.msra.mxu0 %v60
    %91 = vmatprep.subr.mxu0 %v63
    %92 = vmatpush1.msra.mxu0 %v62
    %93 = vmatprep.subr.mxu0 0.0
    %94 = vmatpush1.msra.mxu0 0.0
    %95 = vmatprep.subr.mxu0 0.0
    %96 = vmatpush1.msra.mxu0 0.0
    %97 = vmatprep.subr.mxu0 0.0
    %98 = vmatpush1.msra.mxu0 0.0
    %99 = vmatprep.subr.mxu0 0.0
    %100 = vmatpush1.msra.mxu0 0.0
    %101 = vmatprep.subr.mxu0 0.0
    %102 = vmatpush1.msra.mxu0 0.0
    %103 = vmatprep.subr.mxu0 0.0
    %104 = vmatpush1.msra.mxu0 0.0
    %105 = vmatprep.subr.mxu0 0.0
    %106 = vmatpush1.msra.mxu0 0.0
    %107 = vmatprep.subr.mxu0 0.0
    %108 = vmatpush1.msra.mxu0 0.0
    %109 = vmatprep.subr.mxu0 0.0
    %110 = vmatpush1.msra.mxu0 0.0
    %111 = vmatprep.subr.mxu0 0.0
    %112 = vmatpush1.msra.mxu0 0.0
    %113 = vmatprep.subr.mxu0 0.0
    %114 = vmatpush1.msra.mxu0 0.0
    %115 = vmatprep.subr.mxu0 0.0
    %116 = vmatpush1.msra.mxu0 0.0
    %117 = vmatprep.subr.mxu0 0.0
    %118 = vmatpush1.msra.mxu0 0.0
    %119 = vmatprep.subr.mxu0 0.0
    %120 = vmatpush1.msra.mxu0 0.0
    %121 = vmatprep.subr.mxu0 0.0
    %122 = vmatpush1.msra.mxu0 0.0
    %123 = vmatprep.subr.mxu0 0.0
    %124 = vmatpush1.msra.mxu0 0.0
    %125 = vmatprep.subr.mxu0 0.0
    %126 = vmatpush1.msra.mxu0 0.0
    %127 = vmatprep.subr.mxu0 0.0
    %128 = vmatpush1.msra.mxu0 0.0
    %129 = vmatprep.subr.mxu0 0.0
    %130 = vmatpush1.msra.mxu0 0.0
    %131 = vmatprep.subr.mxu0 0.0
    %132 = vmatpush1.msra.mxu0 0.0
    %133 = vmatprep.subr.mxu0 0.0
    %134 = vmatpush1.msra.mxu0 0.0
    %135 = vmatprep.subr.mxu0 0.0
    %136 = vmatpush1.msra.mxu0 0.0
    %137 = vmatprep.subr.mxu0 0.0
    %138 = vmatpush1.msra.mxu0 0.0
    %139 = vmatprep.subr.mxu0 0.0
    %140 = vmatpush1.msra.mxu0 0.0
    %141 = vmatprep.mubr.f32.mxu0 0.0
    %142 = vmatmul.mubr.f32.gmra.mrb[0].mxu0 %v66
    %v143 = vpop.f32.mrb[0].mxu0
    %v144 = vadd.f32 0.0, %v143
    %v145 = vpop.f32.mrb[0].mxu0
    %v146 = vadd.f32 0.0, %v145
    %147 = vmatprep.mubr.f32.mxu0 0.0
    %148 = vmatmul.mubr.f32.gmra.mrb[0].mxu0 %v69
    %v149 = vpop.f32.mrb[0].mxu0
    %v150 = vadd.f32 0.0, %v149
    %v151 = vpop.f32.mrb[0].mxu0
    %v152 = vadd.f32 0.0, %v151
    %153 = vmatprep.mubr.f32.mxu0 0.0
    %154 = vmatmul.mubr.f32.gmra.mrb[0].mxu0 %v72
    %v155 = vpop.f32.mrb[0].mxu0
    %v156 = vadd.f32 0.0, %v155
    %v157 = vpop.f32.mrb[0].mxu0
    %v158 = vadd.f32 0.0, %v157
    %159 = vmatprep.mubr.f32.mxu0 0.0
    %160 = vmatmul.mubr.f32.gmra.mrb[0].mxu0 %v75
    %v161 = vpop.f32.mrb[0].mxu0
    %v162 = vadd.f32 0.0, %v161
    %v163 = vpop.f32.mrb[0].mxu0
    %v164 = vadd.f32 0.0, %v163
    %165 = vdwg.mxu0
    %v166 = vld [vmem:[%s3] sm:$0xff]
    %v167 = vld [vmem:[%s3 + $0x8] sm:$0xff]
    %170 = vrot.lane.b32.xlu0 %v166, 96
    %v171 = vpop.permute.xlu0 %170
    %172 = vrot.lane.b32.xlu0 %v167, 96
    %v173 = vpop.permute.xlu0 %172
    %178 = vrot.lane.b32.xlu0 %v144, 64
    %v179 = vpop.permute.xlu0 %178
    %180 = vrot.lane.b32.xlu0 %v150, 64
    %v181 = vpop.permute.xlu0 %180
    %182 = vrot.lane.b32.xlu0 %v156, 64
    %v183 = vpop.permute.xlu0 %182
    %184 = vrot.lane.b32.xlu0 %v162, 64
    %v185 = vpop.permute.xlu0 %184
    %vm190 = vcmask 261120
    %v191 = vsel %vm190, %v171, 0
    %v193 = vsel %vm190, %v173, 0
    %195 = vmatprep.subr.mxu0 0.0
    %196 = vmatpush1.msra.mxu0 %v179
    %197 = vmatprep.subr.mxu0 0.0
    %198 = vmatpush1.msra.mxu0 %v181
    %199 = vmatprep.subr.mxu0 0.0
    %200 = vmatpush1.msra.mxu0 %v183
    %201 = vmatprep.subr.mxu0 0.0
    %202 = vmatpush1.msra.mxu0 %v185
    %203 = vmatprep.subr.mxu0 0.0
    %204 = vmatpush1.msra.mxu0 0.0
    %205 = vmatprep.subr.mxu0 0.0
    %206 = vmatpush1.msra.mxu0 0.0
    %207 = vmatprep.subr.mxu0 0.0
    %208 = vmatpush1.msra.mxu0 0.0
    %209 = vmatprep.subr.mxu0 0.0
    %210 = vmatpush1.msra.mxu0 0.0
    %211 = vmatprep.subr.mxu0 0.0
    %212 = vmatpush1.msra.mxu0 0.0
    %213 = vmatprep.subr.mxu0 0.0
    %214 = vmatpush1.msra.mxu0 0.0
    %215 = vmatprep.subr.mxu0 0.0
    %216 = vmatpush1.msra.mxu0 0.0
    %217 = vmatprep.subr.mxu0 0.0
    %218 = vmatpush1.msra.mxu0 0.0
    %219 = vmatprep.subr.mxu0 0.0
    %220 = vmatpush1.msra.mxu0 0.0
    %221 = vmatprep.subr.mxu0 0.0
    %222 = vmatpush1.msra.mxu0 0.0
    %223 = vmatprep.subr.mxu0 0.0
    %224 = vmatpush1.msra.mxu0 0.0
    %225 = vmatprep.subr.mxu0 0.0
    %226 = vmatpush1.msra.mxu0 0.0
    %227 = vmatprep.subr.mxu0 0.0
    %228 = vmatpush1.msra.mxu0 0.0
    %229 = vmatprep.subr.mxu0 0.0
    %230 = vmatpush1.msra.mxu0 0.0
    %231 = vmatprep.subr.mxu0 0.0
    %232 = vmatpush1.msra.mxu0 0.0
    %233 = vmatprep.subr.mxu0 0.0
    %234 = vmatpush1.msra.mxu0 0.0
    %235 = vmatprep.subr.mxu0 0.0
    %236 = vmatpush1.msra.mxu0 0.0
    %237 = vmatprep.subr.mxu0 0.0
    %238 = vmatpush1.msra.mxu0 0.0
    %239 = vmatprep.subr.mxu0 0.0
    %240 = vmatpush1.msra.mxu0 0.0
    %241 = vmatprep.subr.mxu0 0.0
    %242 = vmatpush1.msra.mxu0 0.0
    %243 = vmatprep.subr.mxu0 0.0
    %244 = vmatpush1.msra.mxu0 0.0
    %245 = vmatprep.subr.mxu0 0.0
    %246 = vmatpush1.msra.mxu0 0.0
    %247 = vmatprep.subr.mxu0 0.0
    %248 = vmatpush1.msra.mxu0 0.0
    %249 = vmatprep.subr.mxu0 0.0
    %250 = vmatpush1.msra.mxu0 0.0
    %251 = vmatprep.subr.mxu0 0.0
    %252 = vmatpush1.msra.mxu0 0.0
    %253 = vmatprep.subr.mxu0 0.0
    %254 = vmatpush1.msra.mxu0 0.0
    %255 = vmatprep.subr.mxu0 0.0
    %256 = vmatpush1.msra.mxu0 0.0
    %257 = vmatprep.subr.mxu0 0.0
    %258 = vmatpush1.msra.mxu0 0.0
    %259 = vmatprep.mubr.f32.mxu0 0.0
    %260 = vmatmul.mubr.f32.gmra.mrb[0].mxu0 %v191
    %v261 = vpop.f32.mrb[0].mxu0
    %v262 = vadd.f32 0.0, %v261
    %v263 = vpop.f32.mrb[0].mxu0
    %264 = vmatprep.mubr.f32.mxu0 0.0
    %265 = vmatmul.mubr.f32.gmra.mrb[0].mxu0 %v193
    %v266 = vpop.f32.mrb[0].mxu0
    %v267 = vadd.f32 0.0, %v266
    %v268 = vpop.f32.mrb[0].mxu0
    %269 = vdwg.mxu0
    %v270 = vsel %vm190, %v166, 0
    %v272 = vsel %vm190, %v167, 0
    %274 = vmatprep.subr.mxu0 0.0
    %275 = vmatpush1.msra.mxu0 %v144
    %276 = vmatprep.subr.mxu0 0.0
    %277 = vmatpush1.msra.mxu0 %v150
    %278 = vmatprep.subr.mxu0 0.0
    %279 = vmatpush1.msra.mxu0 %v156
    %280 = vmatprep.subr.mxu0 0.0
    %281 = vmatpush1.msra.mxu0 %v162
    %282 = vmatprep.subr.mxu0 0.0
    %283 = vmatpush1.msra.mxu0 0.0
    %284 = vmatprep.subr.mxu0 0.0
    %285 = vmatpush1.msra.mxu0 0.0
    %286 = vmatprep.subr.mxu0 0.0
    %287 = vmatpush1.msra.mxu0 0.0
    %288 = vmatprep.subr.mxu0 0.0
    %289 = vmatpush1.msra.mxu0 0.0
    %290 = vmatprep.subr.mxu0 0.0
    %291 = vmatpush1.msra.mxu0 0.0
    %292 = vmatprep.subr.mxu0 0.0
    %293 = vmatpush1.msra.mxu0 0.0
    %294 = vmatprep.subr.mxu0 0.0
    %295 = vmatpush1.msra.mxu0 0.0
    %296 = vmatprep.subr.mxu0 0.0
    %297 = vmatpush1.msra.mxu0 0.0
    %298 = vmatprep.subr.mxu0 0.0
    %299 = vmatpush1.msra.mxu0 0.0
    %300 = vmatprep.subr.mxu0 0.0
    %301 = vmatpush1.msra.mxu0 0.0
    %302 = vmatprep.subr.mxu0 0.0
    %303 = vmatpush1.msra.mxu0 0.0
    %304 = vmatprep.subr.mxu0 0.0
    %305 = vmatpush1.msra.mxu0 0.0
    %306 = vmatprep.subr.mxu0 0.0
    %307 = vmatpush1.msra.mxu0 0.0
    %308 = vmatprep.subr.mxu0 0.0
    %309 = vmatpush1.msra.mxu0 0.0
    %310 = vmatprep.subr.mxu0 0.0
    %311 = vmatpush1.msra.mxu0 0.0
    %312 = vmatprep.subr.mxu0 0.0
    %313 = vmatpush1.msra.mxu0 0.0
    %314 = vmatprep.subr.mxu0 0.0
    %315 = vmatpush1.msra.mxu0 0.0
    %316 = vmatprep.subr.mxu0 0.0
    %317 = vmatpush1.msra.mxu0 0.0
    %318 = vmatprep.subr.mxu0 0.0
    %319 = vmatpush1.msra.mxu0 0.0
    %320 = vmatprep.subr.mxu0 0.0
    %321 = vmatpush1.msra.mxu0 0.0
    %322 = vmatprep.subr.mxu0 0.0
    %323 = vmatpush1.msra.mxu0 0.0
    %324 = vmatprep.subr.mxu0 0.0
    %325 = vmatpush1.msra.mxu0 0.0
    %326 = vmatprep.subr.mxu0 0.0
    %327 = vmatpush1.msra.mxu0 0.0
    %328 = vmatprep.subr.mxu0 0.0
    %329 = vmatpush1.msra.mxu0 0.0
    %330 = vmatprep.subr.mxu0 0.0
    %331 = vmatpush1.msra.mxu0 0.0
    %332 = vmatprep.subr.mxu0 0.0
    %333 = vmatpush1.msra.mxu0 0.0
    %334 = vmatprep.subr.mxu0 0.0
    %335 = vmatpush1.msra.mxu0 0.0
    %336 = vmatprep.subr.mxu0 0.0
    %337 = vmatpush1.msra.mxu0 0.0
    %338 = vmatprep.mubr.f32.mxu0 0.0
    %339 = vmatmul.mubr.f32.gmra.mrb[0].mxu0 %v270
    %v340 = vpop.f32.mrb[0].mxu0
    %v341 = vadd.f32 %v262, %v340
    %v342 = vpop.f32.mrb[0].mxu0
    %343 = vmatprep.mubr.f32.mxu0 0.0
    %344 = vmatmul.mubr.f32.gmra.mrb[0].mxu0 %v272
    %v345 = vpop.f32.mrb[0].mxu0
    %v346 = vadd.f32 %v267, %v345
    %v347 = vpop.f32.mrb[0].mxu0
    %348 = vdwg.mxu0
    %349 = vrot.lane.b32.xlu0 %v166, 64
    %v350 = vpop.permute.xlu0 %349
    %351 = vrot.lane.b32.xlu0 %v167, 64
    %v352 = vpop.permute.xlu0 %351
    %v353 = vsel %vm190, %v350, 0
    %v355 = vsel %vm190, %v352, 0
    %357 = vmatprep.subr.mxu0 0.0
    %358 = vmatpush1.msra.mxu0 %v146
    %359 = vmatprep.subr.mxu0 0.0
    %360 = vmatpush1.msra.mxu0 %v152
    %361 = vmatprep.subr.mxu0 0.0
    %362 = vmatpush1.msra.mxu0 %v158
    %363 = vmatprep.subr.mxu0 0.0
    %364 = vmatpush1.msra.mxu0 %v164
    %365 = vmatprep.subr.mxu0 0.0
    %366 = vmatpush1.msra.mxu0 0.0
    %367 = vmatprep.subr.mxu0 0.0
    %368 = vmatpush1.msra.mxu0 0.0
    %369 = vmatprep.subr.mxu0 0.0
    %370 = vmatpush1.msra.mxu0 0.0
    %371 = vmatprep.subr.mxu0 0.0
    %372 = vmatpush1.msra.mxu0 0.0
    %373 = vmatprep.subr.mxu0 0.0
    %374 = vmatpush1.msra.mxu0 0.0
    %375 = vmatprep.subr.mxu0 0.0
    %376 = vmatpush1.msra.mxu0 0.0
    %377 = vmatprep.subr.mxu0 0.0
    %378 = vmatpush1.msra.mxu0 0.0
    %379 = vmatprep.subr.mxu0 0.0
    %380 = vmatpush1.msra.mxu0 0.0
    %381 = vmatprep.subr.mxu0 0.0
    %382 = vmatpush1.msra.mxu0 0.0
    %383 = vmatprep.subr.mxu0 0.0
    %384 = vmatpush1.msra.mxu0 0.0
    %385 = vmatprep.subr.mxu0 0.0
    %386 = vmatpush1.msra.mxu0 0.0
    %387 = vmatprep.subr.mxu0 0.0
    %388 = vmatpush1.msra.mxu0 0.0
    %389 = vmatprep.subr.mxu0 0.0
    %390 = vmatpush1.msra.mxu0 0.0
    %391 = vmatprep.subr.mxu0 0.0
    %392 = vmatpush1.msra.mxu0 0.0
    %393 = vmatprep.subr.mxu0 0.0
    %394 = vmatpush1.msra.mxu0 0.0
    %395 = vmatprep.subr.mxu0 0.0
    %396 = vmatpush1.msra.mxu0 0.0
    %397 = vmatprep.subr.mxu0 0.0
    %398 = vmatpush1.msra.mxu0 0.0
    %399 = vmatprep.subr.mxu0 0.0
    %400 = vmatpush1.msra.mxu0 0.0
    %401 = vmatprep.subr.mxu0 0.0
    %402 = vmatpush1.msra.mxu0 0.0
    %403 = vmatprep.subr.mxu0 0.0
    %404 = vmatpush1.msra.mxu0 0.0
    %405 = vmatprep.subr.mxu0 0.0
    %406 = vmatpush1.msra.mxu0 0.0
    %407 = vmatprep.subr.mxu0 0.0
    %408 = vmatpush1.msra.mxu0 0.0
    %409 = vmatprep.subr.mxu0 0.0
    %410 = vmatpush1.msra.mxu0 0.0
    %411 = vmatprep.subr.mxu0 0.0
    %412 = vmatpush1.msra.mxu0 0.0
    %413 = vmatprep.subr.mxu0 0.0
    %414 = vmatpush1.msra.mxu0 0.0
    %415 = vmatprep.subr.mxu0 0.0
    %416 = vmatpush1.msra.mxu0 0.0
    %417 = vmatprep.subr.mxu0 0.0
    %418 = vmatpush1.msra.mxu0 0.0
    %419 = vmatprep.subr.mxu0 0.0
    %420 = vmatpush1.msra.mxu0 0.0
    %421 = vmatprep.mubr.f32.mxu0 0.0
    %422 = vmatmul.mubr.f32.gmra.mrb[0].mxu0 %v353
    %v423 = vpop.f32.mrb[0].mxu0
    %v424 = vadd.f32 0.0, %v423
    %v425 = vpop.f32.mrb[0].mxu0
    %426 = vmatprep.mubr.f32.mxu0 0.0
    %427 = vmatmul.mubr.f32.gmra.mrb[0].mxu0 %v355
    %v428 = vpop.f32.mrb[0].mxu0
    %v429 = vadd.f32 0.0, %v428
    %v430 = vpop.f32.mrb[0].mxu0
    %431 = vdwg.mxu0
    %v432 = vadd.f32 %v341, %v424
    %v433 = vadd.f32 %v346, %v429
    %v434 = vld [vmem:[%s4] sm:$0x1]
    %v435 = vlaneseq
    %v436 = vshrl.u32 %v435, 7
    %v437 = vsub.s32 0, %v436
    %v438 = vrot.slane %v434, %v437
    %v439 = vadd.f32 %v432, %v438
    %v440 = vadd.f32 %v433, %v438
    %v441 = vld [vmem:[%s4 + $0x1] sm:$0x1]
    %v442 = vld [vmem:[%s4 + $0x2] sm:$0x1]
    %v443 = vsel %vm64, %v439, 0.0
    %v444 = vsel %vm64, %v440, 0.0
    %v445 = vadd.f32 %v443, %v444
    %v446 = vrot.slane %v445, 4
    %v447 = vadd.f32 %v445, %v446
    %v448 = vrot.slane %v447, 2
    %v449 = vadd.f32 %v447, %v448
    %v450 = vrot.slane %v449, 1
    %v451 = vadd.f32 %v449, %v450
    %v453 = vsel %vm64, %v451, 0
    %455 = vmatprep.subr.mxu0 0.0
    %456 = vmatpush1.msra.mxu0 %v36
    %457 = vmatprep.subr.mxu0 0.0
    %458 = vmatpush1.msra.mxu0 %v37
    %459 = vmatprep.subr.mxu0 0.0
    %460 = vmatpush1.msra.mxu0 %v38
    %461 = vmatprep.subr.mxu0 0.0
    %462 = vmatpush1.msra.mxu0 %v39
    %463 = vmatprep.subr.mxu0 0.0
    %464 = vmatpush1.msra.mxu0 %v40
    %465 = vmatprep.subr.mxu0 0.0
    %466 = vmatpush1.msra.mxu0 %v41
    %467 = vmatprep.subr.mxu0 0.0
    %468 = vmatpush1.msra.mxu0 %v42
    %469 = vmatprep.subr.mxu0 0.0
    %470 = vmatpush1.msra.mxu0 %v43
    %471 = vmatprep.subr.mxu0 0.0
    %472 = vmatpush1.msra.mxu0 0.0
    %473 = vmatprep.subr.mxu0 0.0
    %474 = vmatpush1.msra.mxu0 0.0
    %475 = vmatprep.subr.mxu0 0.0
    %476 = vmatpush1.msra.mxu0 0.0
    %477 = vmatprep.subr.mxu0 0.0
    %478 = vmatpush1.msra.mxu0 0.0
    %479 = vmatprep.subr.mxu0 0.0
    %480 = vmatpush1.msra.mxu0 0.0
    %481 = vmatprep.subr.mxu0 0.0
    %482 = vmatpush1.msra.mxu0 0.0
    %483 = vmatprep.subr.mxu0 0.0
    %484 = vmatpush1.msra.mxu0 0.0
    %485 = vmatprep.subr.mxu0 0.0
    %486 = vmatpush1.msra.mxu0 0.0
    %487 = vmatprep.subr.mxu0 0.0
    %488 = vmatpush1.msra.mxu0 0.0
    %489 = vmatprep.subr.mxu0 0.0
    %490 = vmatpush1.msra.mxu0 0.0
    %491 = vmatprep.subr.mxu0 0.0
    %492 = vmatpush1.msra.mxu0 0.0
    %493 = vmatprep.subr.mxu0 0.0
    %494 = vmatpush1.msra.mxu0 0.0
    %495 = vmatprep.subr.mxu0 0.0
    %496 = vmatpush1.msra.mxu0 0.0
    %497 = vmatprep.subr.mxu0 0.0
    %498 = vmatpush1.msra.mxu0 0.0
    %499 = vmatprep.subr.mxu0 0.0
    %500 = vmatpush1.msra.mxu0 0.0
    %501 = vmatprep.subr.mxu0 0.0
    %502 = vmatpush1.msra.mxu0 0.0
    %503 = vmatprep.subr.mxu0 0.0
    %504 = vmatpush1.msra.mxu0 0.0
    %505 = vmatprep.subr.mxu0 0.0
    %506 = vmatpush1.msra.mxu0 0.0
    %507 = vmatprep.subr.mxu0 0.0
    %508 = vmatpush1.msra.mxu0 0.0
    %509 = vmatprep.subr.mxu0 0.0
    %510 = vmatpush1.msra.mxu0 0.0
    %511 = vmatprep.subr.mxu0 0.0
    %512 = vmatpush1.msra.mxu0 0.0
    %513 = vmatprep.subr.mxu0 0.0
    %514 = vmatpush1.msra.mxu0 0.0
    %515 = vmatprep.subr.mxu0 0.0
    %516 = vmatpush1.msra.mxu0 0.0
    %517 = vmatprep.subr.mxu0 0.0
    %518 = vmatpush1.msra.mxu0 0.0
    %519 = vmatprep.mubr.f32.mxu0 0.0
    %520 = vmatmul.mubr.f32.gmra.mrb[0].mxu0 %v453
    %v521 = vpop.f32.mrb[0].mxu0
    %v522 = vadd.f32 0.0, %v521
    %v523 = vpop.f32.mrb[0].mxu0
    %524 = vdwg.mxu0
    %v525 = vlaneseq
    %v526 = vshrl.u32 %v525, 7
    %v527 = vsub.s32 0, %v526
    %v528 = vrot.slane %v522, %v527
    %v529 = vsub.f32 %v439, %v528
    %v530 = vsub.f32 %v440, %v528
    %v531 = vmul.f32 %v529, %v529
    %v532 = vmul.f32 %v530, %v530
    %v533 = vsel %vm64, %v531, 0.0
    %v534 = vsel %vm64, %v532, 0.0
    %v535 = vadd.f32 %v533, %v534
    %v536 = vrot.slane %v535, 4
    %v537 = vadd.f32 %v535, %v536
    %v538 = vrot.slane %v537, 2
    %v539 = vadd.f32 %v537, %v538
    %v540 = vrot.slane %v539, 1
    %v541 = vadd.f32 %v539, %v540
    %v543 = vsel %vm64, %v541, 0
    %545 = vmatprep.subr.mxu0 0.0
    %546 = vmatpush1.msra.mxu0 %v36
    %547 = vmatprep.subr.mxu0 0.0
    %548 = vmatpush1.msra.mxu0 %v37
    %549 = vmatprep.subr.mxu0 0.0
    %550 = vmatpush1.msra.mxu0 %v38
    %551 = vmatprep.subr.mxu0 0.0
    %552 = vmatpush1.msra.mxu0 %v39
    %553 = vmatprep.subr.mxu0 0.0
    %554 = vmatpush1.msra.mxu0 %v40
    %555 = vmatprep.subr.mxu0 0.0
    %556 = vmatpush1.msra.mxu0 %v41
    %557 = vmatprep.subr.mxu0 0.0
    %558 = vmatpush1.msra.mxu0 %v42
    %559 = vmatprep.subr.mxu0 0.0
    %560 = vmatpush1.msra.mxu0 %v43
    %561 = vmatprep.subr.mxu0 0.0
    %562 = vmatpush1.msra.mxu0 0.0
    %563 = vmatprep.subr.mxu0 0.0
    %564 = vmatpush1.msra.mxu0 0.0
    %565 = vmatprep.subr.mxu0 0.0
    %566 = vmatpush1.msra.mxu0 0.0
    %567 = vmatprep.subr.mxu0 0.0
    %568 = vmatpush1.msra.mxu0 0.0
    %569 = vmatprep.subr.mxu0 0.0
    %570 = vmatpush1.msra.mxu0 0.0
    %571 = vmatprep.subr.mxu0 0.0
    %572 = vmatpush1.msra.mxu0 0.0
    %573 = vmatprep.subr.mxu0 0.0
    %574 = vmatpush1.msra.mxu0 0.0
    %575 = vmatprep.subr.mxu0 0.0
    %576 = vmatpush1.msra.mxu0 0.0
    %577 = vmatprep.subr.mxu0 0.0
    %578 = vmatpush1.msra.mxu0 0.0
    %579 = vmatprep.subr.mxu0 0.0
    %580 = vmatpush1.msra.mxu0 0.0
    %581 = vmatprep.subr.mxu0 0.0
    %582 = vmatpush1.msra.mxu0 0.0
    %583 = vmatprep.subr.mxu0 0.0
    %584 = vmatpush1.msra.mxu0 0.0
    %585 = vmatprep.subr.mxu0 0.0
    %586 = vmatpush1.msra.mxu0 0.0
    %587 = vmatprep.subr.mxu0 0.0
    %588 = vmatpush1.msra.mxu0 0.0
    %589 = vmatprep.subr.mxu0 0.0
    %590 = vmatpush1.msra.mxu0 0.0
    %591 = vmatprep.subr.mxu0 0.0
    %592 = vmatpush1.msra.mxu0 0.0
    %593 = vmatprep.subr.mxu0 0.0
    %594 = vmatpush1.msra.mxu0 0.0
    %595 = vmatprep.subr.mxu0 0.0
    %596 = vmatpush1.msra.mxu0 0.0
    %597 = vmatprep.subr.mxu0 0.0
    %598 = vmatpush1.msra.mxu0 0.0
    %599 = vmatprep.subr.mxu0 0.0
    %600 = vmatpush1.msra.mxu0 0.0
    %601 = vmatprep.subr.mxu0 0.0
    %602 = vmatpush1.msra.mxu0 0.0
    %603 = vmatprep.subr.mxu0 0.0
    %604 = vmatpush1.msra.mxu0 0.0
    %605 = vmatprep.subr.mxu0 0.0
    %606 = vmatpush1.msra.mxu0 0.0
    %607 = vmatprep.subr.mxu0 0.0
    %608 = vmatpush1.msra.mxu0 0.0
    %609 = vmatprep.mubr.f32.mxu0 0.0
    %610 = vmatmul.mubr.f32.gmra.mrb[0].mxu0 %v543
    %v611 = vpop.f32.mrb[0].mxu0
    %v612 = vadd.f32 1e-05, %v611
    %v613 = vpop.f32.mrb[0].mxu0
    %614 = vdwg.mxu0
    %v615 = vrsqrt.pop %v612
    %v616 = vlaneseq
    %v617 = vshrl.u32 %v616, 7
    %v618 = vsub.s32 0, %v617
    %v619 = vrot.slane %v615, %v618
    %v620 = vmul.f32 %v529, %v619
    %v621 = vmul.f32 %v530, %v619
    %v622 = vlaneseq
    %v623 = vshrl.u32 %v622, 7
    %v624 = vsub.s32 0, %v623
    %v625 = vrot.slane %v441, %v624
    %v626 = vmul.f32 %v620, %v625
    %v627 = vmul.f32 %v621, %v625
    %v628 = vlaneseq
    %v629 = vshrl.u32 %v628, 7
    %v630 = vsub.s32 0, %v629
    %v631 = vrot.slane %v442, %v630
    %v632 = vadd.f32 %v626, %v631
    %v633 = vadd.f32 %v627, %v631
    %v634 = vmax.f32 %v632, 0.0
    %v635 = vmax.f32 %v633, 0.0
    %v636 = vld [vmem:[#allocation2 + $0x80] sm:$0xff]
    %v637 = vld [vmem:[#allocation2 + $0x88] sm:$0xff]
    %v638 = vld [vmem:[#allocation2 + $0x90] sm:$0xff]
    %v639 = vld [vmem:[#allocation2 + $0x98] sm:$0xff]
    %v640 = vld [vmem:[#allocation2 + $0xa0] sm:$0xff]
    %v641 = vld [vmem:[#allocation2 + $0xa8] sm:$0xff]
    %v642 = vld [vmem:[#allocation2 + $0xb0] sm:$0xff]
    %v643 = vld [vmem:[#allocation2 + $0xb8] sm:$0xff]
    %v644 = vld [vmem:[#allocation2 + $0xc0] sm:$0xff]
    %v645 = vld [vmem:[#allocation2 + $0xc8] sm:$0xff]
    %v646 = vld [vmem:[#allocation2 + $0xd0] sm:$0xff]
    %v647 = vld [vmem:[#allocation2 + $0xd8] sm:$0xff]
    %v648 = vld [vmem:[#allocation2 + $0xe0] sm:$0xff]
    %v649 = vld [vmem:[#allocation2 + $0xe8] sm:$0xff]
    %v650 = vld [vmem:[#allocation2 + $0xf0] sm:$0xff]
    %v651 = vld [vmem:[#allocation2 + $0xf8] sm:$0xff]
    %v653 = vsel %vm64, %v634, 0
    %v656 = vsel %vm64, %v635, 0
    %658 = vmatprep.subr.mxu0 %v637
    %659 = vmatpush1.msra.mxu0 %v636
    %660 = vmatprep.subr.mxu0 %v639
    %661 = vmatpush1.msra.mxu0 %v638
    %662 = vmatprep.subr.mxu0 %v641
    %663 = vmatpush1.msra.mxu0 %v640
    %664 = vmatprep.subr.mxu0 %v643
    %665 = vmatpush1.msra.mxu0 %v642
    %666 = vmatprep.subr.mxu0 %v645
    %667 = vmatpush1.msra.mxu0 %v644
    %668 = vmatprep.subr.mxu0 %v647
    %669 = vmatpush1.msra.mxu0 %v646
    %670 = vmatprep.subr.mxu0 %v649
    %671 = vmatpush1.msra.mxu0 %v648
    %672 = vmatprep.subr.mxu0 %v651
    %673 = vmatpush1.msra.mxu0 %v650
    %674 = vmatprep.subr.mxu0 0.0
    %675 = vmatpush1.msra.mxu0 0.0
    %676 = vmatprep.subr.mxu0 0.0
    %677 = vmatpush1.msra.mxu0 0.0
    %678 = vmatprep.subr.mxu0 0.0
    %679 = vmatpush1.msra.mxu0 0.0
    %680 = vmatprep.subr.mxu0 0.0
    %681 = vmatpush1.msra.mxu0 0.0
    %682 = vmatprep.subr.mxu0 0.0
    %683 = vmatpush1.msra.mxu0 0.0
    %684 = vmatprep.subr.mxu0 0.0
    %685 = vmatpush1.msra.mxu0 0.0
    %686 = vmatprep.subr.mxu0 0.0
    %687 = vmatpush1.msra.mxu0 0.0
    %688 = vmatprep.subr.mxu0 0.0
    %689 = vmatpush1.msra.mxu0 0.0
    %690 = vmatprep.subr.mxu0 0.0
    %691 = vmatpush1.msra.mxu0 0.0
    %692 = vmatprep.subr.mxu0 0.0
    %693 = vmatpush1.msra.mxu0 0.0
    %694 = vmatprep.subr.mxu0 0.0
    %695 = vmatpush1.msra.mxu0 0.0
    %696 = vmatprep.subr.mxu0 0.0
    %697 = vmatpush1.msra.mxu0 0.0
    %698 = vmatprep.subr.mxu0 0.0
    %699 = vmatpush1.msra.mxu0 0.0
    %700 = vmatprep.subr.mxu0 0.0
    %701 = vmatpush1.msra.mxu0 0.0
    %702 = vmatprep.subr.mxu0 0.0
    %703 = vmatpush1.msra.mxu0 0.0
    %704 = vmatprep.subr.mxu0 0.0
    %705 = vmatpush1.msra.mxu0 0.0
    %706 = vmatprep.subr.mxu0 0.0
    %707 = vmatpush1.msra.mxu0 0.0
    %708 = vmatprep.subr.mxu0 0.0
    %709 = vmatpush1.msra.mxu0 0.0
    %710 = vmatprep.subr.mxu0 0.0
    %711 = vmatpush1.msra.mxu0 0.0
    %712 = vmatprep.subr.mxu0 0.0
    %713 = vmatpush1.msra.mxu0 0.0
    %714 = vmatprep.subr.mxu0 0.0
    %715 = vmatpush1.msra.mxu0 0.0
    %716 = vmatprep.subr.mxu0 0.0
    %717 = vmatpush1.msra.mxu0 0.0
    %718 = vmatprep.subr.mxu0 0.0
    %719 = vmatpush1.msra.mxu0 0.0
    %720 = vmatprep.subr.mxu0 0.0
    %721 = vmatpush1.msra.mxu0 0.0
    %722 = vmatprep.mubr.f32.mxu0 0.0
    %723 = vmatmul.mubr.f32.gmra.mrb[0].mxu0 %v653
    %v724 = vpop.f32.mrb[0].mxu0
    %v725 = vadd.f32 0.0, %v724
    %v726 = vpop.f32.mrb[0].mxu0
    %v727 = vadd.f32 0.0, %v726
    %728 = vmatprep.mubr.f32.mxu0 0.0
    %729 = vmatmul.mubr.f32.gmra.mrb[0].mxu0 %v656
    %v730 = vpop.f32.mrb[0].mxu0
    %v731 = vadd.f32 0.0, %v730
    %v732 = vpop.f32.mrb[0].mxu0
    %v733 = vadd.f32 0.0, %v732
    %734 = vdwg.mxu0
    %v735 = vld [vmem:[%s3 + $0x10] sm:$0xff]
    %737 = vrot.lane.b32.xlu0 %v735, 112
    %v738 = vpop.permute.xlu0 %737
    %741 = vrot.lane.b32.xlu0 %v725, 64
    %v742 = vpop.permute.xlu0 %741
    %743 = vrot.lane.b32.xlu0 %v731, 64
    %v744 = vpop.permute.xlu0 %743
    %vm747 = vcmask 130048
    %v748 = vsel %vm747, %v738, 0
    %750 = vmatprep.subr.mxu0 0.0
    %751 = vmatpush1.msra.mxu0 %v742
    %752 = vmatprep.subr.mxu0 0.0
    %753 = vmatpush1.msra.mxu0 %v744
    %754 = vmatprep.subr.mxu0 0.0
    %755 = vmatpush1.msra.mxu0 0.0
    %756 = vmatprep.subr.mxu0 0.0
    %757 = vmatpush1.msra.mxu0 0.0
    %758 = vmatprep.subr.mxu0 0.0
    %759 = vmatpush1.msra.mxu0 0.0
    %760 = vmatprep.subr.mxu0 0.0
    %761 = vmatpush1.msra.mxu0 0.0
    %762 = vmatprep.subr.mxu0 0.0
    %763 = vmatpush1.msra.mxu0 0.0
    %764 = vmatprep.subr.mxu0 0.0
    %765 = vmatpush1.msra.mxu0 0.0
    %766 = vmatprep.subr.mxu0 0.0
    %767 = vmatpush1.msra.mxu0 0.0
    %768 = vmatprep.subr.mxu0 0.0
    %769 = vmatpush1.msra.mxu0 0.0
    %770 = vmatprep.subr.mxu0 0.0
    %771 = vmatpush1.msra.mxu0 0.0
    %772 = vmatprep.subr.mxu0 0.0
    %773 = vmatpush1.msra.mxu0 0.0
    %774 = vmatprep.subr.mxu0 0.0
    %775 = vmatpush1.msra.mxu0 0.0
    %776 = vmatprep.subr.mxu0 0.0
    %777 = vmatpush1.msra.mxu0 0.0
    %778 = vmatprep.subr.mxu0 0.0
    %779 = vmatpush1.msra.mxu0 0.0
    %780 = vmatprep.subr.mxu0 0.0
    %781 = vmatpush1.msra.mxu0 0.0
    %782 = vmatprep.subr.mxu0 0.0
    %783 = vmatpush1.msra.mxu0 0.0
    %784 = vmatprep.subr.mxu0 0.0
    %785 = vmatpush1.msra.mxu0 0.0
    %786 = vmatprep.subr.mxu0 0.0
    %787 = vmatpush1.msra.mxu0 0.0
    %788 = vmatprep.subr.mxu0 0.0
    %789 = vmatpush1.msra.mxu0 0.0
    %790 = vmatprep.subr.mxu0 0.0
    %791 = vmatpush1.msra.mxu0 0.0
    %792 = vmatprep.subr.mxu0 0.0
    %793 = vmatpush1.msra.mxu0 0.0
    %794 = vmatprep.subr.mxu0 0.0
    %795 = vmatpush1.msra.mxu0 0.0
    %796 = vmatprep.subr.mxu0 0.0
    %797 = vmatpush1.msra.mxu0 0.0
    %798 = vmatprep.subr.mxu0 0.0
    %799 = vmatpush1.msra.mxu0 0.0
    %800 = vmatprep.subr.mxu0 0.0
    %801 = vmatpush1.msra.mxu0 0.0
    %802 = vmatprep.subr.mxu0 0.0
    %803 = vmatpush1.msra.mxu0 0.0
    %804 = vmatprep.subr.mxu0 0.0
    %805 = vmatpush1.msra.mxu0 0.0
    %806 = vmatprep.subr.mxu0 0.0
    %807 = vmatpush1.msra.mxu0 0.0
    %808 = vmatprep.subr.mxu0 0.0
    %809 = vmatpush1.msra.mxu0 0.0
    %810 = vmatprep.subr.mxu0 0.0
    %811 = vmatpush1.msra.mxu0 0.0
    %812 = vmatprep.subr.mxu0 0.0
    %813 = vmatpush1.msra.mxu0 0.0
    %814 = vmatprep.mubr.f32.mxu0 0.0
    %815 = vmatmul.mubr.f32.gmra.mrb[0].mxu0 %v748
    %v816 = vpop.f32.mrb[0].mxu0
    %v817 = vadd.f32 0.0, %v816
    %v818 = vpop.f32.mrb[0].mxu0
    %819 = vdwg.mxu0
    %v820 = vsel %vm747, %v735, 0
    %822 = vmatprep.subr.mxu0 0.0
    %823 = vmatpush1.msra.mxu0 %v725
    %824 = vmatprep.subr.mxu0 0.0
    %825 = vmatpush1.msra.mxu0 %v731
    %826 = vmatprep.subr.mxu0 0.0
    %827 = vmatpush1.msra.mxu0 0.0
    %828 = vmatprep.subr.mxu0 0.0
    %829 = vmatpush1.msra.mxu0 0.0
    %830 = vmatprep.subr.mxu0 0.0
    %831 = vmatpush1.msra.mxu0 0.0
    %832 = vmatprep.subr.mxu0 0.0
    %833 = vmatpush1.msra.mxu0 0.0
    %834 = vmatprep.subr.mxu0 0.0
    %835 = vmatpush1.msra.mxu0 0.0
    %836 = vmatprep.subr.mxu0 0.0
    %837 = vmatpush1.msra.mxu0 0.0
    %838 = vmatprep.subr.mxu0 0.0
    %839 = vmatpush1.msra.mxu0 0.0
    %840 = vmatprep.subr.mxu0 0.0
    %841 = vmatpush1.msra.mxu0 0.0
    %842 = vmatprep.subr.mxu0 0.0
    %843 = vmatpush1.msra.mxu0 0.0
    %844 = vmatprep.subr.mxu0 0.0
    %845 = vmatpush1.msra.mxu0 0.0
    %846 = vmatprep.subr.mxu0 0.0
    %847 = vmatpush1.msra.mxu0 0.0
    %848 = vmatprep.subr.mxu0 0.0
    %849 = vmatpush1.msra.mxu0 0.0
    %850 = vmatprep.subr.mxu0 0.0
    %851 = vmatpush1.msra.mxu0 0.0
    %852 = vmatprep.subr.mxu0 0.0
    %853 = vmatpush1.msra.mxu0 0.0
    %854 = vmatprep.subr.mxu0 0.0
    %855 = vmatpush1.msra.mxu0 0.0
    %856 = vmatprep.subr.mxu0 0.0
    %857 = vmatpush1.msra.mxu0 0.0
    %858 = vmatprep.subr.mxu0 0.0
    %859 = vmatpush1.msra.mxu0 0.0
    %860 = vmatprep.subr.mxu0 0.0
    %861 = vmatpush1.msra.mxu0 0.0
    %862 = vmatprep.subr.mxu0 0.0
    %863 = vmatpush1.msra.mxu0 0.0
    %864 = vmatprep.subr.mxu0 0.0
    %865 = vmatpush1.msra.mxu0 0.0
    %866 = vmatprep.subr.mxu0 0.0
    %867 = vmatpush1.msra.mxu0 0.0
    %868 = vmatprep.subr.mxu0 0.0
    %869 = vmatpush1.msra.mxu0 0.0
    %870 = vmatprep.subr.mxu0 0.0
    %871 = vmatpush1.msra.mxu0 0.0
    %872 = vmatprep.subr.mxu0 0.0
    %873 = vmatpush1.msra.mxu0 0.0
    %874 = vmatprep.subr.mxu0 0.0
    %875 = vmatpush1.msra.mxu0 0.0
    %876 = vmatprep.subr.mxu0 0.0
    %877 = vmatpush1.msra.mxu0 0.0
    %878 = vmatprep.subr.mxu0 0.0
    %879 = vmatpush1.msra.mxu0 0.0
    %880 = vmatprep.subr.mxu0 0.0
    %881 = vmatpush1.msra.mxu0 0.0
    %882 = vmatprep.subr.mxu0 0.0
    %883 = vmatpush1.msra.mxu0 0.0
    %884 = vmatprep.subr.mxu0 0.0
    %885 = vmatpush1.msra.mxu0 0.0
    %886 = vmatprep.mubr.f32.mxu0 0.0
    %887 = vmatmul.mubr.f32.gmra.mrb[0].mxu0 %v820
    %v888 = vpop.f32.mrb[0].mxu0
    %v889 = vadd.f32 %v817, %v888
    %v890 = vpop.f32.mrb[0].mxu0
    %891 = vdwg.mxu0
    %892 = vrot.lane.b32.xlu0 %v735, 96
    %v893 = vpop.permute.xlu0 %892
    %v894 = vsel %vm747, %v893, 0
    %896 = vmatprep.subr.mxu0 0.0
    %897 = vmatpush1.msra.mxu0 %v727
    %898 = vmatprep.subr.mxu0 0.0
    %899 = vmatpush1.msra.mxu0 %v733
    %900 = vmatprep.subr.mxu0 0.0
    %901 = vmatpush1.msra.mxu0 0.0
    %902 = vmatprep.subr.mxu0 0.0
    %903 = vmatpush1.msra.mxu0 0.0
    %904 = vmatprep.subr.mxu0 0.0
    %905 = vmatpush1.msra.mxu0 0.0
    %906 = vmatprep.subr.mxu0 0.0
    %907 = vmatpush1.msra.mxu0 0.0
    %908 = vmatprep.subr.mxu0 0.0
    %909 = vmatpush1.msra.mxu0 0.0
    %910 = vmatprep.subr.mxu0 0.0
    %911 = vmatpush1.msra.mxu0 0.0
    %912 = vmatprep.subr.mxu0 0.0
    %913 = vmatpush1.msra.mxu0 0.0
    %914 = vmatprep.subr.mxu0 0.0
    %915 = vmatpush1.msra.mxu0 0.0
    %916 = vmatprep.subr.mxu0 0.0
    %917 = vmatpush1.msra.mxu0 0.0
    %918 = vmatprep.subr.mxu0 0.0
    %919 = vmatpush1.msra.mxu0 0.0
    %920 = vmatprep.subr.mxu0 0.0
    %921 = vmatpush1.msra.mxu0 0.0
    %922 = vmatprep.subr.mxu0 0.0
    %923 = vmatpush1.msra.mxu0 0.0
    %924 = vmatprep.subr.mxu0 0.0
    %925 = vmatpush1.msra.mxu0 0.0
    %926 = vmatprep.subr.mxu0 0.0
    %927 = vmatpush1.msra.mxu0 0.0
    %928 = vmatprep.subr.mxu0 0.0
    %929 = vmatpush1.msra.mxu0 0.0
    %930 = vmatprep.subr.mxu0 0.0
    %931 = vmatpush1.msra.mxu0 0.0
    %932 = vmatprep.subr.mxu0 0.0
    %933 = vmatpush1.msra.mxu0 0.0
    %934 = vmatprep.subr.mxu0 0.0
    %935 = vmatpush1.msra.mxu0 0.0
    %936 = vmatprep.subr.mxu0 0.0
    %937 = vmatpush1.msra.mxu0 0.0
    %938 = vmatprep.subr.mxu0 0.0
    %939 = vmatpush1.msra.mxu0 0.0
    %940 = vmatprep.subr.mxu0 0.0
    %941 = vmatpush1.msra.mxu0 0.0
    %942 = vmatprep.subr.mxu0 0.0
    %943 = vmatpush1.msra.mxu0 0.0
    %944 = vmatprep.subr.mxu0 0.0
    %945 = vmatpush1.msra.mxu0 0.0
    %946 = vmatprep.subr.mxu0 0.0
    %947 = vmatpush1.msra.mxu0 0.0
    %948 = vmatprep.subr.mxu0 0.0
    %949 = vmatpush1.msra.mxu0 0.0
    %950 = vmatprep.subr.mxu0 0.0
    %951 = vmatpush1.msra.mxu0 0.0
    %952 = vmatprep.subr.mxu0 0.0
    %953 = vmatpush1.msra.mxu0 0.0
    %954 = vmatprep.subr.mxu0 0.0
    %955 = vmatpush1.msra.mxu0 0.0
    %956 = vmatprep.subr.mxu0 0.0
    %957 = vmatpush1.msra.mxu0 0.0
    %958 = vmatprep.subr.mxu0 0.0
    %959 = vmatpush1.msra.mxu0 0.0
    %960 = vmatprep.mubr.f32.mxu0 0.0
    %961 = vmatmul.mubr.f32.gmra.mrb[0].mxu0 %v894
    %v962 = vpop.f32.mrb[0].mxu0
    %v963 = vadd.f32 0.0, %v962
    %v964 = vpop.f32.mrb[0].mxu0
    %965 = vdwg.mxu0
    %v966 = vadd.f32 %v889, %v963
    %v967 = vld [vmem:[%s4 + $0x3] sm:$0x1]
    %v968 = vlaneseq
    %v969 = vshrl.u32 %v968, 7
    %v970 = vsub.s32 0, %v969
    %v971 = vrot.slane %v967, %v970
    %v972 = vadd.f32 %v966, %v971
    %v973 = vmax.f32 %v972, 0.0
    %v974 = vld [vmem:[#allocation2 + $0x100] sm:$0xff]
    %v975 = vld [vmem:[#allocation2 + $0x108] sm:$0xff]
    %v976 = vld [vmem:[#allocation2 + $0x110] sm:$0xff]
    %v977 = vld [vmem:[#allocation2 + $0x118] sm:$0xff]
    %v978 = vld [vmem:[#allocation2 + $0x120] sm:$0xff]
    %v979 = vld [vmem:[#allocation2 + $0x128] sm:$0xff]
    %v980 = vld [vmem:[#allocation2 + $0x130] sm:$0xff]
    %v981 = vld [vmem:[#allocation2 + $0x138] sm:$0xff]
    %v982 = vld [vmem:[#allocation2 + $0x140] sm:$0xff]
    %v983 = vld [vmem:[#allocation2 + $0x148] sm:$0xff]
    %v984 = vld [vmem:[#allocation2 + $0x150] sm:$0xff]
    %v985 = vld [vmem:[#allocation2 + $0x158] sm:$0xff]
    %v986 = vld [vmem:[#allocation2 + $0x160] sm:$0xff]
    %v987 = vld [vmem:[#allocation2 + $0x168] sm:$0xff]
    %v988 = vld [vmem:[#allocation2 + $0x170] sm:$0xff]
    %v989 = vld [vmem:[#allocation2 + $0x178] sm:$0xff]
    %v991 = vsel %vm64, %v973, 0
    %993 = vmatprep.subr.mxu0 %v975
    %994 = vmatpush1.msra.mxu0 %v974
    %995 = vmatprep.subr.mxu0 %v977
    %996 = vmatpush1.msra.mxu0 %v976
    %997 = vmatprep.subr.mxu0 %v979
    %998 = vmatpush1.msra.mxu0 %v978
    %999 = vmatprep.subr.mxu0 %v981
    %1000 = vmatpush1.msra.mxu0 %v980
    %1001 = vmatprep.subr.mxu0 %v983
    %1002 = vmatpush1.msra.mxu0 %v982
    %1003 = vmatprep.subr.mxu0 %v985
    %1004 = vmatpush1.msra.mxu0 %v984
    %1005 = vmatprep.subr.mxu0 %v987
    %1006 = vmatpush1.msra.mxu0 %v986
    %1007 = vmatprep.subr.mxu0 %v989
    %1008 = vmatpush1.msra.mxu0 %v988
    %1009 = vmatprep.subr.mxu0 0.0
    %1010 = vmatpush1.msra.mxu0 0.0
    %1011 = vmatprep.subr.mxu0 0.0
    %1012 = vmatpush1.msra.mxu0 0.0
    %1013 = vmatprep.subr.mxu0 0.0
    %1014 = vmatpush1.msra.mxu0 0.0
    %1015 = vmatprep.subr.mxu0 0.0
    %1016 = vmatpush1.msra.mxu0 0.0
    %1017 = vmatprep.subr.mxu0 0.0
    %1018 = vmatpush1.msra.mxu0 0.0
    %1019 = vmatprep.subr.mxu0 0.0
    %1020 = vmatpush1.msra.mxu0 0.0
    %1021 = vmatprep.subr.mxu0 0.0
    %1022 = vmatpush1.msra.mxu0 0.0
    %1023 = vmatprep.subr.mxu0 0.0
    %1024 = vmatpush1.msra.mxu0 0.0
    %1025 = vmatprep.subr.mxu0 0.0
    %1026 = vmatpush1.msra.mxu0 0.0
    %1027 = vmatprep.subr.mxu0 0.0
    %1028 = vmatpush1.msra.mxu0 0.0
    %1029 = vmatprep.subr.mxu0 0.0
    %1030 = vmatpush1.msra.mxu0 0.0
    %1031 = vmatprep.subr.mxu0 0.0
    %1032 = vmatpush1.msra.mxu0 0.0
    %1033 = vmatprep.subr.mxu0 0.0
    %1034 = vmatpush1.msra.mxu0 0.0
    %1035 = vmatprep.subr.mxu0 0.0
    %1036 = vmatpush1.msra.mxu0 0.0
    %1037 = vmatprep.subr.mxu0 0.0
    %1038 = vmatpush1.msra.mxu0 0.0
    %1039 = vmatprep.subr.mxu0 0.0
    %1040 = vmatpush1.msra.mxu0 0.0
    %1041 = vmatprep.subr.mxu0 0.0
    %1042 = vmatpush1.msra.mxu0 0.0
    %1043 = vmatprep.subr.mxu0 0.0
    %1044 = vmatpush1.msra.mxu0 0.0
    %1045 = vmatprep.subr.mxu0 0.0
    %1046 = vmatpush1.msra.mxu0 0.0
    %1047 = vmatprep.subr.mxu0 0.0
    %1048 = vmatpush1.msra.mxu0 0.0
    %1049 = vmatprep.subr.mxu0 0.0
    %1050 = vmatpush1.msra.mxu0 0.0
    %1051 = vmatprep.subr.mxu0 0.0
    %1052 = vmatpush1.msra.mxu0 0.0
    %1053 = vmatprep.subr.mxu0 0.0
    %1054 = vmatpush1.msra.mxu0 0.0
    %1055 = vmatprep.subr.mxu0 0.0
    %1056 = vmatpush1.msra.mxu0 0.0
    %1057 = vmatprep.mubr.f32.mxu0 0.0
    %1058 = vmatmul.mubr.f32.gmra.mrb[0].mxu0 %v991
    %v1059 = vpop.f32.mrb[0].mxu0
    %v1060 = vadd.f32 0.0, %v1059
    %v1061 = vpop.f32.mrb[0].mxu0
    %v1062 = vadd.f32 0.0, %v1061
    %1063 = vdwg.mxu0
    %v1064 = vld [vmem:[%s3 + $0x18] sm:$0x3]
    %1066 = vrot.lane.b32.xlu0 %v1064, 120
    %v1067 = vpop.permute.xlu0 %1066
    %1069 = vrot.lane.b32.xlu0 %v1060, 64
    %v1070 = vpop.permute.xlu0 %1069
    %vm1072 = vcmask 64512
    %v1073 = vsel %vm1072, %v1067, 0
    %1075 = vmatprep.subr.mxu0 0.0
    %1076 = vmatpush1.msra.mxu0 %v1070
    %1077 = vmatprep.subr.mxu0 0.0
    %1078 = vmatpush1.msra.mxu0 0.0
    %1079 = vmatprep.subr.mxu0 0.0
    %1080 = vmatpush1.msra.mxu0 0.0
    %1081 = vmatprep.subr.mxu0 0.0
    %1082 = vmatpush1.msra.mxu0 0.0
    %1083 = vmatprep.subr.mxu0 0.0
    %1084 = vmatpush1.msra.mxu0 0.0
    %1085 = vmatprep.subr.mxu0 0.0
    %1086 = vmatpush1.msra.mxu0 0.0
    %1087 = vmatprep.subr.mxu0 0.0
    %1088 = vmatpush1.msra.mxu0 0.0
    %1089 = vmatprep.subr.mxu0 0.0
    %1090 = vmatpush1.msra.mxu0 0.0
    %1091 = vmatprep.subr.mxu0 0.0
    %1092 = vmatpush1.msra.mxu0 0.0
    %1093 = vmatprep.subr.mxu0 0.0
    %1094 = vmatpush1.msra.mxu0 0.0
    %1095 = vmatprep.subr.mxu0 0.0
    %1096 = vmatpush1.msra.mxu0 0.0
    %1097 = vmatprep.subr.mxu0 0.0
    %1098 = vmatpush1.msra.mxu0 0.0
    %1099 = vmatprep.subr.mxu0 0.0
    %1100 = vmatpush1.msra.mxu0 0.0
    %1101 = vmatprep.subr.mxu0 0.0
    %1102 = vmatpush1.msra.mxu0 0.0
    %1103 = vmatprep.subr.mxu0 0.0
    %1104 = vmatpush1.msra.mxu0 0.0
    %1105 = vmatprep.subr.mxu0 0.0
    %1106 = vmatpush1.msra.mxu0 0.0
    %1107 = vmatprep.subr.mxu0 0.0
    %1108 = vmatpush1.msra.mxu0 0.0
    %1109 = vmatprep.subr.mxu0 0.0
    %1110 = vmatpush1.msra.mxu0 0.0
    %1111 = vmatprep.subr.mxu0 0.0
    %1112 = vmatpush1.msra.mxu0 0.0
    %1113 = vmatprep.subr.mxu0 0.0
    %1114 = vmatpush1.msra.mxu0 0.0
    %1115 = vmatprep.subr.mxu0 0.0
    %1116 = vmatpush1.msra.mxu0 0.0
    %1117 = vmatprep.subr.mxu0 0.0
    %1118 = vmatpush1.msra.mxu0 0.0
    %1119 = vmatprep.subr.mxu0 0.0
    %1120 = vmatpush1.msra.mxu0 0.0
    %1121 = vmatprep.subr.mxu0 0.0
    %1122 = vmatpush1.msra.mxu0 0.0
    %1123 = vmatprep.subr.mxu0 0.0
    %1124 = vmatpush1.msra.mxu0 0.0
    %1125 = vmatprep.subr.mxu0 0.0
    %1126 = vmatpush1.msra.mxu0 0.0
    %1127 = vmatprep.subr.mxu0 0.0
    %1128 = vmatpush1.msra.mxu0 0.0
    %1129 = vmatprep.subr.mxu0 0.0
    %1130 = vmatpush1.msra.mxu0 0.0
    %1131 = vmatprep.subr.mxu0 0.0
    %1132 = vmatpush1.msra.mxu0 0.0
    %1133 = vmatprep.subr.mxu0 0.0
    %1134 = vmatpush1.msra.mxu0 0.0
    %1135 = vmatprep.subr.mxu0 0.0
    %1136 = vmatpush1.msra.mxu0 0.0
    %1137 = vmatprep.subr.mxu0 0.0
    %1138 = vmatpush1.msra.mxu0 0.0
    %1139 = vmatprep.mubr.f32.mxu0 0.0
    %1140 = vmatmul.mubr.f32.gmra.mrb[0].mxu0 %v1073
    %v1141 = vpop.f32.mrb[0].mxu0
    %v1142 = vadd.f32 0.0, %v1141
    %v1143 = vpop.f32.mrb[0].mxu0
    %1144 = vdwg.mxu0
    %v1145 = vsel %vm1072, %v1064, 0
    %1147 = vmatprep.subr.mxu0 0.0
    %1148 = vmatpush1.msra.mxu0 %v1060
    %1149 = vmatprep.subr.mxu0 0.0
    %1150 = vmatpush1.msra.mxu0 0.0
    %1151 = vmatprep.subr.mxu0 0.0
    %1152 = vmatpush1.msra.mxu0 0.0
    %1153 = vmatprep.subr.mxu0 0.0
    %1154 = vmatpush1.msra.mxu0 0.0
    %1155 = vmatprep.subr.mxu0 0.0
    %1156 = vmatpush1.msra.mxu0 0.0
    %1157 = vmatprep.subr.mxu0 0.0
    %1158 = vmatpush1.msra.mxu0 0.0
    %1159 = vmatprep.subr.mxu0 0.0
    %1160 = vmatpush1.msra.mxu0 0.0
    %1161 = vmatprep.subr.mxu0 0.0
    %1162 = vmatpush1.msra.mxu0 0.0
    %1163 = vmatprep.subr.mxu0 0.0
    %1164 = vmatpush1.msra.mxu0 0.0
    %1165 = vmatprep.subr.mxu0 0.0
    %1166 = vmatpush1.msra.mxu0 0.0
    %1167 = vmatprep.subr.mxu0 0.0
    %1168 = vmatpush1.msra.mxu0 0.0
    %1169 = vmatprep.subr.mxu0 0.0
    %1170 = vmatpush1.msra.mxu0 0.0
    %1171 = vmatprep.subr.mxu0 0.0
    %1172 = vmatpush1.msra.mxu0 0.0
    %1173 = vmatprep.subr.mxu0 0.0
    %1174 = vmatpush1.msra.mxu0 0.0
    %1175 = vmatprep.subr.mxu0 0.0
    %1176 = vmatpush1.msra.mxu0 0.0
    %1177 = vmatprep.subr.mxu0 0.0
    %1178 = vmatpush1.msra.mxu0 0.0
    %1179 = vmatprep.subr.mxu0 0.0
    %1180 = vmatpush1.msra.mxu0 0.0
    %1181 = vmatprep.subr.mxu0 0.0
    %1182 = vmatpush1.msra.mxu0 0.0
    %1183 = vmatprep.subr.mxu0 0.0
    %1184 = vmatpush1.msra.mxu0 0.0
    %1185 = vmatprep.subr.mxu0 0.0
    %1186 = vmatpush1.msra.mxu0 0.0
    %1187 = vmatprep.subr.mxu0 0.0
    %1188 = vmatpush1.msra.mxu0 0.0
    %1189 = vmatprep.subr.mxu0 0.0
    %1190 = vmatpush1.msra.mxu0 0.0
    %1191 = vmatprep.subr.mxu0 0.0
    %1192 = vmatpush1.msra.mxu0 0.0
    %1193 = vmatprep.subr.mxu0 0.0
    %1194 = vmatpush1.msra.mxu0 0.0
    %1195 = vmatprep.subr.mxu0 0.0
    %1196 = vmatpush1.msra.mxu0 0.0
    %1197 = vmatprep.subr.mxu0 0.0
    %1198 = vmatpush1.msra.mxu0 0.0
    %1199 = vmatprep.subr.mxu0 0.0
    %1200 = vmatpush1.msra.mxu0 0.0
    %1201 = vmatprep.subr.mxu0 0.0
    %1202 = vmatpush1.msra.mxu0 0.0
    %1203 = vmatprep.subr.mxu0 0.0
    %1204 = vmatpush1.msra.mxu0 0.0
    %1205 = vmatprep.subr.mxu0 0.0
    %1206 = vmatpush1.msra.mxu0 0.0
    %1207 = vmatprep.subr.mxu0 0.0
    %1208 = vmatpush1.msra.mxu0 0.0
    %1209 = vmatprep.subr.mxu0 0.0
    %1210 = vmatpush1.msra.mxu0 0.0
    %1211 = vmatprep.mubr.f32.mxu0 0.0
    %1212 = vmatmul.mubr.f32.gmra.mrb[0].mxu0 %v1145
    %v1213 = vpop.f32.mrb[0].mxu0
    %v1214 = vadd.f32 %v1142, %v1213
    %v1215 = vpop.f32.mrb[0].mxu0
    %1216 = vdwg.mxu0
    %1217 = vrot.lane.b32.xlu0 %v1064, 112
    %v1218 = vpop.permute.xlu0 %1217
    %v1219 = vsel %vm1072, %v1218, 0
    %1221 = vmatprep.subr.mxu0 0.0
    %1222 = vmatpush1.msra.mxu0 %v1062
    %1223 = vmatprep.subr.mxu0 0.0
    %1224 = vmatpush1.msra.mxu0 0.0
    %1225 = vmatprep.subr.mxu0 0.0
    %1226 = vmatpush1.msra.mxu0 0.0
    %1227 = vmatprep.subr.mxu0 0.0
    %1228 = vmatpush1.msra.mxu0 0.0
    %1229 = vmatprep.subr.mxu0 0.0
    %1230 = vmatpush1.msra.mxu0 0.0
    %1231 = vmatprep.subr.mxu0 0.0
    %1232 = vmatpush1.msra.mxu0 0.0
    %1233 = vmatprep.subr.mxu0 0.0
    %1234 = vmatpush1.msra.mxu0 0.0
    %1235 = vmatprep.subr.mxu0 0.0
    %1236 = vmatpush1.msra.mxu0 0.0
    %1237 = vmatprep.subr.mxu0 0.0
    %1238 = vmatpush1.msra.mxu0 0.0
    %1239 = vmatprep.subr.mxu0 0.0
    %1240 = vmatpush1.msra.mxu0 0.0
    %1241 = vmatprep.subr.mxu0 0.0
    %1242 = vmatpush1.msra.mxu0 0.0
    %1243 = vmatprep.subr.mxu0 0.0
    %1244 = vmatpush1.msra.mxu0 0.0
    %1245 = vmatprep.subr.mxu0 0.0
    %1246 = vmatpush1.msra.mxu0 0.0
    %1247 = vmatprep.subr.mxu0 0.0
    %1248 = vmatpush1.msra.mxu0 0.0
    %1249 = vmatprep.subr.mxu0 0.0
    %1250 = vmatpush1.msra.mxu0 0.0
    %1251 = vmatprep.subr.mxu0 0.0
    %1252 = vmatpush1.msra.mxu0 0.0
    %1253 = vmatprep.subr.mxu0 0.0
    %1254 = vmatpush1.msra.mxu0 0.0
    %1255 = vmatprep.subr.mxu0 0.0
    %1256 = vmatpush1.msra.mxu0 0.0
    %1257 = vmatprep.subr.mxu0 0.0
    %1258 = vmatpush1.msra.mxu0 0.0
    %1259 = vmatprep.subr.mxu0 0.0
    %1260 = vmatpush1.msra.mxu0 0.0
    %1261 = vmatprep.subr.mxu0 0.0
    %1262 = vmatpush1.msra.mxu0 0.0
    %1263 = vmatprep.subr.mxu0 0.0
    %1264 = vmatpush1.msra.mxu0 0.0
    %1265 = vmatprep.subr.mxu0 0.0
    %1266 = vmatpush1.msra.mxu0 0.0
    %1267 = vmatprep.subr.mxu0 0.0
    %1268 = vmatpush1.msra.mxu0 0.0
    %1269 = vmatprep.subr.mxu0 0.0
    %1270 = vmatpush1.msra.mxu0 0.0
    %1271 = vmatprep.subr.mxu0 0.0
    %1272 = vmatpush1.msra.mxu0 0.0
    %1273 = vmatprep.subr.mxu0 0.0
    %1274 = vmatpush1.msra.mxu0 0.0
    %1275 = vmatprep.subr.mxu0 0.0
    %1276 = vmatpush1.msra.mxu0 0.0
    %1277 = vmatprep.subr.mxu0 0.0
    %1278 = vmatpush1.msra.mxu0 0.0
    %1279 = vmatprep.subr.mxu0 0.0
    %1280 = vmatpush1.msra.mxu0 0.0
    %1281 = vmatprep.subr.mxu0 0.0
    %1282 = vmatpush1.msra.mxu0 0.0
    %1283 = vmatprep.subr.mxu0 0.0
    %1284 = vmatpush1.msra.mxu0 0.0
    %1285 = vmatprep.mubr.f32.mxu0 0.0
    %1286 = vmatmul.mubr.f32.gmra.mrb[0].mxu0 %v1219
    %v1287 = vpop.f32.mrb[0].mxu0
    %v1288 = vadd.f32 0.0, %v1287
    %v1289 = vpop.f32.mrb[0].mxu0
    %1290 = vdwg.mxu0
    %v1291 = vadd.f32 %v1214, %v1288
    %1292 = vrot.lane.b32.xlu0 %v1064, 104
    %v1293 = vpop.permute.xlu0 %1292
    %1295 = vrot.lane.b32.xlu0 %v1062, 64
    %v1296 = vpop.permute.xlu0 %1295
    %v1298 = vsel %vm1072, %v1293, 0
    %1300 = vmatprep.subr.mxu0 0.0
    %1301 = vmatpush1.msra.mxu0 %v1296
    %1302 = vmatprep.subr.mxu0 0.0
    %1303 = vmatpush1.msra.mxu0 0.0
    %1304 = vmatprep.subr.mxu0 0.0
    %1305 = vmatpush1.msra.mxu0 0.0
    %1306 = vmatprep.subr.mxu0 0.0
    %1307 = vmatpush1.msra.mxu0 0.0
    %1308 = vmatprep.subr.mxu0 0.0
    %1309 = vmatpush1.msra.mxu0 0.0
    %1310 = vmatprep.subr.mxu0 0.0
    %1311 = vmatpush1.msra.mxu0 0.0
    %1312 = vmatprep.subr.mxu0 0.0
    %1313 = vmatpush1.msra.mxu0 0.0
    %1314 = vmatprep.subr.mxu0 0.0
    %1315 = vmatpush1.msra.mxu0 0.0
    %1316 = vmatprep.subr.mxu0 0.0
    %1317 = vmatpush1.msra.mxu0 0.0
    %1318 = vmatprep.subr.mxu0 0.0
    %1319 = vmatpush1.msra.mxu0 0.0
    %1320 = vmatprep.subr.mxu0 0.0
    %1321 = vmatpush1.msra.mxu0 0.0
    %1322 = vmatprep.subr.mxu0 0.0
    %1323 = vmatpush1.msra.mxu0 0.0
    %1324 = vmatprep.subr.mxu0 0.0
    %1325 = vmatpush1.msra.mxu0 0.0
    %1326 = vmatprep.subr.mxu0 0.0
    %1327 = vmatpush1.msra.mxu0 0.0
    %1328 = vmatprep.subr.mxu0 0.0
    %1329 = vmatpush1.msra.mxu0 0.0
    %1330 = vmatprep.subr.mxu0 0.0
    %1331 = vmatpush1.msra.mxu0 0.0
    %1332 = vmatprep.subr.mxu0 0.0
    %1333 = vmatpush1.msra.mxu0 0.0
    %1334 = vmatprep.subr.mxu0 0.0
    %1335 = vmatpush1.msra.mxu0 0.0
    %1336 = vmatprep.subr.mxu0 0.0
    %1337 = vmatpush1.msra.mxu0 0.0
    %1338 = vmatprep.subr.mxu0 0.0
    %1339 = vmatpush1.msra.mxu0 0.0
    %1340 = vmatprep.subr.mxu0 0.0
    %1341 = vmatpush1.msra.mxu0 0.0
    %1342 = vmatprep.subr.mxu0 0.0
    %1343 = vmatpush1.msra.mxu0 0.0
    %1344 = vmatprep.subr.mxu0 0.0
    %1345 = vmatpush1.msra.mxu0 0.0
    %1346 = vmatprep.subr.mxu0 0.0
    %1347 = vmatpush1.msra.mxu0 0.0
    %1348 = vmatprep.subr.mxu0 0.0
    %1349 = vmatpush1.msra.mxu0 0.0
    %1350 = vmatprep.subr.mxu0 0.0
    %1351 = vmatpush1.msra.mxu0 0.0
    %1352 = vmatprep.subr.mxu0 0.0
    %1353 = vmatpush1.msra.mxu0 0.0
    %1354 = vmatprep.subr.mxu0 0.0
    %1355 = vmatpush1.msra.mxu0 0.0
    %1356 = vmatprep.subr.mxu0 0.0
    %1357 = vmatpush1.msra.mxu0 0.0
    %1358 = vmatprep.subr.mxu0 0.0
    %1359 = vmatpush1.msra.mxu0 0.0
    %1360 = vmatprep.subr.mxu0 0.0
    %1361 = vmatpush1.msra.mxu0 0.0
    %1362 = vmatprep.subr.mxu0 0.0
    %1363 = vmatpush1.msra.mxu0 0.0
    %1364 = vmatprep.mubr.f32.mxu0 0.0
    %1365 = vmatmul.mubr.f32.gmra.mrb[0].mxu0 %v1298
    %v1366 = vpop.f32.mrb[0].mxu0
    %v1367 = vadd.f32 0.0, %v1366
    %v1368 = vpop.f32.mrb[0].mxu0
    %1369 = vdwg.mxu0
    %v1370 = vadd.f32 %v1291, %v1367
    %v1371 = vld [vmem:[%s4 + $0x4] sm:$0x1]
    %v1372 = vlaneseq
    %v1373 = vshrl.u32 %v1372, 7
    %v1374 = vsub.s32 0, %v1373
    %v1375 = vrot.slane %v1371, %v1374
    %v1376 = vadd.f32 %v1370, %v1375
    %v1377 = vmul.f32 %v1376, 0.5
    %v1378 = vmul.f32 %v1377, 1.442695
    %v1379 = vpow.pop %v1378
    %v1380 = vld [vmem:[%s1] sm:$0x3]
    %1382 = vrot.lane.b32.xlu0 %v1380, 32
    %v1383 = vpop.permute.xlu0 %1382
    %v1385 = vmul.f32 %v1379, %v1383
    %1387 = vrot.lane.b32.xlu0 %v1385, 96
    %v1388 = vpop.permute.xlu0 %1387
    %v1390 = vadd.f32 %v1376, %v1388
    %vm1391 = vcmask 517120
    %1392 = vst.msk [vmem:[%s5] sm:$0x3] %vm1391, %v1376
    %v1393 = vld [vmem:[#allocation2 + $0x180] sm:$0xff]
    %v1394 = vld [vmem:[#allocation2 + $0x188] sm:$0xff]
    %v1395 = vld [vmem:[#allocation2 + $0x190] sm:$0xff]
    %v1396 = vld [vmem:[#allocation2 + $0x198] sm:$0xff]
    %v1397 = vld [vmem:[#allocation2 + $0x1a0] sm:$0xff]
    %v1398 = vld [vmem:[#allocation2 + $0x1a8] sm:$0xff]
    %v1399 = vld [vmem:[#allocation2 + $0x1b0] sm:$0xff]
    %v1400 = vld [vmem:[#allocation2 + $0x1b8] sm:$0xff]
    %v1402 = vsel %vm190, %v1390, 0
    %1404 = vmatprep.subr.mxu0 %v1394
    %1405 = vmatpush1.msra.mxu0 %v1393
    %1406 = vmatprep.subr.mxu0 %v1396
    %1407 = vmatpush1.msra.mxu0 %v1395
    %1408 = vmatprep.subr.mxu0 %v1398
    %1409 = vmatpush1.msra.mxu0 %v1397
    %1410 = vmatprep.subr.mxu0 %v1400
    %1411 = vmatpush1.msra.mxu0 %v1399
    %1412 = vmatprep.subr.mxu0 0.0
    %1413 = vmatpush1.msra.mxu0 0.0
    %1414 = vmatprep.subr.mxu0 0.0
    %1415 = vmatpush1.msra.mxu0 0.0
    %1416 = vmatprep.subr.mxu0 0.0
    %1417 = vmatpush1.msra.mxu0 0.0
    %1418 = vmatprep.subr.mxu0 0.0
    %1419 = vmatpush1.msra.mxu0 0.0
    %1420 = vmatprep.subr.mxu0 0.0
    %1421 = vmatpush1.msra.mxu0 0.0
    %1422 = vmatprep.subr.mxu0 0.0
    %1423 = vmatpush1.msra.mxu0 0.0
    %1424 = vmatprep.subr.mxu0 0.0
    %1425 = vmatpush1.msra.mxu0 0.0
    %1426 = vmatprep.subr.mxu0 0.0
    %1427 = vmatpush1.msra.mxu0 0.0
    %1428 = vmatprep.subr.mxu0 0.0
    %1429 = vmatpush1.msra.mxu0 0.0
    %1430 = vmatprep.subr.mxu0 0.0
    %1431 = vmatpush1.msra.mxu0 0.0
    %1432 = vmatprep.subr.mxu0 0.0
    %1433 = vmatpush1.msra.mxu0 0.0
    %1434 = vmatprep.subr.mxu0 0.0
    %1435 = vmatpush1.msra.mxu0 0.0
    %1436 = vmatprep.subr.mxu0 0.0
    %1437 = vmatpush1.msra.mxu0 0.0
    %1438 = vmatprep.subr.mxu0 0.0
    %1439 = vmatpush1.msra.mxu0 0.0
    %1440 = vmatprep.subr.mxu0 0.0
    %1441 = vmatpush1.msra.mxu0 0.0
    %1442 = vmatprep.subr.mxu0 0.0
    %1443 = vmatpush1.msra.mxu0 0.0
    %1444 = vmatprep.subr.mxu0 0.0
    %1445 = vmatpush1.msra.mxu0 0.0
    %1446 = vmatprep.subr.mxu0 0.0
    %1447 = vmatpush1.msra.mxu0 0.0
    %1448 = vmatprep.subr.mxu0 0.0
    %1449 = vmatpush1.msra.mxu0 0.0
    %1450 = vmatprep.subr.mxu0 0.0
    %1451 = vmatpush1.msra.mxu0 0.0
    %1452 = vmatprep.subr.mxu0 0.0
    %1453 = vmatpush1.msra.mxu0 0.0
    %1454 = vmatprep.subr.mxu0 0.0
    %1455 = vmatpush1.msra.mxu0 0.0
    %1456 = vmatprep.subr.mxu0 0.0
    %1457 = vmatpush1.msra.mxu0 0.0
    %1458 = vmatprep.subr.mxu0 0.0
    %1459 = vmatpush1.msra.mxu0 0.0
    %1460 = vmatprep.subr.mxu0 0.0
    %1461 = vmatpush1.msra.mxu0 0.0
    %1462 = vmatprep.subr.mxu0 0.0
    %1463 = vmatpush1.msra.mxu0 0.0
    %1464 = vmatprep.subr.mxu0 0.0
    %1465 = vmatpush1.msra.mxu0 0.0
    %1466 = vmatprep.subr.mxu0 0.0
    %1467 = vmatpush1.msra.mxu0 0.0
    %1468 = vmatprep.mubr.f32.mxu0 0.0
    %1469 = vmatmul.mubr.f32.gmra.mrb[0].mxu0 %v1402
    %v1470 = vpop.f32.mrb[0].mxu0
    %v1471 = vadd.f32 0.0, %v1470
    %v1472 = vpop.f32.mrb[0].mxu0
    %v1473 = vadd.f32 0.0, %v1472
    %1474 = vdwg.mxu0
    %v1475 = vld [vmem:[%s3 + $0x20] sm:$0xff]
    %1477 = vrot.lane.b32.xlu0 %v1475, 126
    %v1478 = vpop.permute.xlu0 %1477
    %1480 = vrot.lane.b32.xlu0 %v1471, 64
    %v1481 = vpop.permute.xlu0 %1480
    %vm1482 = vcmask 15360
    %v1483 = vsel %vm1482, %v1478, 0
    %vm1485 = vcmask 1041408
    %v1486 = vsel %vm1485, %v1481, 0
    %1488 = vmatprep.subr.mxu0 0.0
    %1489 = vmatpush1.msra.mxu0 %v1486
    %1490 = vmatprep.subr.mxu0 0.0
    %1491 = vmatpush1.msra.mxu0 0.0
    %1492 = vmatprep.subr.mxu0 0.0
    %1493 = vmatpush1.msra.mxu0 0.0
    %1494 = vmatprep.subr.mxu0 0.0
    %1495 = vmatpush1.msra.mxu0 0.0
    %1496 = vmatprep.subr.mxu0 0.0
    %1497 = vmatpush1.msra.mxu0 0.0
    %1498 = vmatprep.subr.mxu0 0.0
    %1499 = vmatpush1.msra.mxu0 0.0
    %1500 = vmatprep.subr.mxu0 0.0
    %1501 = vmatpush1.msra.mxu0 0.0
    %1502 = vmatprep.subr.mxu0 0.0
    %1503 = vmatpush1.msra.mxu0 0.0
    %1504 = vmatprep.subr.mxu0 0.0
    %1505 = vmatpush1.msra.mxu0 0.0
    %1506 = vmatprep.subr.mxu0 0.0
    %1507 = vmatpush1.msra.mxu0 0.0
    %1508 = vmatprep.subr.mxu0 0.0
    %1509 = vmatpush1.msra.mxu0 0.0
    %1510 = vmatprep.subr.mxu0 0.0
    %1511 = vmatpush1.msra.mxu0 0.0
    %1512 = vmatprep.subr.mxu0 0.0
    %1513 = vmatpush1.msra.mxu0 0.0
    %1514 = vmatprep.subr.mxu0 0.0
    %1515 = vmatpush1.msra.mxu0 0.0
    %1516 = vmatprep.subr.mxu0 0.0
    %1517 = vmatpush1.msra.mxu0 0.0
    %1518 = vmatprep.subr.mxu0 0.0
    %1519 = vmatpush1.msra.mxu0 0.0
    %1520 = vmatprep.subr.mxu0 0.0
    %1521 = vmatpush1.msra.mxu0 0.0
    %1522 = vmatprep.subr.mxu0 0.0
    %1523 = vmatpush1.msra.mxu0 0.0
    %1524 = vmatprep.subr.mxu0 0.0
    %1525 = vmatpush1.msra.mxu0 0.0
    %1526 = vmatprep.subr.mxu0 0.0
    %1527 = vmatpush1.msra.mxu0 0.0
    %1528 = vmatprep.subr.mxu0 0.0
    %1529 = vmatpush1.msra.mxu0 0.0
    %1530 = vmatprep.subr.mxu0 0.0
    %1531 = vmatpush1.msra.mxu0 0.0
    %1532 = vmatprep.subr.mxu0 0.0
    %1533 = vmatpush1.msra.mxu0 0.0
    %1534 = vmatprep.subr.mxu0 0.0
    %1535 = vmatpush1.msra.mxu0 0.0
    %1536 = vmatprep.subr.mxu0 0.0
    %1537 = vmatpush1.msra.mxu0 0.0
    %1538 = vmatprep.subr.mxu0 0.0
    %1539 = vmatpush1.msra.mxu0 0.0
    %1540 = vmatprep.subr.mxu0 0.0
    %1541 = vmatpush1.msra.mxu0 0.0
    %1542 = vmatprep.subr.mxu0 0.0
    %1543 = vmatpush1.msra.mxu0 0.0
    %1544 = vmatprep.subr.mxu0 0.0
    %1545 = vmatpush1.msra.mxu0 0.0
    %1546 = vmatprep.subr.mxu0 0.0
    %1547 = vmatpush1.msra.mxu0 0.0
    %1548 = vmatprep.subr.mxu0 0.0
    %1549 = vmatpush1.msra.mxu0 0.0
    %1550 = vmatprep.subr.mxu0 0.0
    %1551 = vmatpush1.msra.mxu0 0.0
    %1552 = vmatprep.mubr.f32.mxu0 0.0
    %1553 = vmatmul.mubr.f32.gmra.mrb[0].mxu0 %v1483
    %v1554 = vpop.f32.mrb[0].mxu0
    %v1555 = vadd.f32 0.0, %v1554
    %v1556 = vpop.f32.mrb[0].mxu0
    %1557 = vdwg.mxu0
    %v1558 = vsel %vm1482, %v1475, 0
    %v1560 = vsel %vm1485, %v1471, 0
    %1562 = vmatprep.subr.mxu0 0.0
    %1563 = vmatpush1.msra.mxu0 %v1560
    %1564 = vmatprep.subr.mxu0 0.0
    %1565 = vmatpush1.msra.mxu0 0.0
    %1566 = vmatprep.subr.mxu0 0.0
    %1567 = vmatpush1.msra.mxu0 0.0
    %1568 = vmatprep.subr.mxu0 0.0
    %1569 = vmatpush1.msra.mxu0 0.0
    %1570 = vmatprep.subr.mxu0 0.0
    %1571 = vmatpush1.msra.mxu0 0.0
    %1572 = vmatprep.subr.mxu0 0.0
    %1573 = vmatpush1.msra.mxu0 0.0
    %1574 = vmatprep.subr.mxu0 0.0
    %1575 = vmatpush1.msra.mxu0 0.0
    %1576 = vmatprep.subr.mxu0 0.0
    %1577 = vmatpush1.msra.mxu0 0.0
    %1578 = vmatprep.subr.mxu0 0.0
    %1579 = vmatpush1.msra.mxu0 0.0
    %1580 = vmatprep.subr.mxu0 0.0
    %1581 = vmatpush1.msra.mxu0 0.0
    %1582 = vmatprep.subr.mxu0 0.0
    %1583 = vmatpush1.msra.mxu0 0.0
    %1584 = vmatprep.subr.mxu0 0.0
    %1585 = vmatpush1.msra.mxu0 0.0
    %1586 = vmatprep.subr.mxu0 0.0
    %1587 = vmatpush1.msra.mxu0 0.0
    %1588 = vmatprep.subr.mxu0 0.0
    %1589 = vmatpush1.msra.mxu0 0.0
    %1590 = vmatprep.subr.mxu0 0.0
    %1591 = vmatpush1.msra.mxu0 0.0
    %1592 = vmatprep.subr.mxu0 0.0
    %1593 = vmatpush1.msra.mxu0 0.0
    %1594 = vmatprep.subr.mxu0 0.0
    %1595 = vmatpush1.msra.mxu0 0.0
    %1596 = vmatprep.subr.mxu0 0.0
    %1597 = vmatpush1.msra.mxu0 0.0
    %1598 = vmatprep.subr.mxu0 0.0
    %1599 = vmatpush1.msra.mxu0 0.0
    %1600 = vmatprep.subr.mxu0 0.0
    %1601 = vmatpush1.msra.mxu0 0.0
    %1602 = vmatprep.subr.mxu0 0.0
    %1603 = vmatpush1.msra.mxu0 0.0
    %1604 = vmatprep.subr.mxu0 0.0
    %1605 = vmatpush1.msra.mxu0 0.0
    %1606 = vmatprep.subr.mxu0 0.0
    %1607 = vmatpush1.msra.mxu0 0.0
    %1608 = vmatprep.subr.mxu0 0.0
    %1609 = vmatpush1.msra.mxu0 0.0
    %1610 = vmatprep.subr.mxu0 0.0
    %1611 = vmatpush1.msra.mxu0 0.0
    %1612 = vmatprep.subr.mxu0 0.0
    %1613 = vmatpush1.msra.mxu0 0.0
    %1614 = vmatprep.subr.mxu0 0.0
    %1615 = vmatpush1.msra.mxu0 0.0
    %1616 = vmatprep.subr.mxu0 0.0
    %1617 = vmatpush1.msra.mxu0 0.0
    %1618 = vmatprep.subr.mxu0 0.0
    %1619 = vmatpush1.msra.mxu0 0.0
    %1620 = vmatprep.subr.mxu0 0.0
    %1621 = vmatpush1.msra.mxu0 0.0
    %1622 = vmatprep.subr.mxu0 0.0
    %1623 = vmatpush1.msra.mxu0 0.0
    %1624 = vmatprep.subr.mxu0 0.0
    %1625 = vmatpush1.msra.mxu0 0.0
    %1626 = vmatprep.mubr.f32.mxu0 0.0
    %1627 = vmatmul.mubr.f32.gmra.mrb[0].mxu0 %v1558
    %v1628 = vpop.f32.mrb[0].mxu0
    %v1629 = vadd.f32 %v1555, %v1628
    %v1630 = vpop.f32.mrb[0].mxu0
    %1631 = vdwg.mxu0
    %1632 = vrot.lane.b32.xlu0 %v1475, 124
    %v1633 = vpop.permute.xlu0 %1632
    %v1634 = vsel %vm1482, %v1633, 0
    %v1637 = vsel %vm1485, %v1473, 0
    %1639 = vmatprep.subr.mxu0 0.0
    %1640 = vmatpush1.msra.mxu0 %v1637
    %1641 = vmatprep.subr.mxu0 0.0
    %1642 = vmatpush1.msra.mxu0 0.0
    %1643 = vmatprep.subr.mxu0 0.0
    %1644 = vmatpush1.msra.mxu0 0.0
    %1645 = vmatprep.subr.mxu0 0.0
    %1646 = vmatpush1.msra.mxu0 0.0
    %1647 = vmatprep.subr.mxu0 0.0
    %1648 = vmatpush1.msra.mxu0 0.0
    %1649 = vmatprep.subr.mxu0 0.0
    %1650 = vmatpush1.msra.mxu0 0.0
    %1651 = vmatprep.subr.mxu0 0.0
    %1652 = vmatpush1.msra.mxu0 0.0
    %1653 = vmatprep.subr.mxu0 0.0
    %1654 = vmatpush1.msra.mxu0 0.0
    %1655 = vmatprep.subr.mxu0 0.0
    %1656 = vmatpush1.msra.mxu0 0.0
    %1657 = vmatprep.subr.mxu0 0.0
    %1658 = vmatpush1.msra.mxu0 0.0
    %1659 = vmatprep.subr.mxu0 0.0
    %1660 = vmatpush1.msra.mxu0 0.0
    %1661 = vmatprep.subr.mxu0 0.0
    %1662 = vmatpush1.msra.mxu0 0.0
    %1663 = vmatprep.subr.mxu0 0.0
    %1664 = vmatpush1.msra.mxu0 0.0
    %1665 = vmatprep.subr.mxu0 0.0
    %1666 = vmatpush1.msra.mxu0 0.0
    %1667 = vmatprep.subr.mxu0 0.0
    %1668 = vmatpush1.msra.mxu0 0.0
    %1669 = vmatprep.subr.mxu0 0.0
    %1670 = vmatpush1.msra.mxu0 0.0
    %1671 = vmatprep.subr.mxu0 0.0
    %1672 = vmatpush1.msra.mxu0 0.0
    %1673 = vmatprep.subr.mxu0 0.0
    %1674 = vmatpush1.msra.mxu0 0.0
    %1675 = vmatprep.subr.mxu0 0.0
    %1676 = vmatpush1.msra.mxu0 0.0
    %1677 = vmatprep.subr.mxu0 0.0
    %1678 = vmatpush1.msra.mxu0 0.0
    %1679 = vmatprep.subr.mxu0 0.0
    %1680 = vmatpush1.msra.mxu0 0.0
    %1681 = vmatprep.subr.mxu0 0.0
    %1682 = vmatpush1.msra.mxu0 0.0
    %1683 = vmatprep.subr.mxu0 0.0
    %1684 = vmatpush1.msra.mxu0 0.0
    %1685 = vmatprep.subr.mxu0 0.0
    %1686 = vmatpush1.msra.mxu0 0.0
    %1687 = vmatprep.subr.mxu0 0.0
    %1688 = vmatpush1.msra.mxu0 0.0
    %1689 = vmatprep.subr.mxu0 0.0
    %1690 = vmatpush1.msra.mxu0 0.0
    %1691 = vmatprep.subr.mxu0 0.0
    %1692 = vmatpush1.msra.mxu0 0.0
    %1693 = vmatprep.subr.mxu0 0.0
    %1694 = vmatpush1.msra.mxu0 0.0
    %1695 = vmatprep.subr.mxu0 0.0
    %1696 = vmatpush1.msra.mxu0 0.0
    %1697 = vmatprep.subr.mxu0 0.0
    %1698 = vmatpush1.msra.mxu0 0.0
    %1699 = vmatprep.subr.mxu0 0.0
    %1700 = vmatpush1.msra.mxu0 0.0
    %1701 = vmatprep.subr.mxu0 0.0
    %1702 = vmatpush1.msra.mxu0 0.0
    %1703 = vmatprep.mubr.f32.mxu0 0.0
    %1704 = vmatmul.mubr.f32.gmra.mrb[0].mxu0 %v1634
    %v1705 = vpop.f32.mrb[0].mxu0
    %v1706 = vadd.f32 0.0, %v1705
    %v1707 = vpop.f32.mrb[0].mxu0
    %1708 = vdwg.mxu0
    %v1709 = vadd.f32 %v1629, %v1706
    %1710 = vrot.lane.b32.xlu0 %v1475, 122
    %v1711 = vpop.permute.xlu0 %1710
    %1712 = vrot.lane.b32.xlu0 %v1473, 64
    %v1713 = vpop.permute.xlu0 %1712
    %v1714 = vsel %vm1482, %v1711, 0
    %v1716 = vsel %vm1485, %v1713, 0
    %1718 = vmatprep.subr.mxu0 0.0
    %1719 = vmatpush1.msra.mxu0 %v1716
    %1720 = vmatprep.subr.mxu0 0.0
    %1721 = vmatpush1.msra.mxu0 0.0
    %1722 = vmatprep.subr.mxu0 0.0
    %1723 = vmatpush1.msra.mxu0 0.0
    %1724 = vmatprep.subr.mxu0 0.0
    %1725 = vmatpush1.msra.mxu0 0.0
    %1726 = vmatprep.subr.mxu0 0.0
    %1727 = vmatpush1.msra.mxu0 0.0
    %1728 = vmatprep.subr.mxu0 0.0
    %1729 = vmatpush1.msra.mxu0 0.0
    %1730 = vmatprep.subr.mxu0 0.0
    %1731 = vmatpush1.msra.mxu0 0.0
    %1732 = vmatprep.subr.mxu0 0.0
    %1733 = vmatpush1.msra.mxu0 0.0
    %1734 = vmatprep.subr.mxu0 0.0
    %1735 = vmatpush1.msra.mxu0 0.0
    %1736 = vmatprep.subr.mxu0 0.0
    %1737 = vmatpush1.msra.mxu0 0.0
    %1738 = vmatprep.subr.mxu0 0.0
    %1739 = vmatpush1.msra.mxu0 0.0
    %1740 = vmatprep.subr.mxu0 0.0
    %1741 = vmatpush1.msra.mxu0 0.0
    %1742 = vmatprep.subr.mxu0 0.0
    %1743 = vmatpush1.msra.mxu0 0.0
    %1744 = vmatprep.subr.mxu0 0.0
    %1745 = vmatpush1.msra.mxu0 0.0
    %1746 = vmatprep.subr.mxu0 0.0
    %1747 = vmatpush1.msra.mxu0 0.0
    %1748 = vmatprep.subr.mxu0 0.0
    %1749 = vmatpush1.msra.mxu0 0.0
    %1750 = vmatprep.subr.mxu0 0.0
    %1751 = vmatpush1.msra.mxu0 0.0
    %1752 = vmatprep.subr.mxu0 0.0
    %1753 = vmatpush1.msra.mxu0 0.0
    %1754 = vmatprep.subr.mxu0 0.0
    %1755 = vmatpush1.msra.mxu0 0.0
    %1756 = vmatprep.subr.mxu0 0.0
    %1757 = vmatpush1.msra.mxu0 0.0
    %1758 = vmatprep.subr.mxu0 0.0
    %1759 = vmatpush1.msra.mxu0 0.0
    %1760 = vmatprep.subr.mxu0 0.0
    %1761 = vmatpush1.msra.mxu0 0.0
    %1762 = vmatprep.subr.mxu0 0.0
    %1763 = vmatpush1.msra.mxu0 0.0
    %1764 = vmatprep.subr.mxu0 0.0
    %1765 = vmatpush1.msra.mxu0 0.0
    %1766 = vmatprep.subr.mxu0 0.0
    %1767 = vmatpush1.msra.mxu0 0.0
    %1768 = vmatprep.subr.mxu0 0.0
    %1769 = vmatpush1.msra.mxu0 0.0
    %1770 = vmatprep.subr.mxu0 0.0
    %1771 = vmatpush1.msra.mxu0 0.0
    %1772 = vmatprep.subr.mxu0 0.0
    %1773 = vmatpush1.msra.mxu0 0.0
    %1774 = vmatprep.subr.mxu0 0.0
    %1775 = vmatpush1.msra.mxu0 0.0
    %1776 = vmatprep.subr.mxu0 0.0
    %1777 = vmatpush1.msra.mxu0 0.0
    %1778 = vmatprep.subr.mxu0 0.0
    %1779 = vmatpush1.msra.mxu0 0.0
    %1780 = vmatprep.subr.mxu0 0.0
    %1781 = vmatpush1.msra.mxu0 0.0
    %1782 = vmatprep.mubr.f32.mxu0 0.0
    %1783 = vmatmul.mubr.f32.gmra.mrb[0].mxu0 %v1714
    %v1784 = vpop.f32.mrb[0].mxu0
    %v1785 = vadd.f32 0.0, %v1784
    %v1786 = vpop.f32.mrb[0].mxu0
    %1787 = vdwg.mxu0
    %v1788 = vadd.f32 %v1709, %v1785
    %v1789 = vld [vmem:[%s4 + $0x8] sm:$0xff]
    %v1790 = vadd.f32 %v1788, %v1789
    %v1791 = vld [vmem:[#allocation2 + $0x200] sm:$0xff]
    %v1792 = vld [vmem:[#allocation2 + $0x208] sm:$0xff]
    %v1793 = vld [vmem:[#allocation2 + $0x210] sm:$0xff]
    %v1794 = vld [vmem:[#allocation2 + $0x218] sm:$0xff]
    %v1795 = vld [vmem:[#allocation2 + $0x220] sm:$0xff]
    %v1796 = vld [vmem:[#allocation2 + $0x228] sm:$0xff]
    %v1797 = vld [vmem:[#allocation2 + $0x230] sm:$0xff]
    %v1798 = vld [vmem:[#allocation2 + $0x238] sm:$0xff]
    %v1799 = vld [vmem:[#allocation2 + $0x240] sm:$0xff]
    %v1800 = vld [vmem:[#allocation2 + $0x248] sm:$0xff]
    %v1801 = vld [vmem:[#allocation2 + $0x250] sm:$0xff]
    %v1802 = vld [vmem:[#allocation2 + $0x258] sm:$0xff]
    %v1803 = vld [vmem:[#allocation2 + $0x260] sm:$0xff]
    %v1804 = vld [vmem:[#allocation2 + $0x268] sm:$0xff]
    %v1805 = vld [vmem:[#allocation2 + $0x270] sm:$0xff]
    %v1806 = vld [vmem:[#allocation2 + $0x278] sm:$0xff]
    %v1808 = vsel %vm64, %v1790, 0
    %1810 = vmatprep.subr.mxu0 %v1792
    %1811 = vmatpush1.msra.mxu0 %v1791
    %1812 = vmatprep.subr.mxu0 %v1794
    %1813 = vmatpush1.msra.mxu0 %v1793
    %1814 = vmatprep.subr.mxu0 %v1796
    %1815 = vmatpush1.msra.mxu0 %v1795
    %1816 = vmatprep.subr.mxu0 %v1798
    %1817 = vmatpush1.msra.mxu0 %v1797
    %1818 = vmatprep.subr.mxu0 %v1800
    %1819 = vmatpush1.msra.mxu0 %v1799
    %1820 = vmatprep.subr.mxu0 %v1802
    %1821 = vmatpush1.msra.mxu0 %v1801
    %1822 = vmatprep.subr.mxu0 %v1804
    %1823 = vmatpush1.msra.mxu0 %v1803
    %1824 = vmatprep.subr.mxu0 %v1806
    %1825 = vmatpush1.msra.mxu0 %v1805
    %1826 = vmatprep.subr.mxu0 0.0
    %1827 = vmatpush1.msra.mxu0 0.0
    %1828 = vmatprep.subr.mxu0 0.0
    %1829 = vmatpush1.msra.mxu0 0.0
    %1830 = vmatprep.subr.mxu0 0.0
    %1831 = vmatpush1.msra.mxu0 0.0
    %1832 = vmatprep.subr.mxu0 0.0
    %1833 = vmatpush1.msra.mxu0 0.0
    %1834 = vmatprep.subr.mxu0 0.0
    %1835 = vmatpush1.msra.mxu0 0.0
    %1836 = vmatprep.subr.mxu0 0.0
    %1837 = vmatpush1.msra.mxu0 0.0
    %1838 = vmatprep.subr.mxu0 0.0
    %1839 = vmatpush1.msra.mxu0 0.0
    %1840 = vmatprep.subr.mxu0 0.0
    %1841 = vmatpush1.msra.mxu0 0.0
    %1842 = vmatprep.subr.mxu0 0.0
    %1843 = vmatpush1.msra.mxu0 0.0
    %1844 = vmatprep.subr.mxu0 0.0
    %1845 = vmatpush1.msra.mxu0 0.0
    %1846 = vmatprep.subr.mxu0 0.0
    %1847 = vmatpush1.msra.mxu0 0.0
    %1848 = vmatprep.subr.mxu0 0.0
    %1849 = vmatpush1.msra.mxu0 0.0
    %1850 = vmatprep.subr.mxu0 0.0
    %1851 = vmatpush1.msra.mxu0 0.0
    %1852 = vmatprep.subr.mxu0 0.0
    %1853 = vmatpush1.msra.mxu0 0.0
    %1854 = vmatprep.subr.mxu0 0.0
    %1855 = vmatpush1.msra.mxu0 0.0
    %1856 = vmatprep.subr.mxu0 0.0
    %1857 = vmatpush1.msra.mxu0 0.0
    %1858 = vmatprep.subr.mxu0 0.0
    %1859 = vmatpush1.msra.mxu0 0.0
    %1860 = vmatprep.subr.mxu0 0.0
    %1861 = vmatpush1.msra.mxu0 0.0
    %1862 = vmatprep.subr.mxu0 0.0
    %1863 = vmatpush1.msra.mxu0 0.0
    %1864 = vmatprep.subr.mxu0 0.0
    %1865 = vmatpush1.msra.mxu0 0.0
    %1866 = vmatprep.subr.mxu0 0.0
    %1867 = vmatpush1.msra.mxu0 0.0
    %1868 = vmatprep.subr.mxu0 0.0
    %1869 = vmatpush1.msra.mxu0 0.0
    %1870 = vmatprep.subr.mxu0 0.0
    %1871 = vmatpush1.msra.mxu0 0.0
    %1872 = vmatprep.subr.mxu0 0.0
    %1873 = vmatpush1.msra.mxu0 0.0
    %1874 = vmatprep.mubr.f32.mxu0 0.0
    %1875 = vmatmul.mubr.f32.gmra.mrb[0].mxu0 %v1808
    %v1876 = vpop.f32.mrb[0].mxu0
    %v1877 = vadd.f32 0.0, %v1876
    %v1878 = vpop.f32.mrb[0].mxu0
    %v1879 = vadd.f32 0.0, %v1878
    %1880 = vdwg.mxu0
    %v1881 = vld [vmem:[%s3 + $0x28] sm:$0xff]
    %v1882 = vld [vmem:[%s3 + $0x30] sm:$0xff]
    %1885 = vrot.lane.b32.xlu0 %v1881, 120
    %v1886 = vpop.permute.xlu0 %1885
    %1887 = vrot.lane.b32.xlu0 %v1882, 120
    %v1888 = vpop.permute.xlu0 %1887
    %1890 = vrot.lane.b32.xlu0 %v1877, 64
    %v1891 = vpop.permute.xlu0 %1890
    %v1893 = vsel %vm1072, %v1886, 0
    %v1895 = vsel %vm1072, %v1888, 0
    %1897 = vmatprep.subr.mxu0 0.0
    %1898 = vmatpush1.msra.mxu0 %v1891
    %1899 = vmatprep.subr.mxu0 0.0
    %1900 = vmatpush1.msra.mxu0 0.0
    %1901 = vmatprep.subr.mxu0 0.0
    %1902 = vmatpush1.msra.mxu0 0.0
    %1903 = vmatprep.subr.mxu0 0.0
    %1904 = vmatpush1.msra.mxu0 0.0
    %1905 = vmatprep.subr.mxu0 0.0
    %1906 = vmatpush1.msra.mxu0 0.0
    %1907 = vmatprep.subr.mxu0 0.0
    %1908 = vmatpush1.msra.mxu0 0.0
    %1909 = vmatprep.subr.mxu0 0.0
    %1910 = vmatpush1.msra.mxu0 0.0
    %1911 = vmatprep.subr.mxu0 0.0
    %1912 = vmatpush1.msra.mxu0 0.0
    %1913 = vmatprep.subr.mxu0 0.0
    %1914 = vmatpush1.msra.mxu0 0.0
    %1915 = vmatprep.subr.mxu0 0.0
    %1916 = vmatpush1.msra.mxu0 0.0
    %1917 = vmatprep.subr.mxu0 0.0
    %1918 = vmatpush1.msra.mxu0 0.0
    %1919 = vmatprep.subr.mxu0 0.0
    %1920 = vmatpush1.msra.mxu0 0.0
    %1921 = vmatprep.subr.mxu0 0.0
    %1922 = vmatpush1.msra.mxu0 0.0
    %1923 = vmatprep.subr.mxu0 0.0
    %1924 = vmatpush1.msra.mxu0 0.0
    %1925 = vmatprep.subr.mxu0 0.0
    %1926 = vmatpush1.msra.mxu0 0.0
    %1927 = vmatprep.subr.mxu0 0.0
    %1928 = vmatpush1.msra.mxu0 0.0
    %1929 = vmatprep.subr.mxu0 0.0
    %1930 = vmatpush1.msra.mxu0 0.0
    %1931 = vmatprep.subr.mxu0 0.0
    %1932 = vmatpush1.msra.mxu0 0.0
    %1933 = vmatprep.subr.mxu0 0.0
    %1934 = vmatpush1.msra.mxu0 0.0
    %1935 = vmatprep.subr.mxu0 0.0
    %1936 = vmatpush1.msra.mxu0 0.0
    %1937 = vmatprep.subr.mxu0 0.0
    %1938 = vmatpush1.msra.mxu0 0.0
    %1939 = vmatprep.subr.mxu0 0.0
    %1940 = vmatpush1.msra.mxu0 0.0
    %1941 = vmatprep.subr.mxu0 0.0
    %1942 = vmatpush1.msra.mxu0 0.0
    %1943 = vmatprep.subr.mxu0 0.0
    %1944 = vmatpush1.msra.mxu0 0.0
    %1945 = vmatprep.subr.mxu0 0.0
    %1946 = vmatpush1.msra.mxu0 0.0
    %1947 = vmatprep.subr.mxu0 0.0
    %1948 = vmatpush1.msra.mxu0 0.0
    %1949 = vmatprep.subr.mxu0 0.0
    %1950 = vmatpush1.msra.mxu0 0.0
    %1951 = vmatprep.subr.mxu0 0.0
    %1952 = vmatpush1.msra.mxu0 0.0
    %1953 = vmatprep.subr.mxu0 0.0
    %1954 = vmatpush1.msra.mxu0 0.0
    %1955 = vmatprep.subr.mxu0 0.0
    %1956 = vmatpush1.msra.mxu0 0.0
    %1957 = vmatprep.subr.mxu0 0.0
    %1958 = vmatpush1.msra.mxu0 0.0
    %1959 = vmatprep.subr.mxu0 0.0
    %1960 = vmatpush1.msra.mxu0 0.0
    %1961 = vmatprep.mubr.f32.mxu0 0.0
    %1962 = vmatmul.mubr.f32.gmra.mrb[0].mxu0 %v1893
    %v1963 = vpop.f32.mrb[0].mxu0
    %v1964 = vadd.f32 0.0, %v1963
    %v1965 = vpop.f32.mrb[0].mxu0
    %1966 = vmatprep.mubr.f32.mxu0 0.0
    %1967 = vmatmul.mubr.f32.gmra.mrb[0].mxu0 %v1895
    %v1968 = vpop.f32.mrb[0].mxu0
    %v1969 = vadd.f32 0.0, %v1968
    %v1970 = vpop.f32.mrb[0].mxu0
    %1971 = vdwg.mxu0
    %v1972 = vsel %vm1072, %v1881, 0
    %v1974 = vsel %vm1072, %v1882, 0
    %1976 = vmatprep.subr.mxu0 0.0
    %1977 = vmatpush1.msra.mxu0 %v1877
    %1978 = vmatprep.subr.mxu0 0.0
    %1979 = vmatpush1.msra.mxu0 0.0
    %1980 = vmatprep.subr.mxu0 0.0
    %1981 = vmatpush1.msra.mxu0 0.0
    %1982 = vmatprep.subr.mxu0 0.0
    %1983 = vmatpush1.msra.mxu0 0.0
    %1984 = vmatprep.subr.mxu0 0.0
    %1985 = vmatpush1.msra.mxu0 0.0
    %1986 = vmatprep.subr.mxu0 0.0
    %1987 = vmatpush1.msra.mxu0 0.0
    %1988 = vmatprep.subr.mxu0 0.0
    %1989 = vmatpush1.msra.mxu0 0.0
    %1990 = vmatprep.subr.mxu0 0.0
    %1991 = vmatpush1.msra.mxu0 0.0
    %1992 = vmatprep.subr.mxu0 0.0
    %1993 = vmatpush1.msra.mxu0 0.0
    %1994 = vmatprep.subr.mxu0 0.0
    %1995 = vmatpush1.msra.mxu0 0.0
    %1996 = vmatprep.subr.mxu0 0.0
    %1997 = vmatpush1.msra.mxu0 0.0
    %1998 = vmatprep.subr.mxu0 0.0
    %1999 = vmatpush1.msra.mxu0 0.0
    %2000 = vmatprep.subr.mxu0 0.0
    %2001 = vmatpush1.msra.mxu0 0.0
    %2002 = vmatprep.subr.mxu0 0.0
    %2003 = vmatpush1.msra.mxu0 0.0
    %2004 = vmatprep.subr.mxu0 0.0
    %2005 = vmatpush1.msra.mxu0 0.0
    %2006 = vmatprep.subr.mxu0 0.0
    %2007 = vmatpush1.msra.mxu0 0.0
    %2008 = vmatprep.subr.mxu0 0.0
    %2009 = vmatpush1.msra.mxu0 0.0
    %2010 = vmatprep.subr.mxu0 0.0
    %2011 = vmatpush1.msra.mxu0 0.0
    %2012 = vmatprep.subr.mxu0 0.0
    %2013 = vmatpush1.msra.mxu0 0.0
    %2014 = vmatprep.subr.mxu0 0.0
    %2015 = vmatpush1.msra.mxu0 0.0
    %2016 = vmatprep.subr.mxu0 0.0
    %2017 = vmatpush1.msra.mxu0 0.0
    %2018 = vmatprep.subr.mxu0 0.0
    %2019 = vmatpush1.msra.mxu0 0.0
    %2020 = vmatprep.subr.mxu0 0.0
    %2021 = vmatpush1.msra.mxu0 0.0
    %2022 = vmatprep.subr.mxu0 0.0
    %2023 = vmatpush1.msra.mxu0 0.0
    %2024 = vmatprep.subr.mxu0 0.0
    %2025 = vmatpush1.msra.mxu0 0.0
    %2026 = vmatprep.subr.mxu0 0.0
    %2027 = vmatpush1.msra.mxu0 0.0
    %2028 = vmatprep.subr.mxu0 0.0
    %2029 = vmatpush1.msra.mxu0 0.0
    %2030 = vmatprep.subr.mxu0 0.0
    %2031 = vmatpush1.msra.mxu0 0.0
    %2032 = vmatprep.subr.mxu0 0.0
    %2033 = vmatpush1.msra.mxu0 0.0
    %2034 = vmatprep.subr.mxu0 0.0
    %2035 = vmatpush1.msra.mxu0 0.0
    %2036 = vmatprep.subr.mxu0 0.0
    %2037 = vmatpush1.msra.mxu0 0.0
    %2038 = vmatprep.subr.mxu0 0.0
    %2039 = vmatpush1.msra.mxu0 0.0
    %2040 = vmatprep.mubr.f32.mxu0 0.0
    %2041 = vmatmul.mubr.f32.gmra.mrb[0].mxu0 %v1972
    %v2042 = vpop.f32.mrb[0].mxu0
    %v2043 = vadd.f32 %v1964, %v2042
    %v2044 = vpop.f32.mrb[0].mxu0
    %2045 = vmatprep.mubr.f32.mxu0 0.0
    %2046 = vmatmul.mubr.f32.gmra.mrb[0].mxu0 %v1974
    %v2047 = vpop.f32.mrb[0].mxu0
    %v2048 = vadd.f32 %v1969, %v2047
    %v2049 = vpop.f32.mrb[0].mxu0
    %2050 = vdwg.mxu0
    %2051 = vrot.lane.b32.xlu0 %v1881, 112
    %v2052 = vpop.permute.xlu0 %2051
    %2053 = vrot.lane.b32.xlu0 %v1882, 112
    %v2054 = vpop.permute.xlu0 %2053
    %v2055 = vsel %vm1072, %v2052, 0
    %v2057 = vsel %vm1072, %v2054, 0
    %2059 = vmatprep.subr.mxu0 0.0
    %2060 = vmatpush1.msra.mxu0 %v1879
    %2061 = vmatprep.subr.mxu0 0.0
    %2062 = vmatpush1.msra.mxu0 0.0
    %2063 = vmatprep.subr.mxu0 0.0
    %2064 = vmatpush1.msra.mxu0 0.0
    %2065 = vmatprep.subr.mxu0 0.0
    %2066 = vmatpush1.msra.mxu0 0.0
    %2067 = vmatprep.subr.mxu0 0.0
    %2068 = vmatpush1.msra.mxu0 0.0
    %2069 = vmatprep.subr.mxu0 0.0
    %2070 = vmatpush1.msra.mxu0 0.0
    %2071 = vmatprep.subr.mxu0 0.0
    %2072 = vmatpush1.msra.mxu0 0.0
    %2073 = vmatprep.subr.mxu0 0.0
    %2074 = vmatpush1.msra.mxu0 0.0
    %2075 = vmatprep.subr.mxu0 0.0
    %2076 = vmatpush1.msra.mxu0 0.0
    %2077 = vmatprep.subr.mxu0 0.0
    %2078 = vmatpush1.msra.mxu0 0.0
    %2079 = vmatprep.subr.mxu0 0.0
    %2080 = vmatpush1.msra.mxu0 0.0
    %2081 = vmatprep.subr.mxu0 0.0
    %2082 = vmatpush1.msra.mxu0 0.0
    %2083 = vmatprep.subr.mxu0 0.0
    %2084 = vmatpush1.msra.mxu0 0.0
    %2085 = vmatprep.subr.mxu0 0.0
    %2086 = vmatpush1.msra.mxu0 0.0
    %2087 = vmatprep.subr.mxu0 0.0
    %2088 = vmatpush1.msra.mxu0 0.0
    %2089 = vmatprep.subr.mxu0 0.0
    %2090 = vmatpush1.msra.mxu0 0.0
    %2091 = vmatprep.subr.mxu0 0.0
    %2092 = vmatpush1.msra.mxu0 0.0
    %2093 = vmatprep.subr.mxu0 0.0
    %2094 = vmatpush1.msra.mxu0 0.0
    %2095 = vmatprep.subr.mxu0 0.0
    %2096 = vmatpush1.msra.mxu0 0.0
    %2097 = vmatprep.subr.mxu0 0.0
    %2098 = vmatpush1.msra.mxu0 0.0
    %2099 = vmatprep.subr.mxu0 0.0
    %2100 = vmatpush1.msra.mxu0 0.0
    %2101 = vmatprep.subr.mxu0 0.0
    %2102 = vmatpush1.msra.mxu0 0.0
    %2103 = vmatprep.subr.mxu0 0.0
    %2104 = vmatpush1.msra.mxu0 0.0
    %2105 = vmatprep.subr.mxu0 0.0
    %2106 = vmatpush1.msra.mxu0 0.0
    %2107 = vmatprep.subr.mxu0 0.0
    %2108 = vmatpush1.msra.mxu0 0.0
    %2109 = vmatprep.subr.mxu0 0.0
    %2110 = vmatpush1.msra.mxu0 0.0
    %2111 = vmatprep.subr.mxu0 0.0
    %2112 = vmatpush1.msra.mxu0 0.0
    %2113 = vmatprep.subr.mxu0 0.0
    %2114 = vmatpush1.msra.mxu0 0.0
    %2115 = vmatprep.subr.mxu0 0.0
    %2116 = vmatpush1.msra.mxu0 0.0
    %2117 = vmatprep.subr.mxu0 0.0
    %2118 = vmatpush1.msra.mxu0 0.0
    %2119 = vmatprep.subr.mxu0 0.0
    %2120 = vmatpush1.msra.mxu0 0.0
    %2121 = vmatprep.subr.mxu0 0.0
    %2122 = vmatpush1.msra.mxu0 0.0
    %2123 = vmatprep.mubr.f32.mxu0 0.0
    %2124 = vmatmul.mubr.f32.gmra.mrb[0].mxu0 %v2055
    %v2125 = vpop.f32.mrb[0].mxu0
    %v2126 = vadd.f32 0.0, %v2125
    %v2127 = vpop.f32.mrb[0].mxu0
    %2128 = vmatprep.mubr.f32.mxu0 0.0
    %2129 = vmatmul.mubr.f32.gmra.mrb[0].mxu0 %v2057
    %v2130 = vpop.f32.mrb[0].mxu0
    %v2131 = vadd.f32 0.0, %v2130
    %v2132 = vpop.f32.mrb[0].mxu0
    %2133 = vdwg.mxu0
    %v2134 = vadd.f32 %v2043, %v2126
    %v2135 = vadd.f32 %v2048, %v2131
    %2136 = vrot.lane.b32.xlu0 %v1881, 104
    %v2137 = vpop.permute.xlu0 %2136
    %2138 = vrot.lane.b32.xlu0 %v1882, 104
    %v2139 = vpop.permute.xlu0 %2138
    %2141 = vrot.lane.b32.xlu0 %v1879, 64
    %v2142 = vpop.permute.xlu0 %2141
    %v2144 = vsel %vm1072, %v2137, 0
    %v2146 = vsel %vm1072, %v2139, 0
    %2148 = vmatprep.subr.mxu0 0.0
    %2149 = vmatpush1.msra.mxu0 %v2142
    %2150 = vmatprep.subr.mxu0 0.0
    %2151 = vmatpush1.msra.mxu0 0.0
    %2152 = vmatprep.subr.mxu0 0.0
    %2153 = vmatpush1.msra.mxu0 0.0
    %2154 = vmatprep.subr.mxu0 0.0
    %2155 = vmatpush1.msra.mxu0 0.0
    %2156 = vmatprep.subr.mxu0 0.0
    %2157 = vmatpush1.msra.mxu0 0.0
    %2158 = vmatprep.subr.mxu0 0.0
    %2159 = vmatpush1.msra.mxu0 0.0
    %2160 = vmatprep.subr.mxu0 0.0
    %2161 = vmatpush1.msra.mxu0 0.0
    %2162 = vmatprep.subr.mxu0 0.0
    %2163 = vmatpush1.msra.mxu0 0.0
    %2164 = vmatprep.subr.mxu0 0.0
    %2165 = vmatpush1.msra.mxu0 0.0
    %2166 = vmatprep.subr.mxu0 0.0
    %2167 = vmatpush1.msra.mxu0 0.0
    %2168 = vmatprep.subr.mxu0 0.0
    %2169 = vmatpush1.msra.mxu0 0.0
    %2170 = vmatprep.subr.mxu0 0.0
    %2171 = vmatpush1.msra.mxu0 0.0
    %2172 = vmatprep.subr.mxu0 0.0
    %2173 = vmatpush1.msra.mxu0 0.0
    %2174 = vmatprep.subr.mxu0 0.0
    %2175 = vmatpush1.msra.mxu0 0.0
    %2176 = vmatprep.subr.mxu0 0.0
    %2177 = vmatpush1.msra.mxu0 0.0
    %2178 = vmatprep.subr.mxu0 0.0
    %2179 = vmatpush1.msra.mxu0 0.0
    %2180 = vmatprep.subr.mxu0 0.0
    %2181 = vmatpush1.msra.mxu0 0.0
    %2182 = vmatprep.subr.mxu0 0.0
    %2183 = vmatpush1.msra.mxu0 0.0
    %2184 = vmatprep.subr.mxu0 0.0
    %2185 = vmatpush1.msra.mxu0 0.0
    %2186 = vmatprep.subr.mxu0 0.0
    %2187 = vmatpush1.msra.mxu0 0.0
    %2188 = vmatprep.subr.mxu0 0.0
    %2189 = vmatpush1.msra.mxu0 0.0
    %2190 = vmatprep.subr.mxu0 0.0
    %2191 = vmatpush1.msra.mxu0 0.0
    %2192 = vmatprep.subr.mxu0 0.0
    %2193 = vmatpush1.msra.mxu0 0.0
    %2194 = vmatprep.subr.mxu0 0.0
    %2195 = vmatpush1.msra.mxu0 0.0
    %2196 = vmatprep.subr.mxu0 0.0
    %2197 = vmatpush1.msra.mxu0 0.0
    %2198 = vmatprep.subr.mxu0 0.0
    %2199 = vmatpush1.msra.mxu0 0.0
    %2200 = vmatprep.subr.mxu0 0.0
    %2201 = vmatpush1.msra.mxu0 0.0
    %2202 = vmatprep.subr.mxu0 0.0
    %2203 = vmatpush1.msra.mxu0 0.0
    %2204 = vmatprep.subr.mxu0 0.0
    %2205 = vmatpush1.msra.mxu0 0.0
    %2206 = vmatprep.subr.mxu0 0.0
    %2207 = vmatpush1.msra.mxu0 0.0
    %2208 = vmatprep.subr.mxu0 0.0
    %2209 = vmatpush1.msra.mxu0 0.0
    %2210 = vmatprep.subr.mxu0 0.0
    %2211 = vmatpush1.msra.mxu0 0.0
    %2212 = vmatprep.mubr.f32.mxu0 0.0
    %2213 = vmatmul.mubr.f32.gmra.mrb[0].mxu0 %v2144
    %v2214 = vpop.f32.mrb[0].mxu0
    %v2215 = vadd.f32 0.0, %v2214
    %v2216 = vpop.f32.mrb[0].mxu0
    %2217 = vmatprep.mubr.f32.mxu0 0.0
    %2218 = vmatmul.mubr.f32.gmra.mrb[0].mxu0 %v2146
    %v2219 = vpop.f32.mrb[0].mxu0
    %v2220 = vadd.f32 0.0, %v2219
    %v2221 = vpop.f32.mrb[0].mxu0
    %2222 = vdwg.mxu0
    %v2223 = vadd.f32 %v2134, %v2215
    %v2224 = vadd.f32 %v2135, %v2220
    %v2225 = vld [vmem:[%s4 + $0x5] sm:$0x1]
    %v2226 = vlaneseq
    %v2227 = vshrl.u32 %v2226, 7
    %v2228 = vsub.s32 0, %v2227
    %v2229 = vrot.slane %v2225, %v2228
    %v2230 = vadd.f32 %v2223, %v2229
    %v2231 = vadd.f32 %v2224, %v2229
    %v2232 = vld [vmem:[%s4 + $0x6] sm:$0x1]
    %v2233 = vld [vmem:[%s4 + $0x7] sm:$0x1]
    %v2234 = vsel %vm64, %v2230, 0.0
    %v2235 = vsel %vm64, %v2231, 0.0
    %v2236 = vadd.f32 %v2234, %v2235
    %v2237 = vrot.slane %v2236, 4
    %v2238 = vadd.f32 %v2236, %v2237
    %v2239 = vrot.slane %v2238, 2
    %v2240 = vadd.f32 %v2238, %v2239
    %v2241 = vrot.slane %v2240, 1
    %v2242 = vadd.f32 %v2240, %v2241
    %v2244 = vsel %vm64, %v2242, 0
    %2246 = vmatprep.subr.mxu0 0.0
    %2247 = vmatpush1.msra.mxu0 %v36
    %2248 = vmatprep.subr.mxu0 0.0
    %2249 = vmatpush1.msra.mxu0 %v37
    %2250 = vmatprep.subr.mxu0 0.0
    %2251 = vmatpush1.msra.mxu0 %v38
    %2252 = vmatprep.subr.mxu0 0.0
    %2253 = vmatpush1.msra.mxu0 %v39
    %2254 = vmatprep.subr.mxu0 0.0
    %2255 = vmatpush1.msra.mxu0 %v40
    %2256 = vmatprep.subr.mxu0 0.0
    %2257 = vmatpush1.msra.mxu0 %v41
    %2258 = vmatprep.subr.mxu0 0.0
    %2259 = vmatpush1.msra.mxu0 %v42
    %2260 = vmatprep.subr.mxu0 0.0
    %2261 = vmatpush1.msra.mxu0 %v43
    %2262 = vmatprep.subr.mxu0 0.0
    %2263 = vmatpush1.msra.mxu0 0.0
    %2264 = vmatprep.subr.mxu0 0.0
    %2265 = vmatpush1.msra.mxu0 0.0
    %2266 = vmatprep.subr.mxu0 0.0
    %2267 = vmatpush1.msra.mxu0 0.0
    %2268 = vmatprep.subr.mxu0 0.0
    %2269 = vmatpush1.msra.mxu0 0.0
    %2270 = vmatprep.subr.mxu0 0.0
    %2271 = vmatpush1.msra.mxu0 0.0
    %2272 = vmatprep.subr.mxu0 0.0
    %2273 = vmatpush1.msra.mxu0 0.0
    %2274 = vmatprep.subr.mxu0 0.0
    %2275 = vmatpush1.msra.mxu0 0.0
    %2276 = vmatprep.subr.mxu0 0.0
    %2277 = vmatpush1.msra.mxu0 0.0
    %2278 = vmatprep.subr.mxu0 0.0
    %2279 = vmatpush1.msra.mxu0 0.0
    %2280 = vmatprep.subr.mxu0 0.0
    %2281 = vmatpush1.msra.mxu0 0.0
    %2282 = vmatprep.subr.mxu0 0.0
    %2283 = vmatpush1.msra.mxu0 0.0
    %2284 = vmatprep.subr.mxu0 0.0
    %2285 = vmatpush1.msra.mxu0 0.0
    %2286 = vmatprep.subr.mxu0 0.0
    %2287 = vmatpush1.msra.mxu0 0.0
    %2288 = vmatprep.subr.mxu0 0.0
    %2289 = vmatpush1.msra.mxu0 0.0
    %2290 = vmatprep.subr.mxu0 0.0
    %2291 = vmatpush1.msra.mxu0 0.0
    %2292 = vmatprep.subr.mxu0 0.0
    %2293 = vmatpush1.msra.mxu0 0.0
    %2294 = vmatprep.subr.mxu0 0.0
    %2295 = vmatpush1.msra.mxu0 0.0
    %2296 = vmatprep.subr.mxu0 0.0
    %2297 = vmatpush1.msra.mxu0 0.0
    %2298 = vmatprep.subr.mxu0 0.0
    %2299 = vmatpush1.msra.mxu0 0.0
    %2300 = vmatprep.subr.mxu0 0.0
    %2301 = vmatpush1.msra.mxu0 0.0
    %2302 = vmatprep.subr.mxu0 0.0
    %2303 = vmatpush1.msra.mxu0 0.0
    %2304 = vmatprep.subr.mxu0 0.0
    %2305 = vmatpush1.msra.mxu0 0.0
    %2306 = vmatprep.subr.mxu0 0.0
    %2307 = vmatpush1.msra.mxu0 0.0
    %2308 = vmatprep.subr.mxu0 0.0
    %2309 = vmatpush1.msra.mxu0 0.0
    %2310 = vmatprep.mubr.f32.mxu0 0.0
    %2311 = vmatmul.mubr.f32.gmra.mrb[0].mxu0 %v2244
    %v2312 = vpop.f32.mrb[0].mxu0
    %v2313 = vadd.f32 0.0, %v2312
    %v2314 = vpop.f32.mrb[0].mxu0
    %2315 = vdwg.mxu0
    %v2316 = vlaneseq
    %v2317 = vshrl.u32 %v2316, 7
    %v2318 = vsub.s32 0, %v2317
    %v2319 = vrot.slane %v2313, %v2318
    %v2320 = vsub.f32 %v2230, %v2319
    %v2321 = vsub.f32 %v2231, %v2319
    %v2322 = vmul.f32 %v2320, %v2320
    %v2323 = vmul.f32 %v2321, %v2321
    %v2324 = vsel %vm64, %v2322, 0.0
    %v2325 = vsel %vm64, %v2323, 0.0
    %v2326 = vadd.f32 %v2324, %v2325
    %v2327 = vrot.slane %v2326, 4
    %v2328 = vadd.f32 %v2326, %v2327
    %v2329 = vrot.slane %v2328, 2
    %v2330 = vadd.f32 %v2328, %v2329
    %v2331 = vrot.slane %v2330, 1
    %v2332 = vadd.f32 %v2330, %v2331
    %v2334 = vsel %vm64, %v2332, 0
    %2336 = vmatprep.subr.mxu0 0.0
    %2337 = vmatpush1.msra.mxu0 %v36
    %2338 = vmatprep.subr.mxu0 0.0
    %2339 = vmatpush1.msra.mxu0 %v37
    %2340 = vmatprep.subr.mxu0 0.0
    %2341 = vmatpush1.msra.mxu0 %v38
    %2342 = vmatprep.subr.mxu0 0.0
    %2343 = vmatpush1.msra.mxu0 %v39
    %2344 = vmatprep.subr.mxu0 0.0
    %2345 = vmatpush1.msra.mxu0 %v40
    %2346 = vmatprep.subr.mxu0 0.0
    %2347 = vmatpush1.msra.mxu0 %v41
    %2348 = vmatprep.subr.mxu0 0.0
    %2349 = vmatpush1.msra.mxu0 %v42
    %2350 = vmatprep.subr.mxu0 0.0
    %2351 = vmatpush1.msra.mxu0 %v43
    %2352 = vmatprep.subr.mxu0 0.0
    %2353 = vmatpush1.msra.mxu0 0.0
    %2354 = vmatprep.subr.mxu0 0.0
    %2355 = vmatpush1.msra.mxu0 0.0
    %2356 = vmatprep.subr.mxu0 0.0
    %2357 = vmatpush1.msra.mxu0 0.0
    %2358 = vmatprep.subr.mxu0 0.0
    %2359 = vmatpush1.msra.mxu0 0.0
    %2360 = vmatprep.subr.mxu0 0.0
    %2361 = vmatpush1.msra.mxu0 0.0
    %2362 = vmatprep.subr.mxu0 0.0
    %2363 = vmatpush1.msra.mxu0 0.0
    %2364 = vmatprep.subr.mxu0 0.0
    %2365 = vmatpush1.msra.mxu0 0.0
    %2366 = vmatprep.subr.mxu0 0.0
    %2367 = vmatpush1.msra.mxu0 0.0
    %2368 = vmatprep.subr.mxu0 0.0
    %2369 = vmatpush1.msra.mxu0 0.0
    %2370 = vmatprep.subr.mxu0 0.0
    %2371 = vmatpush1.msra.mxu0 0.0
    %2372 = vmatprep.subr.mxu0 0.0
    %2373 = vmatpush1.msra.mxu0 0.0
    %2374 = vmatprep.subr.mxu0 0.0
    %2375 = vmatpush1.msra.mxu0 0.0
    %2376 = vmatprep.subr.mxu0 0.0
    %2377 = vmatpush1.msra.mxu0 0.0
    %2378 = vmatprep.subr.mxu0 0.0
    %2379 = vmatpush1.msra.mxu0 0.0
    %2380 = vmatprep.subr.mxu0 0.0
    %2381 = vmatpush1.msra.mxu0 0.0
    %2382 = vmatprep.subr.mxu0 0.0
    %2383 = vmatpush1.msra.mxu0 0.0
    %2384 = vmatprep.subr.mxu0 0.0
    %2385 = vmatpush1.msra.mxu0 0.0
    %2386 = vmatprep.subr.mxu0 0.0
    %2387 = vmatpush1.msra.mxu0 0.0
    %2388 = vmatprep.subr.mxu0 0.0
    %2389 = vmatpush1.msra.mxu0 0.0
    %2390 = vmatprep.subr.mxu0 0.0
    %2391 = vmatpush1.msra.mxu0 0.0
    %2392 = vmatprep.subr.mxu0 0.0
    %2393 = vmatpush1.msra.mxu0 0.0
    %2394 = vmatprep.subr.mxu0 0.0
    %2395 = vmatpush1.msra.mxu0 0.0
    %2396 = vmatprep.subr.mxu0 0.0
    %2397 = vmatpush1.msra.mxu0 0.0
    %2398 = vmatprep.subr.mxu0 0.0
    %2399 = vmatpush1.msra.mxu0 0.0
    %2400 = vmatprep.mubr.f32.mxu0 0.0
    %2401 = vmatmul.mubr.f32.gmra.mrb[0].mxu0 %v2334
    %v2402 = vpop.f32.mrb[0].mxu0
    %v2403 = vadd.f32 1e-05, %v2402
    %v2404 = vpop.f32.mrb[0].mxu0
    %2405 = vdwg.mxu0
    %v2406 = vrsqrt.pop %v2403
    %v2407 = vlaneseq
    %v2408 = vshrl.u32 %v2407, 7
    %v2409 = vsub.s32 0, %v2408
    %v2410 = vrot.slane %v2406, %v2409
    %v2411 = vmul.f32 %v2320, %v2410
    %v2412 = vmul.f32 %v2321, %v2410
    %v2413 = vlaneseq
    %v2414 = vshrl.u32 %v2413, 7
    %v2415 = vsub.s32 0, %v2414
    %v2416 = vrot.slane %v2232, %v2415
    %v2417 = vmul.f32 %v2411, %v2416
    %v2418 = vmul.f32 %v2412, %v2416
    %v2419 = vlaneseq
    %v2420 = vshrl.u32 %v2419, 7
    %v2421 = vsub.s32 0, %v2420
    %v2422 = vrot.slane %v2233, %v2421
    %v2423 = vadd.f32 %v2417, %v2422
    %v2424 = vadd.f32 %v2418, %v2422
    %v2425 = vmax.f32 %v2423, 0.0
    %v2426 = vmax.f32 %v2424, 0.0
    %v2427 = vld [vmem:[#allocation2 + $0x280] sm:$0xff]
    %v2428 = vld [vmem:[#allocation2 + $0x288] sm:$0xff]
    %v2429 = vld [vmem:[#allocation2 + $0x290] sm:$0xff]
    %v2430 = vld [vmem:[#allocation2 + $0x298] sm:$0xff]
    %v2431 = vld [vmem:[#allocation2 + $0x2a0] sm:$0xff]
    %v2432 = vld [vmem:[#allocation2 + $0x2a8] sm:$0xff]
    %v2433 = vld [vmem:[#allocation2 + $0x2b0] sm:$0xff]
    %v2434 = vld [vmem:[#allocation2 + $0x2b8] sm:$0xff]
    %v2435 = vld [vmem:[#allocation2 + $0x2c0] sm:$0xff]
    %v2436 = vld [vmem:[#allocation2 + $0x2c8] sm:$0xff]
    %v2437 = vld [vmem:[#allocation2 + $0x2d0] sm:$0xff]
    %v2438 = vld [vmem:[#allocation2 + $0x2d8] sm:$0xff]
    %v2439 = vld [vmem:[#allocation2 + $0x2e0] sm:$0xff]
    %v2440 = vld [vmem:[#allocation2 + $0x2e8] sm:$0xff]
    %v2441 = vld [vmem:[#allocation2 + $0x2f0] sm:$0xff]
    %v2442 = vld [vmem:[#allocation2 + $0x2f8] sm:$0xff]
    %v2444 = vsel %vm64, %v2425, 0
    %v2447 = vsel %vm64, %v2426, 0
    %2449 = vmatprep.subr.mxu0 %v2428
    %2450 = vmatpush1.msra.mxu0 %v2427
    %2451 = vmatprep.subr.mxu0 %v2430
    %2452 = vmatpush1.msra.mxu0 %v2429
    %2453 = vmatprep.subr.mxu0 %v2432
    %2454 = vmatpush1.msra.mxu0 %v2431
    %2455 = vmatprep.subr.mxu0 %v2434
    %2456 = vmatpush1.msra.mxu0 %v2433
    %2457 = vmatprep.subr.mxu0 %v2436
    %2458 = vmatpush1.msra.mxu0 %v2435
    %2459 = vmatprep.subr.mxu0 %v2438
    %2460 = vmatpush1.msra.mxu0 %v2437
    %2461 = vmatprep.subr.mxu0 %v2440
    %2462 = vmatpush1.msra.mxu0 %v2439
    %2463 = vmatprep.subr.mxu0 %v2442
    %2464 = vmatpush1.msra.mxu0 %v2441
    %2465 = vmatprep.subr.mxu0 0.0
    %2466 = vmatpush1.msra.mxu0 0.0
    %2467 = vmatprep.subr.mxu0 0.0
    %2468 = vmatpush1.msra.mxu0 0.0
    %2469 = vmatprep.subr.mxu0 0.0
    %2470 = vmatpush1.msra.mxu0 0.0
    %2471 = vmatprep.subr.mxu0 0.0
    %2472 = vmatpush1.msra.mxu0 0.0
    %2473 = vmatprep.subr.mxu0 0.0
    %2474 = vmatpush1.msra.mxu0 0.0
    %2475 = vmatprep.subr.mxu0 0.0
    %2476 = vmatpush1.msra.mxu0 0.0
    %2477 = vmatprep.subr.mxu0 0.0
    %2478 = vmatpush1.msra.mxu0 0.0
    %2479 = vmatprep.subr.mxu0 0.0
    %2480 = vmatpush1.msra.mxu0 0.0
    %2481 = vmatprep.subr.mxu0 0.0
    %2482 = vmatpush1.msra.mxu0 0.0
    %2483 = vmatprep.subr.mxu0 0.0
    %2484 = vmatpush1.msra.mxu0 0.0
    %2485 = vmatprep.subr.mxu0 0.0
    %2486 = vmatpush1.msra.mxu0 0.0
    %2487 = vmatprep.subr.mxu0 0.0
    %2488 = vmatpush1.msra.mxu0 0.0
    %2489 = vmatprep.subr.mxu0 0.0
    %2490 = vmatpush1.msra.mxu0 0.0
    %2491 = vmatprep.subr.mxu0 0.0
    %2492 = vmatpush1.msra.mxu0 0.0
    %2493 = vmatprep.subr.mxu0 0.0
    %2494 = vmatpush1.msra.mxu0 0.0
    %2495 = vmatprep.subr.mxu0 0.0
    %2496 = vmatpush1.msra.mxu0 0.0
    %2497 = vmatprep.subr.mxu0 0.0
    %2498 = vmatpush1.msra.mxu0 0.0
    %2499 = vmatprep.subr.mxu0 0.0
    %2500 = vmatpush1.msra.mxu0 0.0
    %2501 = vmatprep.subr.mxu0 0.0
    %2502 = vmatpush1.msra.mxu0 0.0
    %2503 = vmatprep.subr.mxu0 0.0
    %2504 = vmatpush1.msra.mxu0 0.0
    %2505 = vmatprep.subr.mxu0 0.0
    %2506 = vmatpush1.msra.mxu0 0.0
    %2507 = vmatprep.subr.mxu0 0.0
    %2508 = vmatpush1.msra.mxu0 0.0
    %2509 = vmatprep.subr.mxu0 0.0
    %2510 = vmatpush1.msra.mxu0 0.0
    %2511 = vmatprep.subr.mxu0 0.0
    %2512 = vmatpush1.msra.mxu0 0.0
    %2513 = vmatprep.mubr.f32.mxu0 0.0
    %2514 = vmatmul.mubr.f32.gmra.mrb[0].mxu0 %v2444
    %v2515 = vpop.f32.mrb[0].mxu0
    %v2516 = vadd.f32 0.0, %v2515
    %v2517 = vpop.f32.mrb[0].mxu0
    %v2518 = vadd.f32 0.0, %v2517
    %2519 = vmatprep.mubr.f32.mxu0 0.0
    %2520 = vmatmul.mubr.f32.gmra.mrb[0].mxu0 %v2447
    %v2521 = vpop.f32.mrb[0].mxu0
    %v2522 = vadd.f32 0.0, %v2521
    %v2523 = vpop.f32.mrb[0].mxu0
    %v2524 = vadd.f32 0.0, %v2523
    %2525 = vdwg.mxu0
    %v2526 = vld [vmem:[%s3 + $0x38] sm:$0xff]
    %v2527 = vld [vmem:[%s3 + $0x40] sm:$0xff]
    %v2528 = vld [vmem:[%s3 + $0x48] sm:$0xff]
    %v2529 = vld [vmem:[%s3 + $0x50] sm:$0xff]
    %2534 = vrot.lane.b32.xlu0 %v2526, 112
    %v2535 = vpop.permute.xlu0 %2534
    %2536 = vrot.lane.b32.xlu0 %v2527, 112
    %v2537 = vpop.permute.xlu0 %2536
    %2538 = vrot.lane.b32.xlu0 %v2528, 112
    %v2539 = vpop.permute.xlu0 %2538
    %2540 = vrot.lane.b32.xlu0 %v2529, 112
    %v2541 = vpop.permute.xlu0 %2540
    %2544 = vrot.lane.b32.xlu0 %v2516, 64
    %v2545 = vpop.permute.xlu0 %2544
    %2546 = vrot.lane.b32.xlu0 %v2522, 64
    %v2547 = vpop.permute.xlu0 %2546
    %v2550 = vsel %vm747, %v2535, 0
    %v2552 = vsel %vm747, %v2537, 0
    %v2554 = vsel %vm747, %v2539, 0
    %v2556 = vsel %vm747, %v2541, 0
    %2558 = vmatprep.subr.mxu0 0.0
    %2559 = vmatpush1.msra.mxu0 %v2545
    %2560 = vmatprep.subr.mxu0 0.0
    %2561 = vmatpush1.msra.mxu0 %v2547
    %2562 = vmatprep.subr.mxu0 0.0
    %2563 = vmatpush1.msra.mxu0 0.0
    %2564 = vmatprep.subr.mxu0 0.0
    %2565 = vmatpush1.msra.mxu0 0.0
    %2566 = vmatprep.subr.mxu0 0.0
    %2567 = vmatpush1.msra.mxu0 0.0
    %2568 = vmatprep.subr.mxu0 0.0
    %2569 = vmatpush1.msra.mxu0 0.0
    %2570 = vmatprep.subr.mxu0 0.0
    %2571 = vmatpush1.msra.mxu0 0.0
    %2572 = vmatprep.subr.mxu0 0.0
    %2573 = vmatpush1.msra.mxu0 0.0
    %2574 = vmatprep.subr.mxu0 0.0
    %2575 = vmatpush1.msra.mxu0 0.0
    %2576 = vmatprep.subr.mxu0 0.0
    %2577 = vmatpush1.msra.mxu0 0.0
    %2578 = vmatprep.subr.mxu0 0.0
    %2579 = vmatpush1.msra.mxu0 0.0
    %2580 = vmatprep.subr.mxu0 0.0
    %2581 = vmatpush1.msra.mxu0 0.0
    %2582 = vmatprep.subr.mxu0 0.0
    %2583 = vmatpush1.msra.mxu0 0.0
    %2584 = vmatprep.subr.mxu0 0.0
    %2585 = vmatpush1.msra.mxu0 0.0
    %2586 = vmatprep.subr.mxu0 0.0
    %2587 = vmatpush1.msra.mxu0 0.0
    %2588 = vmatprep.subr.mxu0 0.0
    %2589 = vmatpush1.msra.mxu0 0.0
    %2590 = vmatprep.subr.mxu0 0.0
    %2591 = vmatpush1.msra.mxu0 0.0
    %2592 = vmatprep.subr.mxu0 0.0
    %2593 = vmatpush1.msra.mxu0 0.0
    %2594 = vmatprep.subr.mxu0 0.0
    %2595 = vmatpush1.msra.mxu0 0.0
    %2596 = vmatprep.subr.mxu0 0.0
    %2597 = vmatpush1.msra.mxu0 0.0
    %2598 = vmatprep.subr.mxu0 0.0
    %2599 = vmatpush1.msra.mxu0 0.0
    %2600 = vmatprep.subr.mxu0 0.0
    %2601 = vmatpush1.msra.mxu0 0.0
    %2602 = vmatprep.subr.mxu0 0.0
    %2603 = vmatpush1.msra.mxu0 0.0
    %2604 = vmatprep.subr.mxu0 0.0
    %2605 = vmatpush1.msra.mxu0 0.0
    %2606 = vmatprep.subr.mxu0 0.0
    %2607 = vmatpush1.msra.mxu0 0.0
    %2608 = vmatprep.subr.mxu0 0.0
    %2609 = vmatpush1.msra.mxu0 0.0
    %2610 = vmatprep.subr.mxu0 0.0
    %2611 = vmatpush1.msra.mxu0 0.0
    %2612 = vmatprep.subr.mxu0 0.0
    %2613 = vmatpush1.msra.mxu0 0.0
    %2614 = vmatprep.subr.mxu0 0.0
    %2615 = vmatpush1.msra.mxu0 0.0
    %2616 = vmatprep.subr.mxu0 0.0
    %2617 = vmatpush1.msra.mxu0 0.0
    %2618 = vmatprep.subr.mxu0 0.0
    %2619 = vmatpush1.msra.mxu0 0.0
    %2620 = vmatprep.subr.mxu0 0.0
    %2621 = vmatpush1.msra.mxu0 0.0
    %2622 = vmatprep.mubr.f32.mxu0 0.0
    %2623 = vmatmul.mubr.f32.gmra.mrb[0].mxu0 %v2550
    %v2624 = vpop.f32.mrb[0].mxu0
    %v2625 = vadd.f32 0.0, %v2624
    %v2626 = vpop.f32.mrb[0].mxu0
    %2627 = vmatprep.mubr.f32.mxu0 0.0
    %2628 = vmatmul.mubr.f32.gmra.mrb[0].mxu0 %v2552
    %v2629 = vpop.f32.mrb[0].mxu0
    %v2630 = vadd.f32 0.0, %v2629
    %v2631 = vpop.f32.mrb[0].mxu0
    %2632 = vmatprep.mubr.f32.mxu0 0.0
    %2633 = vmatmul.mubr.f32.gmra.mrb[0].mxu0 %v2554
    %v2634 = vpop.f32.mrb[0].mxu0
    %v2635 = vadd.f32 0.0, %v2634
    %v2636 = vpop.f32.mrb[0].mxu0
    %2637 = vmatprep.mubr.f32.mxu0 0.0
    %2638 = vmatmul.mubr.f32.gmra.mrb[0].mxu0 %v2556
    %v2639 = vpop.f32.mrb[0].mxu0
    %v2640 = vadd.f32 0.0, %v2639
    %v2641 = vpop.f32.mrb[0].mxu0
    %2642 = vdwg.mxu0
    %v2643 = vsel %vm747, %v2526, 0
    %v2645 = vsel %vm747, %v2527, 0
    %v2647 = vsel %vm747, %v2528, 0
    %v2649 = vsel %vm747, %v2529, 0
    %2651 = vmatprep.subr.mxu0 0.0
    %2652 = vmatpush1.msra.mxu0 %v2516
    %2653 = vmatprep.subr.mxu0 0.0
    %2654 = vmatpush1.msra.mxu0 %v2522
    %2655 = vmatprep.subr.mxu0 0.0
    %2656 = vmatpush1.msra.mxu0 0.0
    %2657 = vmatprep.subr.mxu0 0.0
    %2658 = vmatpush1.msra.mxu0 0.0
    %2659 = vmatprep.subr.mxu0 0.0
    %2660 = vmatpush1.msra.mxu0 0.0
    %2661 = vmatprep.subr.mxu0 0.0
    %2662 = vmatpush1.msra.mxu0 0.0
    %2663 = vmatprep.subr.mxu0 0.0
    %2664 = vmatpush1.msra.mxu0 0.0
    %2665 = vmatprep.subr.mxu0 0.0
    %2666 = vmatpush1.msra.mxu0 0.0
    %2667 = vmatprep.subr.mxu0 0.0
    %2668 = vmatpush1.msra.mxu0 0.0
    %2669 = vmatprep.subr.mxu0 0.0
    %2670 = vmatpush1.msra.mxu0 0.0
    %2671 = vmatprep.subr.mxu0 0.0
    %2672 = vmatpush1.msra.mxu0 0.0
    %2673 = vmatprep.subr.mxu0 0.0
    %2674 = vmatpush1.msra.mxu0 0.0
    %2675 = vmatprep.subr.mxu0 0.0
    %2676 = vmatpush1.msra.mxu0 0.0
    %2677 = vmatprep.subr.mxu0 0.0
    %2678 = vmatpush1.msra.mxu0 0.0
    %2679 = vmatprep.subr.mxu0 0.0
    %2680 = vmatpush1.msra.mxu0 0.0
    %2681 = vmatprep.subr.mxu0 0.0
    %2682 = vmatpush1.msra.mxu0 0.0
    %2683 = vmatprep.subr.mxu0 0.0
    %2684 = vmatpush1.msra.mxu0 0.0
    %2685 = vmatprep.subr.mxu0 0.0
    %2686 = vmatpush1.msra.mxu0 0.0
    %2687 = vmatprep.subr.mxu0 0.0
    %2688 = vmatpush1.msra.mxu0 0.0
    %2689 = vmatprep.subr.mxu0 0.0
    %2690 = vmatpush1.msra.mxu0 0.0
    %2691 = vmatprep.subr.mxu0 0.0
    %2692 = vmatpush1.msra.mxu0 0.0
    %2693 = vmatprep.subr.mxu0 0.0
    %2694 = vmatpush1.msra.mxu0 0.0
    %2695 = vmatprep.subr.mxu0 0.0
    %2696 = vmatpush1.msra.mxu0 0.0
    %2697 = vmatprep.subr.mxu0 0.0
    %2698 = vmatpush1.msra.mxu0 0.0
    %2699 = vmatprep.subr.mxu0 0.0
    %2700 = vmatpush1.msra.mxu0 0.0
    %2701 = vmatprep.subr.mxu0 0.0
    %2702 = vmatpush1.msra.mxu0 0.0
    %2703 = vmatprep.subr.mxu0 0.0
    %2704 = vmatpush1.msra.mxu0 0.0
    %2705 = vmatprep.subr.mxu0 0.0
    %2706 = vmatpush1.msra.mxu0 0.0
    %2707 = vmatprep.subr.mxu0 0.0
    %2708 = vmatpush1.msra.mxu0 0.0
    %2709 = vmatprep.subr.mxu0 0.0
    %2710 = vmatpush1.msra.mxu0 0.0
    %2711 = vmatprep.subr.mxu0 0.0
    %2712 = vmatpush1.msra.mxu0 0.0
    %2713 = vmatprep.subr.mxu0 0.0
    %2714 = vmatpush1.msra.mxu0 0.0
    %2715 = vmatprep.mubr.f32.mxu0 0.0
    %2716 = vmatmul.mubr.f32.gmra.mrb[0].mxu0 %v2643
    %v2717 = vpop.f32.mrb[0].mxu0
    %v2718 = vadd.f32 %v2625, %v2717
    %v2719 = vpop.f32.mrb[0].mxu0
    %2720 = vmatprep.mubr.f32.mxu0 0.0
    %2721 = vmatmul.mubr.f32.gmra.mrb[0].mxu0 %v2645
    %v2722 = vpop.f32.mrb[0].mxu0
    %v2723 = vadd.f32 %v2630, %v2722
    %v2724 = vpop.f32.mrb[0].mxu0
    %2725 = vmatprep.mubr.f32.mxu0 0.0
    %2726 = vmatmul.mubr.f32.gmra.mrb[0].mxu0 %v2647
    %v2727 = vpop.f32.mrb[0].mxu0
    %v2728 = vadd.f32 %v2635, %v2727
    %v2729 = vpop.f32.mrb[0].mxu0
    %2730 = vmatprep.mubr.f32.mxu0 0.0
    %2731 = vmatmul.mubr.f32.gmra.mrb[0].mxu0 %v2649
    %v2732 = vpop.f32.mrb[0].mxu0
    %v2733 = vadd.f32 %v2640, %v2732
    %v2734 = vpop.f32.mrb[0].mxu0
    %2735 = vdwg.mxu0
    %2736 = vrot.lane.b32.xlu0 %v2526, 96
    %v2737 = vpop.permute.xlu0 %2736
    %2738 = vrot.lane.b32.xlu0 %v2527, 96
    %v2739 = vpop.permute.xlu0 %2738
    %2740 = vrot.lane.b32.xlu0 %v2528, 96
    %v2741 = vpop.permute.xlu0 %2740
    %2742 = vrot.lane.b32.xlu0 %v2529, 96
    %v2743 = vpop.permute.xlu0 %2742
    %v2744 = vsel %vm747, %v2737, 0
    %v2746 = vsel %vm747, %v2739, 0
    %v2748 = vsel %vm747, %v2741, 0
    %v2750 = vsel %vm747, %v2743, 0
    %2752 = vmatprep.subr.mxu0 0.0
    %2753 = vmatpush1.msra.mxu0 %v2518
    %2754 = vmatprep.subr.mxu0 0.0
    %2755 = vmatpush1.msra.mxu0 %v2524
    %2756 = vmatprep.subr.mxu0 0.0
    %2757 = vmatpush1.msra.mxu0 0.0
    %2758 = vmatprep.subr.mxu0 0.0
    %2759 = vmatpush1.msra.mxu0 0.0
    %2760 = vmatprep.subr.mxu0 0.0
    %2761 = vmatpush1.msra.mxu0 0.0
    %2762 = vmatprep.subr.mxu0 0.0
    %2763 = vmatpush1.msra.mxu0 0.0
    %2764 = vmatprep.subr.mxu0 0.0
    %2765 = vmatpush1.msra.mxu0 0.0
    %2766 = vmatprep.subr.mxu0 0.0
    %2767 = vmatpush1.msra.mxu0 0.0
    %2768 = vmatprep.subr.mxu0 0.0
    %2769 = vmatpush1.msra.mxu0 0.0
    %2770 = vmatprep.subr.mxu0 0.0
    %2771 = vmatpush1.msra.mxu0 0.0
    %2772 = vmatprep.subr.mxu0 0.0
    %2773 = vmatpush1.msra.mxu0 0.0
    %2774 = vmatprep.subr.mxu0 0.0
    %2775 = vmatpush1.msra.mxu0 0.0
    %2776 = vmatprep.subr.mxu0 0.0
    %2777 = vmatpush1.msra.mxu0 0.0
    %2778 = vmatprep.subr.mxu0 0.0
    %2779 = vmatpush1.msra.mxu0 0.0
    %2780 = vmatprep.subr.mxu0 0.0
    %2781 = vmatpush1.msra.mxu0 0.0
    %2782 = vmatprep.subr.mxu0 0.0
    %2783 = vmatpush1.msra.mxu0 0.0
    %2784 = vmatprep.subr.mxu0 0.0
    %2785 = vmatpush1.msra.mxu0 0.0
    %2786 = vmatprep.subr.mxu0 0.0
    %2787 = vmatpush1.msra.mxu0 0.0
    %2788 = vmatprep.subr.mxu0 0.0
    %2789 = vmatpush1.msra.mxu0 0.0
    %2790 = vmatprep.subr.mxu0 0.0
    %2791 = vmatpush1.msra.mxu0 0.0
    %2792 = vmatprep.subr.mxu0 0.0
    %2793 = vmatpush1.msra.mxu0 0.0
    %2794 = vmatprep.subr.mxu0 0.0
    %2795 = vmatpush1.msra.mxu0 0.0
    %2796 = vmatprep.subr.mxu0 0.0
    %2797 = vmatpush1.msra.mxu0 0.0
    %2798 = vmatprep.subr.mxu0 0.0
    %2799 = vmatpush1.msra.mxu0 0.0
    %2800 = vmatprep.subr.mxu0 0.0
    %2801 = vmatpush1.msra.mxu0 0.0
    %2802 = vmatprep.subr.mxu0 0.0
    %2803 = vmatpush1.msra.mxu0 0.0
    %2804 = vmatprep.subr.mxu0 0.0
    %2805 = vmatpush1.msra.mxu0 0.0
    %2806 = vmatprep.subr.mxu0 0.0
    %2807 = vmatpush1.msra.mxu0 0.0
    %2808 = vmatprep.subr.mxu0 0.0
    %2809 = vmatpush1.msra.mxu0 0.0
    %2810 = vmatprep.subr.mxu0 0.0
    %2811 = vmatpush1.msra.mxu0 0.0
    %2812 = vmatprep.subr.mxu0 0.0
    %2813 = vmatpush1.msra.mxu0 0.0
    %2814 = vmatprep.subr.mxu0 0.0
    %2815 = vmatpush1.msra.mxu0 0.0
    %2816 = vmatprep.mubr.f32.mxu0 0.0
    %2817 = vmatmul.mubr.f32.gmra.mrb[0].mxu0 %v2744
    %v2818 = vpop.f32.mrb[0].mxu0
    %v2819 = vadd.f32 0.0, %v2818
    %v2820 = vpop.f32.mrb[0].mxu0
    %2821 = vmatprep.mubr.f32.mxu0 0.0
    %2822 = vmatmul.mubr.f32.gmra.mrb[0].mxu0 %v2746
    %v2823 = vpop.f32.mrb[0].mxu0
    %v2824 = vadd.f32 0.0, %v2823
    %v2825 = vpop.f32.mrb[0].mxu0
    %2826 = vmatprep.mubr.f32.mxu0 0.0
    %2827 = vmatmul.mubr.f32.gmra.mrb[0].mxu0 %v2748
    %v2828 = vpop.f32.mrb[0].mxu0
    %v2829 = vadd.f32 0.0, %v2828
    %v2830 = vpop.f32.mrb[0].mxu0
    %2831 = vmatprep.mubr.f32.mxu0 0.0
    %2832 = vmatmul.mubr.f32.gmra.mrb[0].mxu0 %v2750
    %v2833 = vpop.f32.mrb[0].mxu0
    %v2834 = vadd.f32 0.0, %v2833
    %v2835 = vpop.f32.mrb[0].mxu0
    %2836 = vdwg.mxu0
    %v2837 = vadd.f32 %v2718, %v2819
    %v2838 = vadd.f32 %v2723, %v2824
    %v2839 = vadd.f32 %v2728, %v2829
    %v2840 = vadd.f32 %v2733, %v2834
    %2841 = vrot.lane.b32.xlu0 %v2526, 80
    %v2842 = vpop.permute.xlu0 %2841
    %2843 = vrot.lane.b32.xlu0 %v2527, 80
    %v2844 = vpop.permute.xlu0 %2843
    %2845 = vrot.lane.b32.xlu0 %v2528, 80
    %v2846 = vpop.permute.xlu0 %2845
    %2847 = vrot.lane.b32.xlu0 %v2529, 80
    %v2848 = vpop.permute.xlu0 %2847
    %2851 = vrot.lane.b32.xlu0 %v2518, 64
    %v2852 = vpop.permute.xlu0 %2851
    %2853 = vrot.lane.b32.xlu0 %v2524, 64
    %v2854 = vpop.permute.xlu0 %2853
    %v2857 = vsel %vm747, %v2842, 0
    %v2859 = vsel %vm747, %v2844, 0
    %v2861 = vsel %vm747, %v2846, 0
    %v2863 = vsel %vm747, %v2848, 0
    %2865 = vmatprep.subr.mxu0 0.0
    %2866 = vmatpush1.msra.mxu0 %v2852
    %2867 = vmatprep.subr.mxu0 0.0
    %2868 = vmatpush1.msra.mxu0 %v2854
    %2869 = vmatprep.subr.mxu0 0.0
    %2870 = vmatpush1.msra.mxu0 0.0
    %2871 = vmatprep.subr.mxu0 0.0
    %2872 = vmatpush1.msra.mxu0 0.0
    %2873 = vmatprep.subr.mxu0 0.0
    %2874 = vmatpush1.msra.mxu0 0.0
    %2875 = vmatprep.subr.mxu0 0.0
    %2876 = vmatpush1.msra.mxu0 0.0
    %2877 = vmatprep.subr.mxu0 0.0
    %2878 = vmatpush1.msra.mxu0 0.0
    %2879 = vmatprep.subr.mxu0 0.0
    %2880 = vmatpush1.msra.mxu0 0.0
    %2881 = vmatprep.subr.mxu0 0.0
    %2882 = vmatpush1.msra.mxu0 0.0
    %2883 = vmatprep.subr.mxu0 0.0
    %2884 = vmatpush1.msra.mxu0 0.0
    %2885 = vmatprep.subr.mxu0 0.0
    %2886 = vmatpush1.msra.mxu0 0.0
    %2887 = vmatprep.subr.mxu0 0.0
    %2888 = vmatpush1.msra.mxu0 0.0
    %2889 = vmatprep.subr.mxu0 0.0
    %2890 = vmatpush1.msra.mxu0 0.0
    %2891 = vmatprep.subr.mxu0 0.0
    %2892 = vmatpush1.msra.mxu0 0.0
    %2893 = vmatprep.subr.mxu0 0.0
    %2894 = vmatpush1.msra.mxu0 0.0
    %2895 = vmatprep.subr.mxu0 0.0
    %2896 = vmatpush1.msra.mxu0 0.0
    %2897 = vmatprep.subr.mxu0 0.0
    %2898 = vmatpush1.msra.mxu0 0.0
    %2899 = vmatprep.subr.mxu0 0.0
    %2900 = vmatpush1.msra.mxu0 0.0
    %2901 = vmatprep.subr.mxu0 0.0
    %2902 = vmatpush1.msra.mxu0 0.0
    %2903 = vmatprep.subr.mxu0 0.0
    %2904 = vmatpush1.msra.mxu0 0.0
    %2905 = vmatprep.subr.mxu0 0.0
    %2906 = vmatpush1.msra.mxu0 0.0
    %2907 = vmatprep.subr.mxu0 0.0
    %2908 = vmatpush1.msra.mxu0 0.0
    %2909 = vmatprep.subr.mxu0 0.0
    %2910 = vmatpush1.msra.mxu0 0.0
    %2911 = vmatprep.subr.mxu0 0.0
    %2912 = vmatpush1.msra.mxu0 0.0
    %2913 = vmatprep.subr.mxu0 0.0
    %2914 = vmatpush1.msra.mxu0 0.0
    %2915 = vmatprep.subr.mxu0 0.0
    %2916 = vmatpush1.msra.mxu0 0.0
    %2917 = vmatprep.subr.mxu0 0.0
    %2918 = vmatpush1.msra.mxu0 0.0
    %2919 = vmatprep.subr.mxu0 0.0
    %2920 = vmatpush1.msra.mxu0 0.0
    %2921 = vmatprep.subr.mxu0 0.0
    %2922 = vmatpush1.msra.mxu0 0.0
    %2923 = vmatprep.subr.mxu0 0.0
    %2924 = vmatpush1.msra.mxu0 0.0
    %2925 = vmatprep.subr.mxu0 0.0
    %2926 = vmatpush1.msra.mxu0 0.0
    %2927 = vmatprep.subr.mxu0 0.0
    %2928 = vmatpush1.msra.mxu0 0.0
    %2929 = vmatprep.mubr.f32.mxu0 0.0
    %2930 = vmatmul.mubr.f32.gmra.mrb[0].mxu0 %v2857
    %v2931 = vpop.f32.mrb[0].mxu0
    %v2932 = vadd.f32 0.0, %v2931
    %v2933 = vpop.f32.mrb[0].mxu0
    %2934 = vmatprep.mubr.f32.mxu0 0.0
    %2935 = vmatmul.mubr.f32.gmra.mrb[0].mxu0 %v2859
    %v2936 = vpop.f32.mrb[0].mxu0
    %v2937 = vadd.f32 0.0, %v2936
    %v2938 = vpop.f32.mrb[0].mxu0
    %2939 = vmatprep.mubr.f32.mxu0 0.0
    %2940 = vmatmul.mubr.f32.gmra.mrb[0].mxu0 %v2861
    %v2941 = vpop.f32.mrb[0].mxu0
    %v2942 = vadd.f32 0.0, %v2941
    %v2943 = vpop.f32.mrb[0].mxu0
    %2944 = vmatprep.mubr.f32.mxu0 0.0
    %2945 = vmatmul.mubr.f32.gmra.mrb[0].mxu0 %v2863
    %v2946 = vpop.f32.mrb[0].mxu0
    %v2947 = vadd.f32 0.0, %v2946
    %v2948 = vpop.f32.mrb[0].mxu0
    %2949 = vdwg.mxu0
    %v2950 = vadd.f32 %v2837, %v2932
    %v2951 = vadd.f32 %v2838, %v2937
    %v2952 = vadd.f32 %v2839, %v2942
    %v2953 = vadd.f32 %v2840, %v2947
    %v2954 = vld [vmem:[%s4 + $0x10] sm:$0x1]
    %v2955 = vlaneseq
    %v2956 = vshrl.u32 %v2955, 7
    %v2957 = vsub.s32 0, %v2956
    %v2958 = vrot.slane %v2954, %v2957
    %v2959 = vadd.f32 %v2950, %v2958
    %v2960 = vadd.f32 %v2951, %v2958
    %v2961 = vadd.f32 %v2952, %v2958
    %v2962 = vadd.f32 %v2953, %v2958
    %v2963 = vxor.u32 %v2959, 2147483648
    %v2964 = vxor.u32 %v2960, 2147483648
    %v2965 = vxor.u32 %v2961, 2147483648
    %v2966 = vxor.u32 %v2962, 2147483648
    %v2967 = vmul.f32 %v2963, 1.442695
    %v2968 = vpow.pop %v2967
    %v2969 = vmul.f32 %v2964, 1.442695
    %v2970 = vpow.pop %v2969
    %v2971 = vmul.f32 %v2965, 1.442695
    %v2972 = vpow.pop %v2971
    %v2973 = vmul.f32 %v2966, 1.442695
    %v2974 = vpow.pop %v2973
    %v2975 = vadd.f32 %v2968, 1.0
    %v2976 = vadd.f32 %v2970, 1.0
    %v2977 = vadd.f32 %v2972, 1.0
    %v2978 = vadd.f32 %v2974, 1.0
    %v2979 = vrcp.pop %v2975
    %v2980 = vmul.f32 1.0, %v2979
    %v2981 = vrcp.pop %v2976
    %v2982 = vmul.f32 1.0, %v2981
    %v2983 = vrcp.pop %v2977
    %v2984 = vmul.f32 1.0, %v2983
    %v2985 = vrcp.pop %v2978
    %v2986 = vmul.f32 1.0, %v2985
    %2987 = vst.msk [vmem:[%s6] sm:$0xff] %vm64, %v2980
    %2988 = vst.msk [vmem:[%s6 + $0x8] sm:$0xff] %vm64, %v2982
    %2989 = vst.msk [vmem:[%s6 + $0x10] sm:$0xff] %vm64, %v2984
    %2990 = vst.msk [vmem:[%s6 + $0x18] sm:$0xff] %vm64, %v2986
    // Predicated region
    $region26: #{vae_forward.1} parent=1 // pred_check
      _
    $region27: #{vae_forward.1} parent=1 // pred_check_branch
      %2992 = sbr.rel (0) target = $region29
    $region28: #{vae_forward.1} parent=1 // pred_region
      _
    $region29: #{vae_forward.1} parent=1 // pred_fallthru
      _
    // Predicated region
    $region30: #{vae_forward.1} parent=1 // pred_check
      _
    $region31: #{vae_forward.1} parent=1 // pred_check_branch
      %2994 = sbr.rel (0) target = $region33
    $region32: #{vae_forward.1} parent=1 // pred_region
      _
    $region33: #{vae_forward.1} parent=1 // pred_fallthru
      _
    // Predicated region
    $region34: #{vae_forward.1} parent=1 // pred_check
      _
    $region35: #{vae_forward.1} parent=1 // pred_check_branch
      %2996 = sbr.rel (0) target = $region37
    $region36: #{vae_forward.1} parent=1 // pred_region
      _
    $region37: #{vae_forward.1} parent=1 // pred_fallthru
      _
    // Predicated region
    $region38: #{vae_forward.1} parent=1 // pred_check
      _
    $region39: #{vae_forward.1} parent=1 // pred_check_branch
      %2998 = sbr.rel (0) target = $region41
    $region40: #{vae_forward.1} parent=1 // pred_region
      _
    $region41: #{vae_forward.1} parent=1 // pred_fallthru
      _
    %2999 = vsyncpa [#allocation3], 1

</llo_original>
